<compile_context>
chip_gen: v5e
topology: v5e:2x2
jax: 0.10.0
libtpu: 0.0.40
codegen_flags: <defaults>
</compile_context>

<pallas_src>
import math
from functools import partial

import jax
import jax.numpy as jnp
from jax.experimental import pallas as pl
from jax.experimental.pallas import tpu as pltpu

_VMEM = pltpu.MemorySpace.VMEM


def _cdiv(a, b):
    return -(-a // b)


# ----------------------------- Pallas kernels ------------------------------

def _conv_pool_relu_kernel(p_ref, w_ref, b_ref, o_ref, *, n_grp, tile):
    """Fused conv (as im2col matmul) + bias + max over n_grp slabs + ReLU.

    p_ref: (K, n_grp*tile)  patch block; slab g occupies lanes [g*tile,(g+1)*tile)
    w_ref: (Cout, K) flattened conv weight;  b_ref: (Cout, 1)
    o_ref: (Cout, tile)
    One weight-stationary MXU dot per block; slab max is a lane-aligned VPU reduce.
    """
    z = jnp.dot(w_ref[...], p_ref[...], preferred_element_type=jnp.float32)
    acc = z[:, :tile]
    for g in range(1, n_grp):                       # lane-aligned slices, pure VPU
        acc = jnp.maximum(acc, z[:, g * tile:(g + 1) * tile])
    o_ref[...] = jnp.maximum(acc + b_ref[...], 0.0)


def _mlp_head_kernel(f_ref, w1_ref, b1_ref, w2_ref, b2_ref, w3_ref, b3_ref, o_ref):
    # Linear(980,256)+ReLU -> Linear(256,128)+ReLU -> Linear(128,40), VMEM-resident.
    h = jnp.dot(f_ref[...], w1_ref[...], preferred_element_type=jnp.float32) + b1_ref[...]
    h = jnp.maximum(h, 0.0)
    h = jnp.dot(h, w2_ref[...], preferred_element_type=jnp.float32) + b2_ref[...]
    h = jnp.maximum(h, 0.0)
    o_ref[...] = jnp.dot(h, w3_ref[...], preferred_element_type=jnp.float32) + b3_ref[...]


# ------------------------------- wrappers -----------------------------------

def conv_pool_relu(p, w, b, *, n_grp, tile, nblk):
    """p: (K, nblk*n_grp*tile), w: (Cout, K), b: (Cout, 1) -> (Cout, nblk*tile)."""
    cout, k = w.shape
    flops = 2 * cout * k * n_grp * tile * nblk + cout * n_grp * tile * nblk
    bytes_accessed = (p.size + w.size + b.size + cout * nblk * tile) * 4
    return pl.pallas_call(
        partial(_conv_pool_relu_kernel, n_grp=n_grp, tile=tile),
        out_shape=jax.ShapeDtypeStruct((cout, nblk * tile), jnp.float32),
        grid=(nblk,),
        in_specs=[
            pl.BlockSpec((k, n_grp * tile), lambda i: (0, i)),
            pl.BlockSpec((cout, k), lambda i: (0, 0)),
            pl.BlockSpec((cout, 1), lambda i: (0, 0)),
        ],
        out_specs=pl.BlockSpec((cout, tile), lambda i: (0, i)),
        compiler_params=pltpu.CompilerParams(dimension_semantics=("parallel",)),
        cost_estimate=pl.CostEstimate(flops=int(flops), transcendentals=0,
                                      bytes_accessed=int(bytes_accessed)),
    )(p, w, b)


def mlp_head(f, w1, b1, w2, b2, w3, b3):
    B = f.shape[0]
    nout = w3.shape[1]
    flops = 2 * B * (w1.shape[0] * w1.shape[1] + w2.shape[0] * w2.shape[1]
                     + w3.shape[0] * w3.shape[1])
    bytes_accessed = sum(int(a.size) for a in (f, w1, b1, w2, b2, w3, b3)) * 4 + B * nout * 4
    return pl.pallas_call(
        _mlp_head_kernel,
        out_shape=jax.ShapeDtypeStruct((B, nout), jnp.float32),
        in_specs=[pl.BlockSpec(memory_space=_VMEM) for _ in range(7)],
        out_specs=pl.BlockSpec(memory_space=_VMEM),
        cost_estimate=pl.CostEstimate(flops=int(flops), transcendentals=0,
                                      bytes_accessed=int(bytes_accessed)),
    )(f, w1, b1, w2, b2, w3, b3)


# --------------------- im2col / pool-window extraction ----------------------
# Pure data movement on small tensors, done once in XLA.  Static unit-stride-2
# slices only; the stride-2 downsampling and the pool-candidate / M-slab structure
# are folded into the patch layout so the Pallas kernels never need strided slices
# or lane-splitting reshapes.  The slab groups are block-interleaved and 128-padded
# so every kernel block sees a contiguous (K, n_grp*tile) window.

def _pooled_conv_patches_1ch(x, tile, ksize=5, pool=2):
    """x: (N, H, W) single-channel images.
    Returns (p, nblk, (hp, wp), npix) with p: (k*k, nblk * pool^2 * tile);
    within block i, candidate c occupies lanes [c*tile, (c+1)*tile)."""
    n, h, w = x.shape
    hc, wc = h - ksize + 1, w - ksize + 1
    hp, wp = hc // pool, wc // pool
    npix = n * hp * wp
    nblk = _cdiv(npix, tile)
    npad = nblk * tile
    cands = []
    for a in range(pool):
        for b in range(pool):
            taps = []
            for di in range(ksize):
                for dj in range(ksize):
                    sl = x[:, a + di: a + di + pool * hp: pool,
                              b + dj: b + dj + pool * wp: pool]          # (N, hp, wp)
                    taps.append(sl.reshape(npix))
            cands.append(jnp.stack(taps, axis=0))                        # (k*k, npix)
    p = jnp.stack(cands, axis=0)                                         # (4, k*k, npix)
    p = jnp.pad(p, ((0, 0), (0, 0), (0, npad - npix)))
    p = p.reshape(pool * pool, ksize * ksize, nblk, tile)
    p = jnp.transpose(p, (1, 2, 0, 3)).reshape(ksize * ksize, nblk * pool * pool * tile)
    return p, nblk, (hp, wp), npix


def _pooled_conv_patches_mch(y, tile, ksize=5, pool=2):
    """y: (C, B, M, H, W) feature maps.
    Returns (p, nblk, (hp, wp), npix) with p: (C*k*k, nblk * (M*pool^2) * tile);
    the M*4 slab groups (pool candidates x M positions) are merged so the kernel
    fuses MaxPool3d(2,2,1) and MaxPool1d(M) in one lane-aligned reduction.
    Patch rows are ordered (c, di, dj) to match PyTorch Conv3d weight flattening."""
    C, B, M, h, w = y.shape
    hc, wc = h - ksize + 1, w - ksize + 1
    hp, wp = hc // pool, wc // pool
    npix = B * hp * wp
    nblk = _cdiv(npix, tile)
    npad = nblk * tile
    K = C * ksize * ksize
    yt = jnp.transpose(y, (2, 1, 0, 3, 4))                               # (M, B, C, H, W)
    cands = []
    for a in range(pool):
        for b in range(pool):
            taps = []
            for di in range(ksize):
                for dj in range(ksize):
                    taps.append(yt[:, :, :, a + di: a + di + pool * hp: pool,
                                            b + dj: b + dj + pool * wp: pool])  # (M,B,C,hp,wp)
            t = jnp.stack(taps, axis=3)                                  # (M, B, C, k*k, hp, wp)
            t = t.reshape(M, B, K, hp * wp)                              # rows ordered (c, di, dj)
            t = jnp.transpose(t, (0, 2, 1, 3)).reshape(M, K, npix)       # cols ordered (b, u, v)
            cands.append(t)
    p = jnp.stack(cands, axis=1)                                         # (M, 4, K, npix)
    p = jnp.pad(p, ((0, 0), (0, 0), (0, 0), (0, npad - npix)))
    p = p.reshape(M * pool * pool, K, nblk, tile)                        # group g = m*4 + cand
    p = jnp.transpose(p, (1, 2, 0, 3)).reshape(K, nblk * M * pool * pool * tile)
    return p, nblk, (hp, wp), npix


# ---------------------------- parameter init --------------------------------

def _uniform(key, shape, fan_in):
    bound = 1.0 / math.sqrt(fan_in)
    return jax.random.uniform(key, shape, jnp.float32, -bound, bound)


def init_params(key, feat_len):
    ks = jax.random.split(key, 10)
    return dict(
        # Conv3d weights flattened to (Cout, Cin*kh*kw); (cin, kh, kw)-major order.
        w1=_uniform(ks[0], (10, 25), 25),              b1=_uniform(ks[1], (10, 1), 25),
        w2=_uniform(ks[2], (20, 250), 250),            b2=_uniform(ks[3], (20, 1), 250),
        # Linear weights stored transposed (Cin, Cout) for x @ W.
        w3=_uniform(ks[4], (feat_len, 256), feat_len), b3=_uniform(ks[5], (1, 256), feat_len),
        w4=_uniform(ks[6], (256, 128), 256),           b4=_uniform(ks[7], (1, 128), 256),
        w5=_uniform(ks[8], (128, 40), 128),            b5=_uniform(ks[9], (1, 40), 128),
    )


# ------------------------------ forward pass --------------------------------

def picnet_forward(x, params):
    """x: (B, 1, S, S, M), as in the PyTorch module."""
    B, _, S, _, M = x.shape
    # Kernel size is 1 along M -> each (b, m) slice is an independent 2-D image.
    x2d = jnp.transpose(x[:, 0].astype(jnp.float32), (0, 3, 1, 2)).reshape(B * M, S, S)

    # Conv3d(1,10,(5,5,1)) + MaxPool3d((2,2,1)) + ReLU — one pallas_call, pixel grid.
    npix1_est = (B * M) * ((S - 4) // 2) ** 2
    tile1 = min(512, _cdiv(npix1_est, 128) * 128)
    p1, nblk1, (hp1, wp1), npix1 = _pooled_conv_patches_1ch(x2d, tile1)
    y1 = conv_pool_relu(p1, params["w1"], params["b1"],
                        n_grp=4, tile=tile1, nblk=nblk1)          # (10, nblk1*tile1)
    y1 = y1[:, :npix1].reshape(10, B, M, hp1, wp1)

    # Conv3d(10,20,(5,5,1)) + MaxPool3d + ReLU + MaxPool1d(M) — one pallas_call.
    # (Dropout3d between conv2 and the pool is eval-mode identity.)
    npix2_est = B * ((hp1 - 4) // 2) ** 2
    tile2 = min(256, _cdiv(npix2_est, 128) * 128)
    p2, nblk2, (hp2, wp2), npix2 = _pooled_conv_patches_mch(y1, tile2)
    g = conv_pool_relu(p2, params["w2"], params["b2"],
                       n_grp=4 * M, tile=tile2, nblk=nblk2)       # (20, nblk2*tile2)

    # View2D/View1D feature ordering: feat[b, c*(hp2*wp2) + pixel].
    feat = jnp.transpose(g[:, :npix2].reshape(20, B, hp2 * wp2), (1, 0, 2))
    feat = feat.reshape(B, 20 * hp2 * wp2)

    # Linear(980,256)+ReLU -> Linear(256,128)+ReLU -> Linear(128,40) — one pallas_call.
    # (Dropout layers in the head are eval-mode identities.)
    return mlp_head(feat, params["w3"], params["b3"], params["w4"], params["b4"],
                    params["w5"], params["b5"])


if __name__ == "__main__":
    B, S, M = 2, 40, 6            # PicNet defaults: m=6, s=40 -> feature_len = 980
    feat_len = 20 * (S // 4 - 3) ** 2

    key = jax.random.PRNGKey(0)
    pkey, xkey = jax.random.split(key)
    params = init_params(pkey, feat_len)
    x = jax.random.normal(xkey, (B, 1, S, S, M), jnp.float32)

    logits = jax.jit(picnet_forward)(x, params)
    jax.block_until_ready(logits)

    assert logits.shape == (B, 40) and logits.dtype == jnp.float32
    assert bool(jnp.all(jnp.isfinite(logits)))
    print("KERNEL_OK")
</pallas_src>

<mosaic_0001>
module attributes {stable_mosaic.version = 11 : i64} {
  func.func @_conv_pool_relu_kernel(%arg0: i32, %arg1: memref<25x2048xf32, #tpu.memory_space<vmem>>, %arg2: memref<10x25xf32, #tpu.memory_space<vmem>>, %arg3: memref<10x1xf32, #tpu.memory_space<vmem>>, %arg4: memref<10x512xf32, #tpu.memory_space<vmem>>) attributes {dimension_semantics = [#tpu.dimension_semantics<parallel>], iteration_bounds = array<i64: 8>, scalar_prefetch = 0 : i64, scratch_operands = 0 : i64, tpu.core_type = #tpu.core_type<tc>, window_params = [{transform_indices = @transform_0, window_bounds = array<i64: 25, 2048>}, {pipeline_mode = #tpu.pipeline_mode<synchronous>, transform_indices = @transform_1, window_bounds = array<i64: 10, 25>}, {pipeline_mode = #tpu.pipeline_mode<synchronous>, transform_indices = @transform_2, window_bounds = array<i64: 10, 1>}, {transform_indices = @transform_3, window_bounds = array<i64: 10, 512>}]} {
    %c0 = arith.constant 0 : index
    %c0_0 = arith.constant 0 : index
    %0 = vector.load %arg2[%c0, %c0_0] : memref<10x25xf32, #tpu.memory_space<vmem>>, vector<10x25xf32>
    %c0_1 = arith.constant 0 : index
    %c0_2 = arith.constant 0 : index
    %1 = vector.load %arg1[%c0_1, %c0_2] : memref<25x2048xf32, #tpu.memory_space<vmem>>, vector<25x2048xf32>
    %cst = arith.constant dense<0.000000e+00> : vector<10x2048xf32>
    %2 = tpu.matmul %0, %1, %cst {dimension_numbers = #tpu.dot_dimension_numbers<[1], [0], [0], [1], [0, 0, 1, 1], [], []>} : vector<10x25xf32>, vector<25x2048xf32>, vector<10x2048xf32> -> vector<10x2048xf32>
    %3 = vector.extract_strided_slice %2 {offsets = [0, 0], sizes = [10, 512], strides = [1, 1]} : vector<10x2048xf32> to vector<10x512xf32>
    %4 = vector.extract_strided_slice %2 {offsets = [0, 512], sizes = [10, 512], strides = [1, 1]} : vector<10x2048xf32> to vector<10x512xf32>
    %5 = arith.maximumf %3, %4 : vector<10x512xf32>
    %6 = vector.extract_strided_slice %2 {offsets = [0, 1024], sizes = [10, 512], strides = [1, 1]} : vector<10x2048xf32> to vector<10x512xf32>
    %7 = arith.maximumf %5, %6 : vector<10x512xf32>
    %8 = vector.extract_strided_slice %2 {offsets = [0, 1536], sizes = [10, 512], strides = [1, 1]} : vector<10x2048xf32> to vector<10x512xf32>
    %9 = arith.maximumf %7, %8 : vector<10x512xf32>
    %c0_3 = arith.constant 0 : index
    %c0_4 = arith.constant 0 : index
    %10 = vector.load %arg3[%c0_3, %c0_4] : memref<10x1xf32, #tpu.memory_space<vmem>>, vector<10x1xf32>
    %11 = vector.broadcast %10 : vector<10x1xf32> to vector<10x512xf32>
    %12 = arith.addf %9, %11 : vector<10x512xf32>
    %cst_5 = arith.constant 0.000000e+00 : f32
    %13 = vector.broadcast %cst_5 : f32 to vector<10x512xf32>
    %14 = arith.maximumf %12, %13 : vector<10x512xf32>
    %c0_6 = arith.constant 0 : index
    %c0_7 = arith.constant 0 : index
    %15 = vector.load %arg4[%c0_6, %c0_7] : memref<10x512xf32, #tpu.memory_space<vmem>>, vector<10x512xf32>
    tpu.vector_store %arg4[%c0_6, %c0_7], %14 {strides = array<i32>} : memref<10x512xf32, #tpu.memory_space<vmem>>, vector<10x512xf32>,
    return
  }
  func.func @transform_0(%arg0: i32) -> (i32, i32) {
    %c0_i32 = arith.constant 0 : i32
    %c0_i32_0 = arith.constant 0 : i32
    return %c0_i32, %arg0 : i32, i32
  }
  func.func @transform_1(%arg0: i32) -> (i32, i32) {
    %c0_i32 = arith.constant 0 : i32
    %c0_i32_0 = arith.constant 0 : i32
    %c0_i32_1 = arith.constant 0 : i32
    return %c0_i32, %c0_i32_0 : i32, i32
  }
  func.func @transform_2(%arg0: i32) -> (i32, i32) {
    %c0_i32 = arith.constant 0 : i32
    %c0_i32_0 = arith.constant 0 : i32
    %c0_i32_1 = arith.constant 0 : i32
    return %c0_i32, %c0_i32_0 : i32, i32
  }
  func.func @transform_3(%arg0: i32) -> (i32, i32) {
    %c0_i32 = arith.constant 0 : i32
    %c0_i32_0 = arith.constant 0 : i32
    return %c0_i32, %arg0 : i32, i32
  }
}

module attributes {stable_mosaic.version = 11 : i64} {
  func.func @_conv_pool_relu_kernel(%arg0: i32, %arg1: memref<250x3072xf32, #tpu.memory_space<vmem>>, %arg2: memref<20x250xf32, #tpu.memory_space<vmem>>, %arg3: memref<20x1xf32, #tpu.memory_space<vmem>>, %arg4: memref<20x128xf32, #tpu.memory_space<vmem>>) attributes {dimension_semantics = [#tpu.dimension_semantics<parallel>], iteration_bounds = array<i64: 1>, scalar_prefetch = 0 : i64, scratch_operands = 0 : i64, tpu.core_type = #tpu.core_type<tc>, window_params = [{transform_indices = @transform_0, window_bounds = array<i64: 250, 3072>}, {pipeline_mode = #tpu.pipeline_mode<synchronous>, transform_indices = @transform_1, window_bounds = array<i64: 20, 250>}, {pipeline_mode = #tpu.pipeline_mode<synchronous>, transform_indices = @transform_2, window_bounds = array<i64: 20, 1>}, {transform_indices = @transform_3, window_bounds = array<i64: 20, 128>}]} {
    %c0 = arith.constant 0 : index
    %c0_0 = arith.constant 0 : index
    %0 = vector.load %arg2[%c0, %c0_0] : memref<20x250xf32, #tpu.memory_space<vmem>>, vector<20x250xf32>
    %c0_1 = arith.constant 0 : index
    %c0_2 = arith.constant 0 : index
    %1 = vector.load %arg1[%c0_1, %c0_2] : memref<250x3072xf32, #tpu.memory_space<vmem>>, vector<250x3072xf32>
    %cst = arith.constant dense<0.000000e+00> : vector<20x3072xf32>
    %2 = tpu.matmul %0, %1, %cst {dimension_numbers = #tpu.dot_dimension_numbers<[1], [0], [0], [1], [0, 0, 1, 1], [], []>} : vector<20x250xf32>, vector<250x3072xf32>, vector<20x3072xf32> -> vector<20x3072xf32>
    %3 = vector.extract_strided_slice %2 {offsets = [0, 0], sizes = [20, 128], strides = [1, 1]} : vector<20x3072xf32> to vector<20x128xf32>
    %4 = vector.extract_strided_slice %2 {offsets = [0, 128], sizes = [20, 128], strides = [1, 1]} : vector<20x3072xf32> to vector<20x128xf32>
    %5 = arith.maximumf %3, %4 : vector<20x128xf32>
    %6 = vector.extract_strided_slice %2 {offsets = [0, 256], sizes = [20, 128], strides = [1, 1]} : vector<20x3072xf32> to vector<20x128xf32>
    %7 = arith.maximumf %5, %6 : vector<20x128xf32>
    %8 = vector.extract_strided_slice %2 {offsets = [0, 384], sizes = [20, 128], strides = [1, 1]} : vector<20x3072xf32> to vector<20x128xf32>
    %9 = arith.maximumf %7, %8 : vector<20x128xf32>
    %10 = vector.extract_strided_slice %2 {offsets = [0, 512], sizes = [20, 128], strides = [1, 1]} : vector<20x3072xf32> to vector<20x128xf32>
    %11 = arith.maximumf %9, %10 : vector<20x128xf32>
    %12 = vector.extract_strided_slice %2 {offsets = [0, 640], sizes = [20, 128], strides = [1, 1]} : vector<20x3072xf32> to vector<20x128xf32>
    %13 = arith.maximumf %11, %12 : vector<20x128xf32>
    %14 = vector.extract_strided_slice %2 {offsets = [0, 768], sizes = [20, 128], strides = [1, 1]} : vector<20x3072xf32> to vector<20x128xf32>
    %15 = arith.maximumf %13, %14 : vector<20x128xf32>
    %16 = vector.extract_strided_slice %2 {offsets = [0, 896], sizes = [20, 128], strides = [1, 1]} : vector<20x3072xf32> to vector<20x128xf32>
    %17 = arith.maximumf %15, %16 : vector<20x128xf32>
    %18 = vector.extract_strided_slice %2 {offsets = [0, 1024], sizes = [20, 128], strides = [1, 1]} : vector<20x3072xf32> to vector<20x128xf32>
    %19 = arith.maximumf %17, %18 : vector<20x128xf32>
    %20 = vector.extract_strided_slice %2 {offsets = [0, 1152], sizes = [20, 128], strides = [1, 1]} : vector<20x3072xf32> to vector<20x128xf32>
    %21 = arith.maximumf %19, %20 : vector<20x128xf32>
    %22 = vector.extract_strided_slice %2 {offsets = [0, 1280], sizes = [20, 128], strides = [1, 1]} : vector<20x3072xf32> to vector<20x128xf32>
    %23 = arith.maximumf %21, %22 : vector<20x128xf32>
    %24 = vector.extract_strided_slice %2 {offsets = [0, 1408], sizes = [20, 128], strides = [1, 1]} : vector<20x3072xf32> to vector<20x128xf32>
    %25 = arith.maximumf %23, %24 : vector<20x128xf32>
    %26 = vector.extract_strided_slice %2 {offsets = [0, 1536], sizes = [20, 128], strides = [1, 1]} : vector<20x3072xf32> to vector<20x128xf32>
    %27 = arith.maximumf %25, %26 : vector<20x128xf32>
    %28 = vector.extract_strided_slice %2 {offsets = [0, 1664], sizes = [20, 128], strides = [1, 1]} : vector<20x3072xf32> to vector<20x128xf32>
    %29 = arith.maximumf %27, %28 : vector<20x128xf32>
    %30 = vector.extract_strided_slice %2 {offsets = [0, 1792], sizes = [20, 128], strides = [1, 1]} : vector<20x3072xf32> to vector<20x128xf32>
    %31 = arith.maximumf %29, %30 : vector<20x128xf32>
    %32 = vector.extract_strided_slice %2 {offsets = [0, 1920], sizes = [20, 128], strides = [1, 1]} : vector<20x3072xf32> to vector<20x128xf32>
    %33 = arith.maximumf %31, %32 : vector<20x128xf32>
    %34 = vector.extract_strided_slice %2 {offsets = [0, 2048], sizes = [20, 128], strides = [1, 1]} : vector<20x3072xf32> to vector<20x128xf32>
    %35 = arith.maximumf %33, %34 : vector<20x128xf32>
    %36 = vector.extract_strided_slice %2 {offsets = [0, 2176], sizes = [20, 128], strides = [1, 1]} : vector<20x3072xf32> to vector<20x128xf32>
    %37 = arith.maximumf %35, %36 : vector<20x128xf32>
    %38 = vector.extract_strided_slice %2 {offsets = [0, 2304], sizes = [20, 128], strides = [1, 1]} : vector<20x3072xf32> to vector<20x128xf32>
    %39 = arith.maximumf %37, %38 : vector<20x128xf32>
    %40 = vector.extract_strided_slice %2 {offsets = [0, 2432], sizes = [20, 128], strides = [1, 1]} : vector<20x3072xf32> to vector<20x128xf32>
    %41 = arith.maximumf %39, %40 : vector<20x128xf32>
    %42 = vector.extract_strided_slice %2 {offsets = [0, 2560], sizes = [20, 128], strides = [1, 1]} : vector<20x3072xf32> to vector<20x128xf32>
    %43 = arith.maximumf %41, %42 : vector<20x128xf32>
    %44 = vector.extract_strided_slice %2 {offsets = [0, 2688], sizes = [20, 128], strides = [1, 1]} : vector<20x3072xf32> to vector<20x128xf32>
    %45 = arith.maximumf %43, %44 : vector<20x128xf32>
    %46 = vector.extract_strided_slice %2 {offsets = [0, 2816], sizes = [20, 128], strides = [1, 1]} : vector<20x3072xf32> to vector<20x128xf32>
    %47 = arith.maximumf %45, %46 : vector<20x128xf32>
    %48 = vector.extract_strided_slice %2 {offsets = [0, 2944], sizes = [20, 128], strides = [1, 1]} : vector<20x3072xf32> to vector<20x128xf32>
    %49 = arith.maximumf %47, %48 : vector<20x128xf32>
    %c0_3 = arith.constant 0 : index
    %c0_4 = arith.constant 0 : index
    %50 = vector.load %arg3[%c0_3, %c0_4] : memref<20x1xf32, #tpu.memory_space<vmem>>, vector<20x1xf32>
    %51 = vector.broadcast %50 : vector<20x1xf32> to vector<20x128xf32>
    %52 = arith.addf %49, %51 : vector<20x128xf32>
    %cst_5 = arith.constant 0.000000e+00 : f32
    %53 = vector.broadcast %cst_5 : f32 to vector<20x128xf32>
    %54 = arith.maximumf %52, %53 : vector<20x128xf32>
    %c0_6 = arith.constant 0 : index
    %c0_7 = arith.constant 0 : index
    %55 = vector.load %arg4[%c0_6, %c0_7] : memref<20x128xf32, #tpu.memory_space<vmem>>, vector<20x128xf32>
    tpu.vector_store %arg4[%c0_6, %c0_7], %54 {strides = array<i32>} : memref<20x128xf32, #tpu.memory_space<vmem>>, vector<20x128xf32>,
    return
  }
  func.func @transform_0(%arg0: i32) -> (i32, i32) {
    %c0_i32 = arith.constant 0 : i32
    %c0_i32_0 = arith.constant 0 : i32
    return %c0_i32, %arg0 : i32, i32
  }
  func.func @transform_1(%arg0: i32) -> (i32, i32) {
    %c0_i32 = arith.constant 0 : i32
    %c0_i32_0 = arith.constant 0 : i32
    %c0_i32_1 = arith.constant 0 : i32
    return %c0_i32, %c0_i32_0 : i32, i32
  }
  func.func @transform_2(%arg0: i32) -> (i32, i32) {
    %c0_i32 = arith.constant 0 : i32
    %c0_i32_0 = arith.constant 0 : i32
    %c0_i32_1 = arith.constant 0 : i32
    return %c0_i32, %c0_i32_0 : i32, i32
  }
  func.func @transform_3(%arg0: i32) -> (i32, i32) {
    %c0_i32 = arith.constant 0 : i32
    %c0_i32_0 = arith.constant 0 : i32
    return %c0_i32, %arg0 : i32, i32
  }
}

module attributes {stable_mosaic.version = 11 : i64} {
  func.func @_mlp_head_kernel(%arg0: memref<2x980xf32, #tpu.memory_space<vmem>>, %arg1: memref<980x256xf32, #tpu.memory_space<vmem>>, %arg2: memref<1x256xf32, #tpu.memory_space<vmem>>, %arg3: memref<256x128xf32, #tpu.memory_space<vmem>>, %arg4: memref<1x128xf32, #tpu.memory_space<vmem>>, %arg5: memref<128x40xf32, #tpu.memory_space<vmem>>, %arg6: memref<1x40xf32, #tpu.memory_space<vmem>>, %arg7: memref<2x40xf32, #tpu.memory_space<vmem>>) attributes {dimension_semantics = [], scalar_prefetch = 0 : i64, scratch_operands = 0 : i64, tpu.core_type = #tpu.core_type<tc>} {
    %c0 = arith.constant 0 : index
    %c0_0 = arith.constant 0 : index
    %0 = vector.load %arg0[%c0, %c0_0] : memref<2x980xf32, #tpu.memory_space<vmem>>, vector<2x980xf32>
    %c0_1 = arith.constant 0 : index
    %c0_2 = arith.constant 0 : index
    %1 = vector.load %arg1[%c0_1, %c0_2] : memref<980x256xf32, #tpu.memory_space<vmem>>, vector<980x256xf32>
    %cst = arith.constant dense<0.000000e+00> : vector<2x256xf32>
    %2 = tpu.matmul %0, %1, %cst {dimension_numbers = #tpu.dot_dimension_numbers<[1], [0], [0], [1], [0, 0, 1, 1], [], []>} : vector<2x980xf32>, vector<980x256xf32>, vector<2x256xf32> -> vector<2x256xf32>
    %c0_3 = arith.constant 0 : index
    %c0_4 = arith.constant 0 : index
    %3 = vector.load %arg2[%c0_3, %c0_4] : memref<1x256xf32, #tpu.memory_space<vmem>>, vector<1x256xf32>
    %4 = vector.broadcast %3 : vector<1x256xf32> to vector<2x256xf32>
    %5 = arith.addf %2, %4 : vector<2x256xf32>
    %cst_5 = arith.constant 0.000000e+00 : f32
    %6 = vector.broadcast %cst_5 : f32 to vector<2x256xf32>
    %7 = arith.maximumf %5, %6 : vector<2x256xf32>
    %c0_6 = arith.constant 0 : index
    %c0_7 = arith.constant 0 : index
    %8 = vector.load %arg3[%c0_6, %c0_7] : memref<256x128xf32, #tpu.memory_space<vmem>>, vector<256x128xf32>
    %cst_8 = arith.constant dense<0.000000e+00> : vector<2x128xf32>
    %9 = tpu.matmul %7, %8, %cst_8 {dimension_numbers = #tpu.dot_dimension_numbers<[1], [0], [0], [1], [0, 0, 1, 1], [], []>} : vector<2x256xf32>, vector<256x128xf32>, vector<2x128xf32> -> vector<2x128xf32>
    %c0_9 = arith.constant 0 : index
    %c0_10 = arith.constant 0 : index
    %10 = vector.load %arg4[%c0_9, %c0_10] : memref<1x128xf32, #tpu.memory_space<vmem>>, vector<1x128xf32>
    %11 = vector.broadcast %10 : vector<1x128xf32> to vector<2x128xf32>
    %12 = arith.addf %9, %11 : vector<2x128xf32>
    %cst_11 = arith.constant 0.000000e+00 : f32
    %13 = vector.broadcast %cst_11 : f32 to vector<2x128xf32>
    %14 = arith.maximumf %12, %13 : vector<2x128xf32>
    %c0_12 = arith.constant 0 : index
    %c0_13 = arith.constant 0 : index
    %15 = vector.load %arg5[%c0_12, %c0_13] : memref<128x40xf32, #tpu.memory_space<vmem>>, vector<128x40xf32>
    %cst_14 = arith.constant dense<0.000000e+00> : vector<2x40xf32>
    %16 = tpu.matmul %14, %15, %cst_14 {dimension_numbers = #tpu.dot_dimension_numbers<[1], [0], [0], [1], [0, 0, 1, 1], [], []>} : vector<2x128xf32>, vector<128x40xf32>, vector<2x40xf32> -> vector<2x40xf32>
    %c0_15 = arith.constant 0 : index
    %c0_16 = arith.constant 0 : index
    %17 = vector.load %arg6[%c0_15, %c0_16] : memref<1x40xf32, #tpu.memory_space<vmem>>, vector<1x40xf32>
    %18 = vector.broadcast %17 : vector<1x40xf32> to vector<2x40xf32>
    %19 = arith.addf %16, %18 : vector<2x40xf32>
    %c0_17 = arith.constant 0 : index
    %c0_18 = arith.constant 0 : index
    %20 = vector.load %arg7[%c0_17, %c0_18] : memref<2x40xf32, #tpu.memory_space<vmem>>, vector<2x40xf32>
    tpu.vector_store %arg7[%c0_17, %c0_18], %19 {strides = array<i32>} : memref<2x40xf32, #tpu.memory_space<vmem>>, vector<2x40xf32>,
    return
  }
}

</mosaic_0001>

<llo_original>
// kernel: picnet_forward.3
$region0: #{picnet_forward.3}
  #allocation0 [shape = 'u32[]', space=smem, size = 0x4, offset = 0x4, fixed_abs, tag = 'smem constant byte address 0x4 - core index']
  #allocation1 [shape = 'u32[72,128]{1,0:T(1,128)}', space=vmem, size = 0x9000, scoped, tag = 'internal scratch']
  %s0 = inlined_call_operand.vmem [shape: f32[25,16384], index: 0, kind: input, shape index: {}]
  %s1 = inlined_call_operand.vmem [shape: f32[10,25], index: 1, kind: input, shape index: {}]
  %s2 = inlined_call_operand.vmem [shape: f32[10,1], index: 2, kind: input, shape index: {}]
  %s3 = inlined_call_operand.vmem [shape: f32[10,4096], index: 3, kind: output, shape index: {}]
  %s4 = sld [smem:[#allocation0]]
  $region87: #{picnet_forward.3} parent=0
    _
  %s6 = ssub.s32 1, %s4
  %s7 = scalar_select 0, %s6, %s4
  $region1: #{picnet_forward.3} parent=0
    #allocation2 [shape = 'u8[524288]{0}', space=vmem, size = 0x80000, scoped, tag = 'input window, operand 0']
    #allocation3 [shape = 'u8[65536]{0}', space=vmem, size = 0x10000, scoped, tag = 'output window, operand 0']
    loop: start=0, step=1, limit=10
    $region2: #{picnet_forward.3} parent=1 // loop_pre_header
      _
    $region3: #{picnet_forward.3} parent=1 // loop_header
      %s9 = sphi 0, %s13
      %p10 = scmp.ge.s32.totalorder %s9, 10
      %s19 = sphi 0, %s21
      %s22 = sphi 0, %s19
      %s23 = sphi 0, %s22
      %s39 = sphi 0, %s23
      %s43 = sphi 0, %s43
      %s45 = sphi 0, %s43
      %s46 = sphi 0, %s45
      %s60 = sphi 0, %s46
      %s64 = sphi 0, %s64
      %s66 = sphi 0, %s64
      %s67 = sphi 0, %s66
      %s81 = sphi 0, %s67
      %s87 = sphi 0, %s89
      %s90 = sphi 0, %s87
      %s91 = sphi 0, %s90
      %s107 = sphi 0, %s91
    $region4: #{picnet_forward.3} parent=1 // loop_header_branch
      %12 = sbr.rel (%p10) target = $region8
    $region5: #{picnet_forward.3} parent=1 // loop_body
      %s14 = ssub.s32 %s9, 1
      %s15 = ssub.s32 %s9, 2
      %s16 = sadd.s32 %s9, 1
      %s17 = ssub.s32 %s9, %s16
      %p18 = scmp.eq.s32.totalorder %s17, 0
      %s20 = sadd.s32 %s19, 1
      %s21 = scalar_select %p18, %s19, %s20
      %p24 = pneg %p18
      %p25 = scmp.eq.s32.totalorder %s9, 7
      %p26 = por %p24, %p25
      %p27 = scmp.ne.s32.totalorder %s19, %s22
      %p28 = scmp.eq.s32.totalorder %s9, 0
      %p29 = por %p27, %p28
      %p30 = scmp.ne.s32.totalorder %s19, %s22
      %p31 = scmp.eq.s32.totalorder %s14, 7
      %p32 = por %p30, %p31
      %p33 = scmp.ne.s32.totalorder %s22, %s23
      %p34 = scmp.eq.s32.totalorder %s14, 0
      %p35 = por %p33, %p34
      %p36 = scmp.ne.s32.totalorder %s22, %s23
      %p37 = scmp.eq.s32.totalorder %s15, 7
      %p38 = por %p36, %p37
      %p40 = scmp.ne.s32.totalorder %s23, %s39
      %p41 = scmp.eq.s32.totalorder %s15, 0
      %p42 = por %p40, %p41
      %s44 = sadd.s32 %s43, 1
      %p47 = scmp.eq.s32.totalorder %s9, 7
      %p48 = scmp.ne.s32.totalorder %s43, %s45
      %p49 = scmp.eq.s32.totalorder %s9, 0
      %p50 = por %p48, %p49
      %p51 = scmp.ne.s32.totalorder %s43, %s45
      %p52 = scmp.eq.s32.totalorder %s14, 7
      %p53 = por %p51, %p52
      %p54 = scmp.ne.s32.totalorder %s45, %s46
      %p55 = scmp.eq.s32.totalorder %s14, 0
      %p56 = por %p54, %p55
      %p57 = scmp.ne.s32.totalorder %s45, %s46
      %p58 = scmp.eq.s32.totalorder %s15, 7
      %p59 = por %p57, %p58
      %p61 = scmp.ne.s32.totalorder %s46, %s60
      %p62 = scmp.eq.s32.totalorder %s15, 0
      %p63 = por %p61, %p62
      %s65 = sadd.s32 %s64, 1
      %p68 = scmp.eq.s32.totalorder %s9, 7
      %p69 = scmp.ne.s32.totalorder %s64, %s66
      %p70 = scmp.eq.s32.totalorder %s9, 0
      %p71 = por %p69, %p70
      %p72 = scmp.ne.s32.totalorder %s64, %s66
      %p73 = scmp.eq.s32.totalorder %s14, 7
      %p74 = por %p72, %p73
      %p75 = scmp.ne.s32.totalorder %s66, %s67
      %p76 = scmp.eq.s32.totalorder %s14, 0
      %p77 = por %p75, %p76
      %p78 = scmp.ne.s32.totalorder %s66, %s67
      %p79 = scmp.eq.s32.totalorder %s15, 7
      %p80 = por %p78, %p79
      %p82 = scmp.ne.s32.totalorder %s67, %s81
      %p83 = scmp.eq.s32.totalorder %s15, 0
      %p84 = por %p82, %p83
      %s85 = ssub.s32 %s9, %s16
      %p86 = scmp.eq.s32.totalorder %s85, 0
      %s88 = sadd.s32 %s87, 1
      %s89 = scalar_select %p86, %s87, %s88
      %p92 = pneg %p86
      %p93 = scmp.eq.s32.totalorder %s9, 7
      %p94 = por %p92, %p93
      %p95 = scmp.ne.s32.totalorder %s87, %s90
      %p96 = scmp.eq.s32.totalorder %s9, 0
      %p97 = por %p95, %p96
      %p98 = scmp.ne.s32.totalorder %s87, %s90
      %p99 = scmp.eq.s32.totalorder %s14, 7
      %p100 = por %p98, %p99
      %p101 = scmp.ne.s32.totalorder %s90, %s91
      %p102 = scmp.eq.s32.totalorder %s14, 0
      %p103 = por %p101, %p102
      %p104 = scmp.ne.s32.totalorder %s90, %s91
      %p105 = scmp.eq.s32.totalorder %s15, 7
      %p106 = por %p104, %p105
      %p108 = scmp.ne.s32.totalorder %s91, %s107
      %p109 = scmp.eq.s32.totalorder %s15, 0
      %p110 = por %p108, %p109
      %p111 = scmp.le.s32.totalorder 1, %s9
      %p112 = scmp.lt.s32.totalorder %s9, 9
      %p113 = pnand %p111, %p112
      %p114 = pneg %p113
      // Predicated region
      $region9: #{picnet_forward.3} parent=5 // pred_check
        _
      $region10: #{picnet_forward.3} parent=5 // pred_check_branch
        %116 = sbr.rel (%p113) target = $region12
      $region11: #{picnet_forward.3} parent=5 // pred_region
        %s117 = ssub.s32 %s9, 1
        // Predicated region
        $region13: #{picnet_forward.3} parent=11 // pred_check
          %p118 = pneg %p56
        $region14: #{picnet_forward.3} parent=11 // pred_check_branch
          %120 = sbr.rel (%p118) target = $region16
        $region15: #{picnet_forward.3} parent=11 // pred_region
          _
        $region16: #{picnet_forward.3} parent=11 // pred_fallthru
          _
        // Predicated region
        $region17: #{picnet_forward.3} parent=11 // pred_check
          %p121 = pneg %p77
        $region18: #{picnet_forward.3} parent=11 // pred_check_branch
          %123 = sbr.rel (%p121) target = $region20
        $region19: #{picnet_forward.3} parent=11 // pred_region
          _
        $region20: #{picnet_forward.3} parent=11 // pred_fallthru
          _
      $region12: #{picnet_forward.3} parent=5 // pred_fallthru
        _
      %p124 = scmp.lt.s32.totalorder %s9, 8
      // Predicated region
      $region21: #{picnet_forward.3} parent=5 // pred_check
        %p125 = pneg %p124
      $region22: #{picnet_forward.3} parent=5 // pred_check_branch
        %127 = sbr.rel (%p125) target = $region24
      $region23: #{picnet_forward.3} parent=5 // pred_region
        // Predicated region
        $region25: #{picnet_forward.3} parent=23 // pred_check
          %p128 = pneg %p29
        $region26: #{picnet_forward.3} parent=23 // pred_check_branch
          %130 = sbr.rel (%p128) target = $region28
        $region27: #{picnet_forward.3} parent=23 // pred_region
          %s131 = sand.u32 %s19, 1
          %s132 = sand.u32 %s19, 1
          %s133 = smul.addr %s132, 512
          %s134 = scalar_lea.vmem [#allocation2], %s133
          %s135 = smul.u32 16, %s9
          %s136 = smul.addr %s135, 8
          %s137 = scalar_lea.vmem %s0, %s136
          // Predicated region
          $region29: #{picnet_forward.3} parent=27 // pred_check
            _
          $region30: #{picnet_forward.3} parent=27 // pred_check_branch
            %139 = sbr.rel (0) target = $region32
          $region31: #{picnet_forward.3} parent=27 // pred_region
            // Predicated region
            $region33: #{picnet_forward.3} parent=31 // pred_check
              _
            $region34: #{picnet_forward.3} parent=31 // pred_check_branch
              %141 = sbr.rel (0) target = $region36
            $region35: #{picnet_forward.3} parent=31 // pred_region
              loop: start=0, step=1, limit=1
              $region37: #{picnet_forward.3} parent=35 // loop_pre_header
                _
              $region38: #{picnet_forward.3} parent=35 // loop_header
                %s143 = sphi 0, %s147
                %p144 = scmp.ge.s32.totalorder %s143, 1
                %s148 = sphi %s137, %s137
                %s149 = sphi %s134, %s134
              $region39: #{picnet_forward.3} parent=35 // loop_header_branch
                %146 = sbr.rel (%p144) target = $region43
              $region40: #{picnet_forward.3} parent=35 // loop_body
                %v150 = vld [vmem:[%s148] sm:$0xff]
                %151 = vst [vmem:[%s149] sm:$0xff] %v150
                %v152 = vld [vmem:[%s148 + $0x8] sm:$0xff]
                %153 = vst [vmem:[%s149 + $0x8] sm:$0xff] %v152
                %v154 = vld [vmem:[%s148 + $0x10] sm:$0xff]
                %155 = vst [vmem:[%s149 + $0x10] sm:$0xff] %v154
                %v156 = vld [vmem:[%s148 + $0x18] sm:$0xff]
                %157 = vst [vmem:[%s149 + $0x18] sm:$0xff] %v156
                %v158 = vld [vmem:[%s148 + $0x20] sm:$0xff]
                %159 = vst [vmem:[%s149 + $0x20] sm:$0xff] %v158
                %v160 = vld [vmem:[%s148 + $0x28] sm:$0xff]
                %161 = vst [vmem:[%s149 + $0x28] sm:$0xff] %v160
                %v162 = vld [vmem:[%s148 + $0x30] sm:$0xff]
                %163 = vst [vmem:[%s149 + $0x30] sm:$0xff] %v162
                %v164 = vld [vmem:[%s148 + $0x38] sm:$0xff]
                %165 = vst [vmem:[%s149 + $0x38] sm:$0xff] %v164
                %v166 = vld [vmem:[%s148 + $0x40] sm:$0xff]
                %167 = vst [vmem:[%s149 + $0x40] sm:$0xff] %v166
                %v168 = vld [vmem:[%s148 + $0x48] sm:$0xff]
                %169 = vst [vmem:[%s149 + $0x48] sm:$0xff] %v168
                %v170 = vld [vmem:[%s148 + $0x50] sm:$0xff]
                %171 = vst [vmem:[%s149 + $0x50] sm:$0xff] %v170
                %v172 = vld [vmem:[%s148 + $0x58] sm:$0xff]
                %173 = vst [vmem:[%s149 + $0x58] sm:$0xff] %v172
                %v174 = vld [vmem:[%s148 + $0x60] sm:$0xff]
                %175 = vst [vmem:[%s149 + $0x60] sm:$0xff] %v174
                %v176 = vld [vmem:[%s148 + $0x68] sm:$0xff]
                %177 = vst [vmem:[%s149 + $0x68] sm:$0xff] %v176
                %v178 = vld [vmem:[%s148 + $0x70] sm:$0xff]
                %179 = vst [vmem:[%s149 + $0x70] sm:$0xff] %v178
                %v180 = vld [vmem:[%s148 + $0x78] sm:$0xff]
                %181 = vst [vmem:[%s149 + $0x78] sm:$0xff] %v180
                %v182 = vld [vmem:[%s148 + $0x400] sm:$0xff]
                %183 = vst [vmem:[%s149 + $0x80] sm:$0xff] %v182
                %v184 = vld [vmem:[%s148 + $0x408] sm:$0xff]
                %185 = vst [vmem:[%s149 + $0x88] sm:$0xff] %v184
                %v186 = vld [vmem:[%s148 + $0x410] sm:$0xff]
                %187 = vst [vmem:[%s149 + $0x90] sm:$0xff] %v186
                %v188 = vld [vmem:[%s148 + $0x418] sm:$0xff]
                %189 = vst [vmem:[%s149 + $0x98] sm:$0xff] %v188
                %v190 = vld [vmem:[%s148 + $0x420] sm:$0xff]
                %191 = vst [vmem:[%s149 + $0xa0] sm:$0xff] %v190
                %v192 = vld [vmem:[%s148 + $0x428] sm:$0xff]
                %193 = vst [vmem:[%s149 + $0xa8] sm:$0xff] %v192
                %v194 = vld [vmem:[%s148 + $0x430] sm:$0xff]
                %195 = vst [vmem:[%s149 + $0xb0] sm:$0xff] %v194
                %v196 = vld [vmem:[%s148 + $0x438] sm:$0xff]
                %197 = vst [vmem:[%s149 + $0xb8] sm:$0xff] %v196
                %v198 = vld [vmem:[%s148 + $0x440] sm:$0xff]
                %199 = vst [vmem:[%s149 + $0xc0] sm:$0xff] %v198
                %v200 = vld [vmem:[%s148 + $0x448] sm:$0xff]
                %201 = vst [vmem:[%s149 + $0xc8] sm:$0xff] %v200
                %v202 = vld [vmem:[%s148 + $0x450] sm:$0xff]
                %203 = vst [vmem:[%s149 + $0xd0] sm:$0xff] %v202
                %v204 = vld [vmem:[%s148 + $0x458] sm:$0xff]
                %205 = vst [vmem:[%s149 + $0xd8] sm:$0xff] %v204
                %v206 = vld [vmem:[%s148 + $0x460] sm:$0xff]
                %207 = vst [vmem:[%s149 + $0xe0] sm:$0xff] %v206
                %v208 = vld [vmem:[%s148 + $0x468] sm:$0xff]
                %209 = vst [vmem:[%s149 + $0xe8] sm:$0xff] %v208
                %v210 = vld [vmem:[%s148 + $0x470] sm:$0xff]
                %211 = vst [vmem:[%s149 + $0xf0] sm:$0xff] %v210
                %v212 = vld [vmem:[%s148 + $0x478] sm:$0xff]
                %213 = vst [vmem:[%s149 + $0xf8] sm:$0xff] %v212
                %v214 = vld [vmem:[%s148 + $0x800] sm:$0xff]
                %215 = vst [vmem:[%s149 + $0x100] sm:$0xff] %v214
                %v216 = vld [vmem:[%s148 + $0x808] sm:$0xff]
                %217 = vst [vmem:[%s149 + $0x108] sm:$0xff] %v216
                %v218 = vld [vmem:[%s148 + $0x810] sm:$0xff]
                %219 = vst [vmem:[%s149 + $0x110] sm:$0xff] %v218
                %v220 = vld [vmem:[%s148 + $0x818] sm:$0xff]
                %221 = vst [vmem:[%s149 + $0x118] sm:$0xff] %v220
                %v222 = vld [vmem:[%s148 + $0x820] sm:$0xff]
                %223 = vst [vmem:[%s149 + $0x120] sm:$0xff] %v222
                %v224 = vld [vmem:[%s148 + $0x828] sm:$0xff]
                %225 = vst [vmem:[%s149 + $0x128] sm:$0xff] %v224
                %v226 = vld [vmem:[%s148 + $0x830] sm:$0xff]
                %227 = vst [vmem:[%s149 + $0x130] sm:$0xff] %v226
                %v228 = vld [vmem:[%s148 + $0x838] sm:$0xff]
                %229 = vst [vmem:[%s149 + $0x138] sm:$0xff] %v228
                %v230 = vld [vmem:[%s148 + $0x840] sm:$0xff]
                %231 = vst [vmem:[%s149 + $0x140] sm:$0xff] %v230
                %v232 = vld [vmem:[%s148 + $0x848] sm:$0xff]
                %233 = vst [vmem:[%s149 + $0x148] sm:$0xff] %v232
                %v234 = vld [vmem:[%s148 + $0x850] sm:$0xff]
                %235 = vst [vmem:[%s149 + $0x150] sm:$0xff] %v234
                %v236 = vld [vmem:[%s148 + $0x858] sm:$0xff]
                %237 = vst [vmem:[%s149 + $0x158] sm:$0xff] %v236
                %v238 = vld [vmem:[%s148 + $0x860] sm:$0xff]
                %239 = vst [vmem:[%s149 + $0x160] sm:$0xff] %v238
                %v240 = vld [vmem:[%s148 + $0x868] sm:$0xff]
                %241 = vst [vmem:[%s149 + $0x168] sm:$0xff] %v240
                %v242 = vld [vmem:[%s148 + $0x870] sm:$0xff]
                %243 = vst [vmem:[%s149 + $0x170] sm:$0xff] %v242
                %v244 = vld [vmem:[%s148 + $0x878] sm:$0xff]
                %245 = vst [vmem:[%s149 + $0x178] sm:$0xff] %v244
                %v246 = vld [vmem:[%s148 + $0xc00] sm:$0xff]
                %247 = vst [vmem:[%s149 + $0x180] sm:$0xff] %v246
                %v248 = vld [vmem:[%s148 + $0xc08] sm:$0xff]
                %249 = vst [vmem:[%s149 + $0x188] sm:$0xff] %v248
                %v250 = vld [vmem:[%s148 + $0xc10] sm:$0xff]
                %251 = vst [vmem:[%s149 + $0x190] sm:$0xff] %v250
                %v252 = vld [vmem:[%s148 + $0xc18] sm:$0xff]
                %253 = vst [vmem:[%s149 + $0x198] sm:$0xff] %v252
                %v254 = vld [vmem:[%s148 + $0xc20] sm:$0xff]
                %255 = vst [vmem:[%s149 + $0x1a0] sm:$0xff] %v254
                %v256 = vld [vmem:[%s148 + $0xc28] sm:$0xff]
                %257 = vst [vmem:[%s149 + $0x1a8] sm:$0xff] %v256
                %v258 = vld [vmem:[%s148 + $0xc30] sm:$0xff]
                %259 = vst [vmem:[%s149 + $0x1b0] sm:$0xff] %v258
                %v260 = vld [vmem:[%s148 + $0xc38] sm:$0xff]
                %261 = vst [vmem:[%s149 + $0x1b8] sm:$0xff] %v260
                %v262 = vld [vmem:[%s148 + $0xc40] sm:$0xff]
                %263 = vst [vmem:[%s149 + $0x1c0] sm:$0xff] %v262
                %v264 = vld [vmem:[%s148 + $0xc48] sm:$0xff]
                %265 = vst [vmem:[%s149 + $0x1c8] sm:$0xff] %v264
                %v266 = vld [vmem:[%s148 + $0xc50] sm:$0xff]
                %267 = vst [vmem:[%s149 + $0x1d0] sm:$0xff] %v266
                %v268 = vld [vmem:[%s148 + $0xc58] sm:$0xff]
                %269 = vst [vmem:[%s149 + $0x1d8] sm:$0xff] %v268
                %v270 = vld [vmem:[%s148 + $0xc60] sm:$0xff]
                %271 = vst [vmem:[%s149 + $0x1e0] sm:$0xff] %v270
                %v272 = vld [vmem:[%s148 + $0xc68] sm:$0xff]
                %273 = vst [vmem:[%s149 + $0x1e8] sm:$0xff] %v272
                %v274 = vld [vmem:[%s148 + $0xc70] sm:$0xff]
                %275 = vst [vmem:[%s149 + $0x1f0] sm:$0xff] %v274
                %v276 = vld [vmem:[%s148 + $0xc78] sm:$0xff]
                %277 = vst [vmem:[%s149 + $0x1f8] sm:$0xff] %v276
              $region41: #{picnet_forward.3} parent=35 // loop_footer
                %s147 = sadd.s32 1, %s143
              $region42: #{picnet_forward.3} parent=35 // loop_footer_branch
                %142 = sbr.rel target = $region38
              $region43: #{picnet_forward.3} parent=35 // loop_exit
                _
            $region36: #{picnet_forward.3} parent=31 // pred_fallthru
              _
            // Predicated region
            $region44: #{picnet_forward.3} parent=31 // pred_check
              _
            $region45: #{picnet_forward.3} parent=31 // pred_check_branch
              %279 = sbr.rel target = $region47
            $region46: #{picnet_forward.3} parent=31 // pred_region
              _
            $region47: #{picnet_forward.3} parent=31 // pred_fallthru
              _
          $region32: #{picnet_forward.3} parent=27 // pred_fallthru
            _
          %280 = vnop
        $region28: #{picnet_forward.3} parent=23 // pred_fallthru
          _
      $region24: #{picnet_forward.3} parent=5 // pred_fallthru
        _
      %p281 = scmp.le.s32.totalorder 1, %s9
      %p282 = scmp.lt.s32.totalorder %s9, 9
      %p283 = pnand %p281, %p282
      %p284 = pneg %p283
      // Predicated region
      $region48: #{picnet_forward.3} parent=5 // pred_check
        _
      $region49: #{picnet_forward.3} parent=5 // pred_check_branch
        %286 = sbr.rel (%p283) target = $region51
      $region50: #{picnet_forward.3} parent=5 // pred_region
        %s287 = ssub.s32 %s9, 1
        %s288 = sand.u32 %s22, 1
        %s289 = sand.u32 %s22, 1
        %s290 = smul.addr %s289, 512
        %s291 = scalar_lea.vmem [#allocation2], %s290
        // Predicated region
        $region52: #{picnet_forward.3} parent=50 // pred_check
          %p292 = pneg %p35
        $region53: #{picnet_forward.3} parent=50 // pred_check_branch
          %294 = sbr.rel (%p292) target = $region55
        $region54: #{picnet_forward.3} parent=50 // pred_region
          _
        $region55: #{picnet_forward.3} parent=50 // pred_fallthru
          _
        %s295 = sand.u32 %s22, 1
        %s296 = sand.u32 %s22, 1
        %s297 = smul.addr %s296, 512
        %s298 = scalar_lea.vmem [#allocation2], %s297
        %p299 = pneg %p35
        %p300 = pneg %p32
        %p301 = pneg %p56
        %p302 = pneg %p53
        %p303 = pneg %p77
        %p304 = pneg %p74
        %p305 = pneg %p103
        %p306 = pneg %p100
        %s307 = sand.u32 %s90, 1
        %s308 = sand.u32 %s90, 1
        %s309 = smul.addr %s308, 64
        %s310 = scalar_lea.vmem [#allocation3], %s309
        %s311 = smul.u32 16, %s14
        %s312 = smul.u32 4, %s14
        %v313 = vld [vmem:[%s1] sm:$0xff]
        %v314 = vld [vmem:[%s1 + $0x8] sm:$0x3]
        %v315 = vld [vmem:[%s291] sm:$0xff]
        %v316 = vld [vmem:[%s291 + $0x8] sm:$0xff]
        %v317 = vld [vmem:[%s291 + $0x10] sm:$0xff]
        %v318 = vld [vmem:[%s291 + $0x18] sm:$0xff]
        %v319 = vld [vmem:[%s291 + $0x20] sm:$0xff]
        %v320 = vld [vmem:[%s291 + $0x28] sm:$0xff]
        %v321 = vld [vmem:[%s291 + $0x30] sm:$0xff]
        %v322 = vld [vmem:[%s291 + $0x38] sm:$0xff]
        %v323 = vld [vmem:[%s291 + $0x40] sm:$0xff]
        %v324 = vld [vmem:[%s291 + $0x48] sm:$0xff]
        %v325 = vld [vmem:[%s291 + $0x50] sm:$0xff]
        %v326 = vld [vmem:[%s291 + $0x58] sm:$0xff]
        %v327 = vld [vmem:[%s291 + $0x60] sm:$0xff]
        %v328 = vld [vmem:[%s291 + $0x68] sm:$0xff]
        %v329 = vld [vmem:[%s291 + $0x70] sm:$0xff]
        %v330 = vld [vmem:[%s291 + $0x78] sm:$0xff]
        %v331 = vld [vmem:[%s291 + $0x80] sm:$0xff]
        %v332 = vld [vmem:[%s291 + $0x88] sm:$0xff]
        %v333 = vld [vmem:[%s291 + $0x90] sm:$0xff]
        %v334 = vld [vmem:[%s291 + $0x98] sm:$0xff]
        %v335 = vld [vmem:[%s291 + $0xa0] sm:$0xff]
        %v336 = vld [vmem:[%s291 + $0xa8] sm:$0xff]
        %v337 = vld [vmem:[%s291 + $0xb0] sm:$0xff]
        %v338 = vld [vmem:[%s291 + $0xb8] sm:$0xff]
        %v339 = vld [vmem:[%s291 + $0xc0] sm:$0xff]
        %v340 = vld [vmem:[%s291 + $0xc8] sm:$0xff]
        %v341 = vld [vmem:[%s291 + $0xd0] sm:$0xff]
        %v342 = vld [vmem:[%s291 + $0xd8] sm:$0xff]
        %v343 = vld [vmem:[%s291 + $0xe0] sm:$0xff]
        %v344 = vld [vmem:[%s291 + $0xe8] sm:$0xff]
        %v345 = vld [vmem:[%s291 + $0xf0] sm:$0xff]
        %v346 = vld [vmem:[%s291 + $0xf8] sm:$0xff]
        %v347 = vld [vmem:[%s291 + $0x100] sm:$0xff]
        %v348 = vld [vmem:[%s291 + $0x108] sm:$0xff]
        %v349 = vld [vmem:[%s291 + $0x110] sm:$0xff]
        %v350 = vld [vmem:[%s291 + $0x118] sm:$0xff]
        %v351 = vld [vmem:[%s291 + $0x120] sm:$0xff]
        %v352 = vld [vmem:[%s291 + $0x128] sm:$0xff]
        %v353 = vld [vmem:[%s291 + $0x130] sm:$0xff]
        %v354 = vld [vmem:[%s291 + $0x138] sm:$0xff]
        %v355 = vld [vmem:[%s291 + $0x140] sm:$0xff]
        %v356 = vld [vmem:[%s291 + $0x148] sm:$0xff]
        %v357 = vld [vmem:[%s291 + $0x150] sm:$0xff]
        %v358 = vld [vmem:[%s291 + $0x158] sm:$0xff]
        %v359 = vld [vmem:[%s291 + $0x160] sm:$0xff]
        %v360 = vld [vmem:[%s291 + $0x168] sm:$0xff]
        %v361 = vld [vmem:[%s291 + $0x170] sm:$0xff]
        %v362 = vld [vmem:[%s291 + $0x178] sm:$0xff]
        %v363 = vld [vmem:[%s291 + $0x180] sm:$0x1]
        %v364 = vld [vmem:[%s291 + $0x188] sm:$0x1]
        %v365 = vld [vmem:[%s291 + $0x190] sm:$0x1]
        %v366 = vld [vmem:[%s291 + $0x198] sm:$0x1]
        %v367 = vld [vmem:[%s291 + $0x1a0] sm:$0x1]
        %v368 = vld [vmem:[%s291 + $0x1a8] sm:$0x1]
        %v369 = vld [vmem:[%s291 + $0x1b0] sm:$0x1]
        %v370 = vld [vmem:[%s291 + $0x1b8] sm:$0x1]
        %v371 = vld [vmem:[%s291 + $0x1c0] sm:$0x1]
        %v372 = vld [vmem:[%s291 + $0x1c8] sm:$0x1]
        %v373 = vld [vmem:[%s291 + $0x1d0] sm:$0x1]
        %v374 = vld [vmem:[%s291 + $0x1d8] sm:$0x1]
        %v375 = vld [vmem:[%s291 + $0x1e0] sm:$0x1]
        %v376 = vld [vmem:[%s291 + $0x1e8] sm:$0x1]
        %v377 = vld [vmem:[%s291 + $0x1f0] sm:$0x1]
        %v378 = vld [vmem:[%s291 + $0x1f8] sm:$0x1]
        %vm379 = vcmask 203776
        %v381 = vsel %vm379, %v313, 0
        %v384 = vsel %vm379, %v314, 0
        %vm386 = vcmask 1040384
        %v388 = vsel %vm386, %v363, 0
        %v391 = vsel %vm386, %v364, 0
        %v394 = vsel %vm386, %v365, 0
        %v397 = vsel %vm386, %v366, 0
        %v400 = vsel %vm386, %v367, 0
        %v403 = vsel %vm386, %v368, 0
        %v406 = vsel %vm386, %v369, 0
        %v409 = vsel %vm386, %v370, 0
        %v412 = vsel %vm386, %v371, 0
        %v415 = vsel %vm386, %v372, 0
        %v418 = vsel %vm386, %v373, 0
        %v421 = vsel %vm386, %v374, 0
        %v424 = vsel %vm386, %v375, 0
        %v427 = vsel %vm386, %v376, 0
        %v430 = vsel %vm386, %v377, 0
        %v433 = vsel %vm386, %v378, 0
        %435 = vmatpush.msra.mxu0 0.0
        %436 = vmatpush.msra.mxu0 0.0
        %437 = vmatpush.msra.mxu0 0.0
        %438 = vmatpush.msra.mxu0 0.0
        %439 = vmatpush.msra.mxu0 0.0
        %440 = vmatpush.msra.mxu0 0.0
        %441 = vmatpush.msra.mxu0 0.0
        %442 = vmatpush.msra.mxu0 0.0
        %443 = vmatpush.msra.mxu0 0.0
        %444 = vmatpush.msra.mxu0 0.0
        %445 = vmatpush.msra.mxu0 0.0
        %446 = vmatpush.msra.mxu0 0.0
        %447 = vmatpush.msra.mxu0 %v388
        %448 = vmatpush.msra.mxu0 %v347
        %449 = vmatpush.msra.mxu0 %v331
        %450 = vmatpush.msra.mxu0 %v315
        %451 = vmatmul.f32.gmra.mxu0 %v381
        %v452 = vpop.f32.mrf.mxu0
        %v453 = vadd.f32 0.0, %v452
        %454 = vmatmul.f32.gmra.mxu0 %v384
        %v455 = vpop.f32.mrf.mxu0
        %v456 = vadd.f32 0.0, %v455
        %457 = vdwg.mxu0
        %458 = vmatpush.msra.mxu0 0.0
        %459 = vmatpush.msra.mxu0 0.0
        %460 = vmatpush.msra.mxu0 0.0
        %461 = vmatpush.msra.mxu0 0.0
        %462 = vmatpush.msra.mxu0 0.0
        %463 = vmatpush.msra.mxu0 0.0
        %464 = vmatpush.msra.mxu0 0.0
        %465 = vmatpush.msra.mxu0 0.0
        %466 = vmatpush.msra.mxu0 0.0
        %467 = vmatpush.msra.mxu0 0.0
        %468 = vmatpush.msra.mxu0 0.0
        %469 = vmatpush.msra.mxu0 0.0
        %470 = vmatpush.msra.mxu0 %v391
        %471 = vmatpush.msra.mxu0 %v348
        %472 = vmatpush.msra.mxu0 %v332
        %473 = vmatpush.msra.mxu0 %v316
        %474 = vmatmul.f32.gmra.mxu0 %v381
        %v475 = vpop.f32.mrf.mxu0
        %v476 = vadd.f32 0.0, %v475
        %477 = vmatmul.f32.gmra.mxu0 %v384
        %v478 = vpop.f32.mrf.mxu0
        %v479 = vadd.f32 0.0, %v478
        %480 = vdwg.mxu0
        %481 = vmatpush.msra.mxu0 0.0
        %482 = vmatpush.msra.mxu0 0.0
        %483 = vmatpush.msra.mxu0 0.0
        %484 = vmatpush.msra.mxu0 0.0
        %485 = vmatpush.msra.mxu0 0.0
        %486 = vmatpush.msra.mxu0 0.0
        %487 = vmatpush.msra.mxu0 0.0
        %488 = vmatpush.msra.mxu0 0.0
        %489 = vmatpush.msra.mxu0 0.0
        %490 = vmatpush.msra.mxu0 0.0
        %491 = vmatpush.msra.mxu0 0.0
        %492 = vmatpush.msra.mxu0 0.0
        %493 = vmatpush.msra.mxu0 %v394
        %494 = vmatpush.msra.mxu0 %v349
        %495 = vmatpush.msra.mxu0 %v333
        %496 = vmatpush.msra.mxu0 %v317
        %497 = vmatmul.f32.gmra.mxu0 %v381
        %v498 = vpop.f32.mrf.mxu0
        %v499 = vadd.f32 0.0, %v498
        %500 = vmatmul.f32.gmra.mxu0 %v384
        %v501 = vpop.f32.mrf.mxu0
        %v502 = vadd.f32 0.0, %v501
        %503 = vdwg.mxu0
        %504 = vmatpush.msra.mxu0 0.0
        %505 = vmatpush.msra.mxu0 0.0
        %506 = vmatpush.msra.mxu0 0.0
        %507 = vmatpush.msra.mxu0 0.0
        %508 = vmatpush.msra.mxu0 0.0
        %509 = vmatpush.msra.mxu0 0.0
        %510 = vmatpush.msra.mxu0 0.0
        %511 = vmatpush.msra.mxu0 0.0
        %512 = vmatpush.msra.mxu0 0.0
        %513 = vmatpush.msra.mxu0 0.0
        %514 = vmatpush.msra.mxu0 0.0
        %515 = vmatpush.msra.mxu0 0.0
        %516 = vmatpush.msra.mxu0 %v397
        %517 = vmatpush.msra.mxu0 %v350
        %518 = vmatpush.msra.mxu0 %v334
        %519 = vmatpush.msra.mxu0 %v318
        %520 = vmatmul.f32.gmra.mxu0 %v381
        %v521 = vpop.f32.mrf.mxu0
        %v522 = vadd.f32 0.0, %v521
        %523 = vmatmul.f32.gmra.mxu0 %v384
        %v524 = vpop.f32.mrf.mxu0
        %v525 = vadd.f32 0.0, %v524
        %526 = vdwg.mxu0
        %527 = vmatpush.msra.mxu0 0.0
        %528 = vmatpush.msra.mxu0 0.0
        %529 = vmatpush.msra.mxu0 0.0
        %530 = vmatpush.msra.mxu0 0.0
        %531 = vmatpush.msra.mxu0 0.0
        %532 = vmatpush.msra.mxu0 0.0
        %533 = vmatpush.msra.mxu0 0.0
        %534 = vmatpush.msra.mxu0 0.0
        %535 = vmatpush.msra.mxu0 0.0
        %536 = vmatpush.msra.mxu0 0.0
        %537 = vmatpush.msra.mxu0 0.0
        %538 = vmatpush.msra.mxu0 0.0
        %539 = vmatpush.msra.mxu0 %v400
        %540 = vmatpush.msra.mxu0 %v351
        %541 = vmatpush.msra.mxu0 %v335
        %542 = vmatpush.msra.mxu0 %v319
        %543 = vmatmul.f32.gmra.mxu0 %v381
        %v544 = vpop.f32.mrf.mxu0
        %v545 = vadd.f32 0.0, %v544
        %546 = vmatmul.f32.gmra.mxu0 %v384
        %v547 = vpop.f32.mrf.mxu0
        %v548 = vadd.f32 0.0, %v547
        %549 = vdwg.mxu0
        %550 = vmatpush.msra.mxu0 0.0
        %551 = vmatpush.msra.mxu0 0.0
        %552 = vmatpush.msra.mxu0 0.0
        %553 = vmatpush.msra.mxu0 0.0
        %554 = vmatpush.msra.mxu0 0.0
        %555 = vmatpush.msra.mxu0 0.0
        %556 = vmatpush.msra.mxu0 0.0
        %557 = vmatpush.msra.mxu0 0.0
        %558 = vmatpush.msra.mxu0 0.0
        %559 = vmatpush.msra.mxu0 0.0
        %560 = vmatpush.msra.mxu0 0.0
        %561 = vmatpush.msra.mxu0 0.0
        %562 = vmatpush.msra.mxu0 %v403
        %563 = vmatpush.msra.mxu0 %v352
        %564 = vmatpush.msra.mxu0 %v336
        %565 = vmatpush.msra.mxu0 %v320
        %566 = vmatmul.f32.gmra.mxu0 %v381
        %v567 = vpop.f32.mrf.mxu0
        %v568 = vadd.f32 0.0, %v567
        %569 = vmatmul.f32.gmra.mxu0 %v384
        %v570 = vpop.f32.mrf.mxu0
        %v571 = vadd.f32 0.0, %v570
        %572 = vdwg.mxu0
        %573 = vmatpush.msra.mxu0 0.0
        %574 = vmatpush.msra.mxu0 0.0
        %575 = vmatpush.msra.mxu0 0.0
        %576 = vmatpush.msra.mxu0 0.0
        %577 = vmatpush.msra.mxu0 0.0
        %578 = vmatpush.msra.mxu0 0.0
        %579 = vmatpush.msra.mxu0 0.0
        %580 = vmatpush.msra.mxu0 0.0
        %581 = vmatpush.msra.mxu0 0.0
        %582 = vmatpush.msra.mxu0 0.0
        %583 = vmatpush.msra.mxu0 0.0
        %584 = vmatpush.msra.mxu0 0.0
        %585 = vmatpush.msra.mxu0 %v406
        %586 = vmatpush.msra.mxu0 %v353
        %587 = vmatpush.msra.mxu0 %v337
        %588 = vmatpush.msra.mxu0 %v321
        %589 = vmatmul.f32.gmra.mxu0 %v381
        %v590 = vpop.f32.mrf.mxu0
        %v591 = vadd.f32 0.0, %v590
        %592 = vmatmul.f32.gmra.mxu0 %v384
        %v593 = vpop.f32.mrf.mxu0
        %v594 = vadd.f32 0.0, %v593
        %595 = vdwg.mxu0
        %596 = vmatpush.msra.mxu0 0.0
        %597 = vmatpush.msra.mxu0 0.0
        %598 = vmatpush.msra.mxu0 0.0
        %599 = vmatpush.msra.mxu0 0.0
        %600 = vmatpush.msra.mxu0 0.0
        %601 = vmatpush.msra.mxu0 0.0
        %602 = vmatpush.msra.mxu0 0.0
        %603 = vmatpush.msra.mxu0 0.0
        %604 = vmatpush.msra.mxu0 0.0
        %605 = vmatpush.msra.mxu0 0.0
        %606 = vmatpush.msra.mxu0 0.0
        %607 = vmatpush.msra.mxu0 0.0
        %608 = vmatpush.msra.mxu0 %v409
        %609 = vmatpush.msra.mxu0 %v354
        %610 = vmatpush.msra.mxu0 %v338
        %611 = vmatpush.msra.mxu0 %v322
        %612 = vmatmul.f32.gmra.mxu0 %v381
        %v613 = vpop.f32.mrf.mxu0
        %v614 = vadd.f32 0.0, %v613
        %615 = vmatmul.f32.gmra.mxu0 %v384
        %v616 = vpop.f32.mrf.mxu0
        %v617 = vadd.f32 0.0, %v616
        %618 = vdwg.mxu0
        %619 = vmatpush.msra.mxu0 0.0
        %620 = vmatpush.msra.mxu0 0.0
        %621 = vmatpush.msra.mxu0 0.0
        %622 = vmatpush.msra.mxu0 0.0
        %623 = vmatpush.msra.mxu0 0.0
        %624 = vmatpush.msra.mxu0 0.0
        %625 = vmatpush.msra.mxu0 0.0
        %626 = vmatpush.msra.mxu0 0.0
        %627 = vmatpush.msra.mxu0 0.0
        %628 = vmatpush.msra.mxu0 0.0
        %629 = vmatpush.msra.mxu0 0.0
        %630 = vmatpush.msra.mxu0 0.0
        %631 = vmatpush.msra.mxu0 %v412
        %632 = vmatpush.msra.mxu0 %v355
        %633 = vmatpush.msra.mxu0 %v339
        %634 = vmatpush.msra.mxu0 %v323
        %635 = vmatmul.f32.gmra.mxu0 %v381
        %v636 = vpop.f32.mrf.mxu0
        %v637 = vadd.f32 0.0, %v636
        %638 = vmatmul.f32.gmra.mxu0 %v384
        %v639 = vpop.f32.mrf.mxu0
        %v640 = vadd.f32 0.0, %v639
        %641 = vdwg.mxu0
        %642 = vmatpush.msra.mxu0 0.0
        %643 = vmatpush.msra.mxu0 0.0
        %644 = vmatpush.msra.mxu0 0.0
        %645 = vmatpush.msra.mxu0 0.0
        %646 = vmatpush.msra.mxu0 0.0
        %647 = vmatpush.msra.mxu0 0.0
        %648 = vmatpush.msra.mxu0 0.0
        %649 = vmatpush.msra.mxu0 0.0
        %650 = vmatpush.msra.mxu0 0.0
        %651 = vmatpush.msra.mxu0 0.0
        %652 = vmatpush.msra.mxu0 0.0
        %653 = vmatpush.msra.mxu0 0.0
        %654 = vmatpush.msra.mxu0 %v415
        %655 = vmatpush.msra.mxu0 %v356
        %656 = vmatpush.msra.mxu0 %v340
        %657 = vmatpush.msra.mxu0 %v324
        %658 = vmatmul.f32.gmra.mxu0 %v381
        %v659 = vpop.f32.mrf.mxu0
        %v660 = vadd.f32 0.0, %v659
        %661 = vmatmul.f32.gmra.mxu0 %v384
        %v662 = vpop.f32.mrf.mxu0
        %v663 = vadd.f32 0.0, %v662
        %664 = vdwg.mxu0
        %665 = vmatpush.msra.mxu0 0.0
        %666 = vmatpush.msra.mxu0 0.0
        %667 = vmatpush.msra.mxu0 0.0
        %668 = vmatpush.msra.mxu0 0.0
        %669 = vmatpush.msra.mxu0 0.0
        %670 = vmatpush.msra.mxu0 0.0
        %671 = vmatpush.msra.mxu0 0.0
        %672 = vmatpush.msra.mxu0 0.0
        %673 = vmatpush.msra.mxu0 0.0
        %674 = vmatpush.msra.mxu0 0.0
        %675 = vmatpush.msra.mxu0 0.0
        %676 = vmatpush.msra.mxu0 0.0
        %677 = vmatpush.msra.mxu0 %v418
        %678 = vmatpush.msra.mxu0 %v357
        %679 = vmatpush.msra.mxu0 %v341
        %680 = vmatpush.msra.mxu0 %v325
        %681 = vmatmul.f32.gmra.mxu0 %v381
        %v682 = vpop.f32.mrf.mxu0
        %v683 = vadd.f32 0.0, %v682
        %684 = vmatmul.f32.gmra.mxu0 %v384
        %v685 = vpop.f32.mrf.mxu0
        %v686 = vadd.f32 0.0, %v685
        %687 = vdwg.mxu0
        %688 = vmatpush.msra.mxu0 0.0
        %689 = vmatpush.msra.mxu0 0.0
        %690 = vmatpush.msra.mxu0 0.0
        %691 = vmatpush.msra.mxu0 0.0
        %692 = vmatpush.msra.mxu0 0.0
        %693 = vmatpush.msra.mxu0 0.0
        %694 = vmatpush.msra.mxu0 0.0
        %695 = vmatpush.msra.mxu0 0.0
        %696 = vmatpush.msra.mxu0 0.0
        %697 = vmatpush.msra.mxu0 0.0
        %698 = vmatpush.msra.mxu0 0.0
        %699 = vmatpush.msra.mxu0 0.0
        %700 = vmatpush.msra.mxu0 %v421
        %701 = vmatpush.msra.mxu0 %v358
        %702 = vmatpush.msra.mxu0 %v342
        %703 = vmatpush.msra.mxu0 %v326
        %704 = vmatmul.f32.gmra.mxu0 %v381
        %v705 = vpop.f32.mrf.mxu0
        %v706 = vadd.f32 0.0, %v705
        %707 = vmatmul.f32.gmra.mxu0 %v384
        %v708 = vpop.f32.mrf.mxu0
        %v709 = vadd.f32 0.0, %v708
        %710 = vdwg.mxu0
        %711 = vmatpush.msra.mxu0 0.0
        %712 = vmatpush.msra.mxu0 0.0
        %713 = vmatpush.msra.mxu0 0.0
        %714 = vmatpush.msra.mxu0 0.0
        %715 = vmatpush.msra.mxu0 0.0
        %716 = vmatpush.msra.mxu0 0.0
        %717 = vmatpush.msra.mxu0 0.0
        %718 = vmatpush.msra.mxu0 0.0
        %719 = vmatpush.msra.mxu0 0.0
        %720 = vmatpush.msra.mxu0 0.0
        %721 = vmatpush.msra.mxu0 0.0
        %722 = vmatpush.msra.mxu0 0.0
        %723 = vmatpush.msra.mxu0 %v424
        %724 = vmatpush.msra.mxu0 %v359
        %725 = vmatpush.msra.mxu0 %v343
        %726 = vmatpush.msra.mxu0 %v327
        %727 = vmatmul.f32.gmra.mxu0 %v381
        %v728 = vpop.f32.mrf.mxu0
        %v729 = vadd.f32 0.0, %v728
        %730 = vmatmul.f32.gmra.mxu0 %v384
        %v731 = vpop.f32.mrf.mxu0
        %v732 = vadd.f32 0.0, %v731
        %733 = vdwg.mxu0
        %734 = vmatpush.msra.mxu0 0.0
        %735 = vmatpush.msra.mxu0 0.0
        %736 = vmatpush.msra.mxu0 0.0
        %737 = vmatpush.msra.mxu0 0.0
        %738 = vmatpush.msra.mxu0 0.0
        %739 = vmatpush.msra.mxu0 0.0
        %740 = vmatpush.msra.mxu0 0.0
        %741 = vmatpush.msra.mxu0 0.0
        %742 = vmatpush.msra.mxu0 0.0
        %743 = vmatpush.msra.mxu0 0.0
        %744 = vmatpush.msra.mxu0 0.0
        %745 = vmatpush.msra.mxu0 0.0
        %746 = vmatpush.msra.mxu0 %v427
        %747 = vmatpush.msra.mxu0 %v360
        %748 = vmatpush.msra.mxu0 %v344
        %749 = vmatpush.msra.mxu0 %v328
        %750 = vmatmul.f32.gmra.mxu0 %v381
        %v751 = vpop.f32.mrf.mxu0
        %v752 = vadd.f32 0.0, %v751
        %753 = vmatmul.f32.gmra.mxu0 %v384
        %v754 = vpop.f32.mrf.mxu0
        %v755 = vadd.f32 0.0, %v754
        %756 = vdwg.mxu0
        %757 = vmatpush.msra.mxu0 0.0
        %758 = vmatpush.msra.mxu0 0.0
        %759 = vmatpush.msra.mxu0 0.0
        %760 = vmatpush.msra.mxu0 0.0
        %761 = vmatpush.msra.mxu0 0.0
        %762 = vmatpush.msra.mxu0 0.0
        %763 = vmatpush.msra.mxu0 0.0
        %764 = vmatpush.msra.mxu0 0.0
        %765 = vmatpush.msra.mxu0 0.0
        %766 = vmatpush.msra.mxu0 0.0
        %767 = vmatpush.msra.mxu0 0.0
        %768 = vmatpush.msra.mxu0 0.0
        %769 = vmatpush.msra.mxu0 %v430
        %770 = vmatpush.msra.mxu0 %v361
        %771 = vmatpush.msra.mxu0 %v345
        %772 = vmatpush.msra.mxu0 %v329
        %773 = vmatmul.f32.gmra.mxu0 %v381
        %v774 = vpop.f32.mrf.mxu0
        %v775 = vadd.f32 0.0, %v774
        %776 = vmatmul.f32.gmra.mxu0 %v384
        %v777 = vpop.f32.mrf.mxu0
        %v778 = vadd.f32 0.0, %v777
        %779 = vdwg.mxu0
        %780 = vmatpush.msra.mxu0 0.0
        %781 = vmatpush.msra.mxu0 0.0
        %782 = vmatpush.msra.mxu0 0.0
        %783 = vmatpush.msra.mxu0 0.0
        %784 = vmatpush.msra.mxu0 0.0
        %785 = vmatpush.msra.mxu0 0.0
        %786 = vmatpush.msra.mxu0 0.0
        %787 = vmatpush.msra.mxu0 0.0
        %788 = vmatpush.msra.mxu0 0.0
        %789 = vmatpush.msra.mxu0 0.0
        %790 = vmatpush.msra.mxu0 0.0
        %791 = vmatpush.msra.mxu0 0.0
        %792 = vmatpush.msra.mxu0 %v433
        %793 = vmatpush.msra.mxu0 %v362
        %794 = vmatpush.msra.mxu0 %v346
        %795 = vmatpush.msra.mxu0 %v330
        %796 = vmatmul.f32.gmra.mxu0 %v381
        %v797 = vpop.f32.mrf.mxu0
        %v798 = vadd.f32 0.0, %v797
        %799 = vmatmul.f32.gmra.mxu0 %v384
        %v800 = vpop.f32.mrf.mxu0
        %v801 = vadd.f32 0.0, %v800
        %802 = vdwg.mxu0
        %v803 = vmax.f32 %v453, %v545
        %v804 = vmax.f32 %v476, %v568
        %v805 = vmax.f32 %v499, %v591
        %v806 = vmax.f32 %v522, %v614
        %v807 = vmax.f32 %v456, %v548
        %v808 = vmax.f32 %v479, %v571
        %v809 = vmax.f32 %v502, %v594
        %v810 = vmax.f32 %v525, %v617
        %v811 = vmax.f32 %v803, %v637
        %v812 = vmax.f32 %v804, %v660
        %v813 = vmax.f32 %v805, %v683
        %v814 = vmax.f32 %v806, %v706
        %v815 = vmax.f32 %v807, %v640
        %v816 = vmax.f32 %v808, %v663
        %v817 = vmax.f32 %v809, %v686
        %v818 = vmax.f32 %v810, %v709
        %v819 = vmax.f32 %v811, %v729
        %v820 = vmax.f32 %v812, %v752
        %v821 = vmax.f32 %v813, %v775
        %v822 = vmax.f32 %v814, %v798
        %v823 = vmax.f32 %v815, %v732
        %v824 = vmax.f32 %v816, %v755
        %v825 = vmax.f32 %v817, %v778
        %v826 = vmax.f32 %v818, %v801
        %v827 = vld [vmem:[%s2] sm:$0xff]
        %v828 = vld [vmem:[%s2 + $0x8] sm:$0x3]
        %830 = vset.pattern.permute.xlu0 0
        %831 = vperm.xlu0 %830, %v827
        %v832 = vpop.permute.xlu0 %831
        %835 = vset.pattern.permute.xlu0 0
        %836 = vperm.xlu0 %835, %v828
        %v837 = vpop.permute.xlu0 %836
        %v839 = vadd.f32 %v819, %v832
        %v840 = vadd.f32 %v820, %v832
        %v841 = vadd.f32 %v821, %v832
        %v842 = vadd.f32 %v822, %v832
        %v843 = vadd.f32 %v823, %v837
        %v844 = vadd.f32 %v824, %v837
        %v845 = vadd.f32 %v825, %v837
        %v846 = vadd.f32 %v826, %v837
        %v847 = vmax.f32 %v839, 0.0
        %v848 = vmax.f32 %v840, 0.0
        %v849 = vmax.f32 %v841, 0.0
        %v850 = vmax.f32 %v842, 0.0
        %v851 = vmax.f32 %v843, 0.0
        %v852 = vmax.f32 %v844, 0.0
        %v853 = vmax.f32 %v845, 0.0
        %v854 = vmax.f32 %v846, 0.0
        %855 = vst [vmem:[%s310] sm:$0xff] %v847
        %856 = vst [vmem:[%s310 + $0x8] sm:$0xff] %v848
        %857 = vst [vmem:[%s310 + $0x10] sm:$0xff] %v849
        %858 = vst [vmem:[%s310 + $0x18] sm:$0xff] %v850
        %859 = vst [vmem:[%s310 + $0x20] sm:$0x3] %v851
        %860 = vst [vmem:[%s310 + $0x28] sm:$0x3] %v852
        %861 = vst [vmem:[%s310 + $0x30] sm:$0x3] %v853
        %862 = vst [vmem:[%s310 + $0x38] sm:$0x3] %v854
        %s863 = sand.u32 %s90, 1
        %s864 = sand.u32 %s90, 1
        %s865 = smul.addr %s864, 64
        %s866 = scalar_lea.vmem [#allocation3], %s865
        // Predicated region
        $region56: #{picnet_forward.3} parent=50 // pred_check
          %p867 = pneg %p100
        $region57: #{picnet_forward.3} parent=50 // pred_check_branch
          %869 = sbr.rel (%p867) target = $region59
        $region58: #{picnet_forward.3} parent=50 // pred_region
          %s870 = smul.u32 4, %s14
          %s871 = smul.addr %s870, 8
          %s872 = scalar_lea.vmem %s3, %s871
          // Predicated region
          $region60: #{picnet_forward.3} parent=58 // pred_check
            _
          $region61: #{picnet_forward.3} parent=58 // pred_check_branch
            %874 = sbr.rel (0) target = $region63
          $region62: #{picnet_forward.3} parent=58 // pred_region
            // Predicated region
            $region64: #{picnet_forward.3} parent=62 // pred_check
              _
            $region65: #{picnet_forward.3} parent=62 // pred_check_branch
              %876 = sbr.rel (0) target = $region67
            $region66: #{picnet_forward.3} parent=62 // pred_region
              loop: start=0, step=1, limit=1
              $region68: #{picnet_forward.3} parent=66 // loop_pre_header
                _
              $region69: #{picnet_forward.3} parent=66 // loop_header
                %s878 = sphi 0, %s882
                %p879 = scmp.ge.s32.totalorder %s878, 1
                %s883 = sphi %s866, %s866
                %s884 = sphi %s872, %s872
              $region70: #{picnet_forward.3} parent=66 // loop_header_branch
                %881 = sbr.rel (%p879) target = $region74
              $region71: #{picnet_forward.3} parent=66 // loop_body
                %v885 = vld [vmem:[%s883] sm:$0xff]
                %886 = vst [vmem:[%s884] sm:$0xff] %v885
                %v887 = vld [vmem:[%s883 + $0x8] sm:$0xff]
                %888 = vst [vmem:[%s884 + $0x8] sm:$0xff] %v887
                %v889 = vld [vmem:[%s883 + $0x10] sm:$0xff]
                %890 = vst [vmem:[%s884 + $0x10] sm:$0xff] %v889
                %v891 = vld [vmem:[%s883 + $0x18] sm:$0xff]
                %892 = vst [vmem:[%s884 + $0x18] sm:$0xff] %v891
                %v893 = vld [vmem:[%s883 + $0x20] sm:$0xff]
                %894 = vst [vmem:[%s884 + $0x100] sm:$0xff] %v893
                %v895 = vld [vmem:[%s883 + $0x28] sm:$0xff]
                %896 = vst [vmem:[%s884 + $0x108] sm:$0xff] %v895
                %v897 = vld [vmem:[%s883 + $0x30] sm:$0xff]
                %898 = vst [vmem:[%s884 + $0x110] sm:$0xff] %v897
                %v899 = vld [vmem:[%s883 + $0x38] sm:$0xff]
                %900 = vst [vmem:[%s884 + $0x118] sm:$0xff] %v899
              $region72: #{picnet_forward.3} parent=66 // loop_footer
                %s882 = sadd.s32 1, %s878
              $region73: #{picnet_forward.3} parent=66 // loop_footer_branch
                %877 = sbr.rel target = $region69
              $region74: #{picnet_forward.3} parent=66 // loop_exit
                _
            $region67: #{picnet_forward.3} parent=62 // pred_fallthru
              _
            // Predicated region
            $region75: #{picnet_forward.3} parent=62 // pred_check
              _
            $region76: #{picnet_forward.3} parent=62 // pred_check_branch
              %902 = sbr.rel target = $region78
            $region77: #{picnet_forward.3} parent=62 // pred_region
              _
            $region78: #{picnet_forward.3} parent=62 // pred_fallthru
              _
          $region63: #{picnet_forward.3} parent=58 // pred_fallthru
            _
          %903 = vnop
        $region59: #{picnet_forward.3} parent=50 // pred_fallthru
          _
      $region51: #{picnet_forward.3} parent=5 // pred_fallthru
        _
      %p904 = scmp.le.s32.totalorder 2, %s9
      // Predicated region
      $region79: #{picnet_forward.3} parent=5 // pred_check
        %p905 = pneg %p904
      $region80: #{picnet_forward.3} parent=5 // pred_check_branch
        %907 = sbr.rel (%p905) target = $region82
      $region81: #{picnet_forward.3} parent=5 // pred_region
        %s908 = ssub.s32 %s9, 2
        // Predicated region
        $region83: #{picnet_forward.3} parent=81 // pred_check
          %p909 = pneg %p106
        $region84: #{picnet_forward.3} parent=81 // pred_check_branch
          %911 = sbr.rel (%p909) target = $region86
        $region85: #{picnet_forward.3} parent=81 // pred_region
          %s912 = sand.u32 %s91, 1
          %s913 = sand.u32 %s91, 1
          %s914 = smul.addr %s913, 64
          %s915 = scalar_lea.vmem [#allocation3], %s914
        $region86: #{picnet_forward.3} parent=81 // pred_fallthru
          _
      $region82: #{picnet_forward.3} parent=5 // pred_fallthru
        _
    $region6: #{picnet_forward.3} parent=1 // loop_footer
      %s13 = sadd.s32 1, %s9
    $region7: #{picnet_forward.3} parent=1 // loop_footer_branch
      %8 = sbr.rel target = $region3
    $region8: #{picnet_forward.3} parent=1 // loop_exit
      _

// kernel: picnet_forward.4
$region0: #{picnet_forward.4}
  #allocation0 [shape = 'u32[]', space=smem, size = 0x4, offset = 0x4, fixed_abs, tag = 'smem constant byte address 0x4 - core index']
  #allocation1 [shape = 'u32[72,128]{1,0:T(1,128)}', space=vmem, size = 0x9000, scoped, tag = 'internal scratch']
  %s0 = inlined_call_operand.vmem [shape: f32[250,3072], index: 0, kind: input, shape index: {}]
  %s1 = inlined_call_operand.vmem [shape: f32[20,250], index: 1, kind: input, shape index: {}]
  %s2 = inlined_call_operand.vmem [shape: f32[20,1], index: 2, kind: input, shape index: {}]
  %s3 = inlined_call_operand.vmem [shape: f32[20,128], index: 3, kind: output, shape index: {}]
  %s4 = sld [smem:[#allocation0]]
  $region22: #{picnet_forward.4} parent=0
    _
  %s6 = ssub.s32 1, %s4
  %s7 = scalar_select 0, %s6, %s4
  // Predicated region
  $region2: #{picnet_forward.4} parent=0 // pred_check
    _
  $region3: #{picnet_forward.4} parent=0 // pred_check_branch
    %9 = sbr.rel (0) target = $region5
  $region4: #{picnet_forward.4} parent=0 // pred_region
    _
  $region5: #{picnet_forward.4} parent=0 // pred_fallthru
    _
  // Predicated region
  $region6: #{picnet_forward.4} parent=0 // pred_check
    _
  $region7: #{picnet_forward.4} parent=0 // pred_check_branch
    %11 = sbr.rel (0) target = $region9
  $region8: #{picnet_forward.4} parent=0 // pred_region
    _
  $region9: #{picnet_forward.4} parent=0 // pred_fallthru
    _
  // Predicated region
  $region10: #{picnet_forward.4} parent=0 // pred_check
    _
  $region11: #{picnet_forward.4} parent=0 // pred_check_branch
    %13 = sbr.rel (0) target = $region13
  $region12: #{picnet_forward.4} parent=0 // pred_region
    _
  $region13: #{picnet_forward.4} parent=0 // pred_fallthru
    _
  %v14 = vld [vmem:[%s1] sm:$0xff]
  %v15 = vld [vmem:[%s1 + $0x8] sm:$0xff]
  %v16 = vld [vmem:[%s1 + $0x10] sm:$0xff]
  %v17 = vld [vmem:[%s1 + $0x18] sm:$0xff]
  %v18 = vld [vmem:[%s1 + $0x20] sm:$0xf]
  %v19 = vld [vmem:[%s1 + $0x28] sm:$0xf]
  %v20 = vld [vmem:[%s0] sm:$0xff]
  %v21 = vld [vmem:[%s0 + $0x8] sm:$0xff]
  %v22 = vld [vmem:[%s0 + $0x10] sm:$0xff]
  %v23 = vld [vmem:[%s0 + $0x18] sm:$0xff]
  %v24 = vld [vmem:[%s0 + $0x20] sm:$0xff]
  %v25 = vld [vmem:[%s0 + $0x28] sm:$0xff]
  %v26 = vld [vmem:[%s0 + $0x30] sm:$0xff]
  %v27 = vld [vmem:[%s0 + $0x38] sm:$0xff]
  %v28 = vld [vmem:[%s0 + $0x40] sm:$0xff]
  %v29 = vld [vmem:[%s0 + $0x48] sm:$0xff]
  %v30 = vld [vmem:[%s0 + $0x50] sm:$0xff]
  %v31 = vld [vmem:[%s0 + $0x58] sm:$0xff]
  %v32 = vld [vmem:[%s0 + $0x60] sm:$0xff]
  %v33 = vld [vmem:[%s0 + $0x68] sm:$0xff]
  %v34 = vld [vmem:[%s0 + $0x70] sm:$0xff]
  %v35 = vld [vmem:[%s0 + $0x78] sm:$0xff]
  %v36 = vld [vmem:[%s0 + $0x80] sm:$0xff]
  %v37 = vld [vmem:[%s0 + $0x88] sm:$0xff]
  %v38 = vld [vmem:[%s0 + $0x90] sm:$0xff]
  %v39 = vld [vmem:[%s0 + $0x98] sm:$0xff]
  %v40 = vld [vmem:[%s0 + $0xa0] sm:$0xff]
  %v41 = vld [vmem:[%s0 + $0xa8] sm:$0xff]
  %v42 = vld [vmem:[%s0 + $0xb0] sm:$0xff]
  %v43 = vld [vmem:[%s0 + $0xb8] sm:$0xff]
  %v44 = vld [vmem:[%s0 + $0xc0] sm:$0xff]
  %v45 = vld [vmem:[%s0 + $0xc8] sm:$0xff]
  %v46 = vld [vmem:[%s0 + $0xd0] sm:$0xff]
  %v47 = vld [vmem:[%s0 + $0xd8] sm:$0xff]
  %v48 = vld [vmem:[%s0 + $0xe0] sm:$0xff]
  %v49 = vld [vmem:[%s0 + $0xe8] sm:$0xff]
  %v50 = vld [vmem:[%s0 + $0xf0] sm:$0xff]
  %v51 = vld [vmem:[%s0 + $0xf8] sm:$0xff]
  %v52 = vld [vmem:[%s0 + $0x100] sm:$0xff]
  %v53 = vld [vmem:[%s0 + $0x108] sm:$0xff]
  %v54 = vld [vmem:[%s0 + $0x110] sm:$0xff]
  %v55 = vld [vmem:[%s0 + $0x118] sm:$0xff]
  %v56 = vld [vmem:[%s0 + $0x120] sm:$0xff]
  %v57 = vld [vmem:[%s0 + $0x128] sm:$0xff]
  %v58 = vld [vmem:[%s0 + $0x130] sm:$0xff]
  %v59 = vld [vmem:[%s0 + $0x138] sm:$0xff]
  %v60 = vld [vmem:[%s0 + $0x140] sm:$0xff]
  %v61 = vld [vmem:[%s0 + $0x148] sm:$0xff]
  %v62 = vld [vmem:[%s0 + $0x150] sm:$0xff]
  %v63 = vld [vmem:[%s0 + $0x158] sm:$0xff]
  %v64 = vld [vmem:[%s0 + $0x160] sm:$0xff]
  %v65 = vld [vmem:[%s0 + $0x168] sm:$0xff]
  %v66 = vld [vmem:[%s0 + $0x170] sm:$0xff]
  %v67 = vld [vmem:[%s0 + $0x178] sm:$0xff]
  %v68 = vld [vmem:[%s0 + $0x180] sm:$0xff]
  %v69 = vld [vmem:[%s0 + $0x188] sm:$0xff]
  %v70 = vld [vmem:[%s0 + $0x190] sm:$0xff]
  %v71 = vld [vmem:[%s0 + $0x198] sm:$0xff]
  %v72 = vld [vmem:[%s0 + $0x1a0] sm:$0xff]
  %v73 = vld [vmem:[%s0 + $0x1a8] sm:$0xff]
  %v74 = vld [vmem:[%s0 + $0x1b0] sm:$0xff]
  %v75 = vld [vmem:[%s0 + $0x1b8] sm:$0xff]
  %v76 = vld [vmem:[%s0 + $0x1c0] sm:$0xff]
  %v77 = vld [vmem:[%s0 + $0x1c8] sm:$0xff]
  %v78 = vld [vmem:[%s0 + $0x1d0] sm:$0xff]
  %v79 = vld [vmem:[%s0 + $0x1d8] sm:$0xff]
  %v80 = vld [vmem:[%s0 + $0x1e0] sm:$0xff]
  %v81 = vld [vmem:[%s0 + $0x1e8] sm:$0xff]
  %v82 = vld [vmem:[%s0 + $0x1f0] sm:$0xff]
  %v83 = vld [vmem:[%s0 + $0x1f8] sm:$0xff]
  %v84 = vld [vmem:[%s0 + $0x200] sm:$0xff]
  %v85 = vld [vmem:[%s0 + $0x208] sm:$0xff]
  %v86 = vld [vmem:[%s0 + $0x210] sm:$0xff]
  %v87 = vld [vmem:[%s0 + $0x218] sm:$0xff]
  %v88 = vld [vmem:[%s0 + $0x220] sm:$0xff]
  %v89 = vld [vmem:[%s0 + $0x228] sm:$0xff]
  %v90 = vld [vmem:[%s0 + $0x230] sm:$0xff]
  %v91 = vld [vmem:[%s0 + $0x238] sm:$0xff]
  %v92 = vld [vmem:[%s0 + $0x240] sm:$0xff]
  %v93 = vld [vmem:[%s0 + $0x248] sm:$0xff]
  %v94 = vld [vmem:[%s0 + $0x250] sm:$0xff]
  %v95 = vld [vmem:[%s0 + $0x258] sm:$0xff]
  %v96 = vld [vmem:[%s0 + $0x260] sm:$0xff]
  %v97 = vld [vmem:[%s0 + $0x268] sm:$0xff]
  %v98 = vld [vmem:[%s0 + $0x270] sm:$0xff]
  %v99 = vld [vmem:[%s0 + $0x278] sm:$0xff]
  %v100 = vld [vmem:[%s0 + $0x280] sm:$0xff]
  %v101 = vld [vmem:[%s0 + $0x288] sm:$0xff]
  %v102 = vld [vmem:[%s0 + $0x290] sm:$0xff]
  %v103 = vld [vmem:[%s0 + $0x298] sm:$0xff]
  %v104 = vld [vmem:[%s0 + $0x2a0] sm:$0xff]
  %v105 = vld [vmem:[%s0 + $0x2a8] sm:$0xff]
  %v106 = vld [vmem:[%s0 + $0x2b0] sm:$0xff]
  %v107 = vld [vmem:[%s0 + $0x2b8] sm:$0xff]
  %v108 = vld [vmem:[%s0 + $0x2c0] sm:$0xff]
  %v109 = vld [vmem:[%s0 + $0x2c8] sm:$0xff]
  %v110 = vld [vmem:[%s0 + $0x2d0] sm:$0xff]
  %v111 = vld [vmem:[%s0 + $0x2d8] sm:$0xff]
  %v112 = vld [vmem:[%s0 + $0x2e0] sm:$0xff]
  %v113 = vld [vmem:[%s0 + $0x2e8] sm:$0xff]
  %v114 = vld [vmem:[%s0 + $0x2f0] sm:$0xff]
  %v115 = vld [vmem:[%s0 + $0x2f8] sm:$0xff]
  %v116 = vld [vmem:[%s0 + $0x300] sm:$0xff]
  %v117 = vld [vmem:[%s0 + $0x308] sm:$0xff]
  %v118 = vld [vmem:[%s0 + $0x310] sm:$0xff]
  %v119 = vld [vmem:[%s0 + $0x318] sm:$0xff]
  %v120 = vld [vmem:[%s0 + $0x320] sm:$0xff]
  %v121 = vld [vmem:[%s0 + $0x328] sm:$0xff]
  %v122 = vld [vmem:[%s0 + $0x330] sm:$0xff]
  %v123 = vld [vmem:[%s0 + $0x338] sm:$0xff]
  %v124 = vld [vmem:[%s0 + $0x340] sm:$0xff]
  %v125 = vld [vmem:[%s0 + $0x348] sm:$0xff]
  %v126 = vld [vmem:[%s0 + $0x350] sm:$0xff]
  %v127 = vld [vmem:[%s0 + $0x358] sm:$0xff]
  %v128 = vld [vmem:[%s0 + $0x360] sm:$0xff]
  %v129 = vld [vmem:[%s0 + $0x368] sm:$0xff]
  %v130 = vld [vmem:[%s0 + $0x370] sm:$0xff]
  %v131 = vld [vmem:[%s0 + $0x378] sm:$0xff]
  %v132 = vld [vmem:[%s0 + $0x380] sm:$0xff]
  %v133 = vld [vmem:[%s0 + $0x388] sm:$0xff]
  %v134 = vld [vmem:[%s0 + $0x390] sm:$0xff]
  %v135 = vld [vmem:[%s0 + $0x398] sm:$0xff]
  %v136 = vld [vmem:[%s0 + $0x3a0] sm:$0xff]
  %v137 = vld [vmem:[%s0 + $0x3a8] sm:$0xff]
  %v138 = vld [vmem:[%s0 + $0x3b0] sm:$0xff]
  %v139 = vld [vmem:[%s0 + $0x3b8] sm:$0xff]
  %v140 = vld [vmem:[%s0 + $0x3c0] sm:$0xff]
  %v141 = vld [vmem:[%s0 + $0x3c8] sm:$0xff]
  %v142 = vld [vmem:[%s0 + $0x3d0] sm:$0xff]
  %v143 = vld [vmem:[%s0 + $0x3d8] sm:$0xff]
  %v144 = vld [vmem:[%s0 + $0x3e0] sm:$0xff]
  %v145 = vld [vmem:[%s0 + $0x3e8] sm:$0xff]
  %v146 = vld [vmem:[%s0 + $0x3f0] sm:$0xff]
  %v147 = vld [vmem:[%s0 + $0x3f8] sm:$0xff]
  %v148 = vld [vmem:[%s0 + $0x400] sm:$0xff]
  %v149 = vld [vmem:[%s0 + $0x408] sm:$0xff]
  %v150 = vld [vmem:[%s0 + $0x410] sm:$0xff]
  %v151 = vld [vmem:[%s0 + $0x418] sm:$0xff]
  %v152 = vld [vmem:[%s0 + $0x420] sm:$0xff]
  %v153 = vld [vmem:[%s0 + $0x428] sm:$0xff]
  %v154 = vld [vmem:[%s0 + $0x430] sm:$0xff]
  %v155 = vld [vmem:[%s0 + $0x438] sm:$0xff]
  %v156 = vld [vmem:[%s0 + $0x440] sm:$0xff]
  %v157 = vld [vmem:[%s0 + $0x448] sm:$0xff]
  %v158 = vld [vmem:[%s0 + $0x450] sm:$0xff]
  %v159 = vld [vmem:[%s0 + $0x458] sm:$0xff]
  %v160 = vld [vmem:[%s0 + $0x460] sm:$0xff]
  %v161 = vld [vmem:[%s0 + $0x468] sm:$0xff]
  %v162 = vld [vmem:[%s0 + $0x470] sm:$0xff]
  %v163 = vld [vmem:[%s0 + $0x478] sm:$0xff]
  %v164 = vld [vmem:[%s0 + $0x480] sm:$0xff]
  %v165 = vld [vmem:[%s0 + $0x488] sm:$0xff]
  %v166 = vld [vmem:[%s0 + $0x490] sm:$0xff]
  %v167 = vld [vmem:[%s0 + $0x498] sm:$0xff]
  %v168 = vld [vmem:[%s0 + $0x4a0] sm:$0xff]
  %v169 = vld [vmem:[%s0 + $0x4a8] sm:$0xff]
  %v170 = vld [vmem:[%s0 + $0x4b0] sm:$0xff]
  %v171 = vld [vmem:[%s0 + $0x4b8] sm:$0xff]
  %v172 = vld [vmem:[%s0 + $0x4c0] sm:$0xff]
  %v173 = vld [vmem:[%s0 + $0x4c8] sm:$0xff]
  %v174 = vld [vmem:[%s0 + $0x4d0] sm:$0xff]
  %v175 = vld [vmem:[%s0 + $0x4d8] sm:$0xff]
  %v176 = vld [vmem:[%s0 + $0x4e0] sm:$0xff]
  %v177 = vld [vmem:[%s0 + $0x4e8] sm:$0xff]
  %v178 = vld [vmem:[%s0 + $0x4f0] sm:$0xff]
  %v179 = vld [vmem:[%s0 + $0x4f8] sm:$0xff]
  %v180 = vld [vmem:[%s0 + $0x500] sm:$0xff]
  %v181 = vld [vmem:[%s0 + $0x508] sm:$0xff]
  %v182 = vld [vmem:[%s0 + $0x510] sm:$0xff]
  %v183 = vld [vmem:[%s0 + $0x518] sm:$0xff]
  %v184 = vld [vmem:[%s0 + $0x520] sm:$0xff]
  %v185 = vld [vmem:[%s0 + $0x528] sm:$0xff]
  %v186 = vld [vmem:[%s0 + $0x530] sm:$0xff]
  %v187 = vld [vmem:[%s0 + $0x538] sm:$0xff]
  %v188 = vld [vmem:[%s0 + $0x540] sm:$0xff]
  %v189 = vld [vmem:[%s0 + $0x548] sm:$0xff]
  %v190 = vld [vmem:[%s0 + $0x550] sm:$0xff]
  %v191 = vld [vmem:[%s0 + $0x558] sm:$0xff]
  %v192 = vld [vmem:[%s0 + $0x560] sm:$0xff]
  %v193 = vld [vmem:[%s0 + $0x568] sm:$0xff]
  %v194 = vld [vmem:[%s0 + $0x570] sm:$0xff]
  %v195 = vld [vmem:[%s0 + $0x578] sm:$0xff]
  %v196 = vld [vmem:[%s0 + $0x580] sm:$0xff]
  %v197 = vld [vmem:[%s0 + $0x588] sm:$0xff]
  %v198 = vld [vmem:[%s0 + $0x590] sm:$0xff]
  %v199 = vld [vmem:[%s0 + $0x598] sm:$0xff]
  %v200 = vld [vmem:[%s0 + $0x5a0] sm:$0xff]
  %v201 = vld [vmem:[%s0 + $0x5a8] sm:$0xff]
  %v202 = vld [vmem:[%s0 + $0x5b0] sm:$0xff]
  %v203 = vld [vmem:[%s0 + $0x5b8] sm:$0xff]
  %v204 = vld [vmem:[%s0 + $0x5c0] sm:$0xff]
  %v205 = vld [vmem:[%s0 + $0x5c8] sm:$0xff]
  %v206 = vld [vmem:[%s0 + $0x5d0] sm:$0xff]
  %v207 = vld [vmem:[%s0 + $0x5d8] sm:$0xff]
  %v208 = vld [vmem:[%s0 + $0x5e0] sm:$0xff]
  %v209 = vld [vmem:[%s0 + $0x5e8] sm:$0xff]
  %v210 = vld [vmem:[%s0 + $0x5f0] sm:$0xff]
  %v211 = vld [vmem:[%s0 + $0x5f8] sm:$0xff]
  %v212 = vld [vmem:[%s0 + $0x600] sm:$0xff]
  %v213 = vld [vmem:[%s0 + $0x608] sm:$0xff]
  %v214 = vld [vmem:[%s0 + $0x610] sm:$0xff]
  %v215 = vld [vmem:[%s0 + $0x618] sm:$0xff]
  %v216 = vld [vmem:[%s0 + $0x620] sm:$0xff]
  %v217 = vld [vmem:[%s0 + $0x628] sm:$0xff]
  %v218 = vld [vmem:[%s0 + $0x630] sm:$0xff]
  %v219 = vld [vmem:[%s0 + $0x638] sm:$0xff]
  %v220 = vld [vmem:[%s0 + $0x640] sm:$0xff]
  %v221 = vld [vmem:[%s0 + $0x648] sm:$0xff]
  %v222 = vld [vmem:[%s0 + $0x650] sm:$0xff]
  %v223 = vld [vmem:[%s0 + $0x658] sm:$0xff]
  %v224 = vld [vmem:[%s0 + $0x660] sm:$0xff]
  %v225 = vld [vmem:[%s0 + $0x668] sm:$0xff]
  %v226 = vld [vmem:[%s0 + $0x670] sm:$0xff]
  %v227 = vld [vmem:[%s0 + $0x678] sm:$0xff]
  %v228 = vld [vmem:[%s0 + $0x680] sm:$0xff]
  %v229 = vld [vmem:[%s0 + $0x688] sm:$0xff]
  %v230 = vld [vmem:[%s0 + $0x690] sm:$0xff]
  %v231 = vld [vmem:[%s0 + $0x698] sm:$0xff]
  %v232 = vld [vmem:[%s0 + $0x6a0] sm:$0xff]
  %v233 = vld [vmem:[%s0 + $0x6a8] sm:$0xff]
  %v234 = vld [vmem:[%s0 + $0x6b0] sm:$0xff]
  %v235 = vld [vmem:[%s0 + $0x6b8] sm:$0xff]
  %v236 = vld [vmem:[%s0 + $0x6c0] sm:$0xff]
  %v237 = vld [vmem:[%s0 + $0x6c8] sm:$0xff]
  %v238 = vld [vmem:[%s0 + $0x6d0] sm:$0xff]
  %v239 = vld [vmem:[%s0 + $0x6d8] sm:$0xff]
  %v240 = vld [vmem:[%s0 + $0x6e0] sm:$0xff]
  %v241 = vld [vmem:[%s0 + $0x6e8] sm:$0xff]
  %v242 = vld [vmem:[%s0 + $0x6f0] sm:$0xff]
  %v243 = vld [vmem:[%s0 + $0x6f8] sm:$0xff]
  %v244 = vld [vmem:[%s0 + $0x700] sm:$0xff]
  %v245 = vld [vmem:[%s0 + $0x708] sm:$0xff]
  %v246 = vld [vmem:[%s0 + $0x710] sm:$0xff]
  %v247 = vld [vmem:[%s0 + $0x718] sm:$0xff]
  %v248 = vld [vmem:[%s0 + $0x720] sm:$0xff]
  %v249 = vld [vmem:[%s0 + $0x728] sm:$0xff]
  %v250 = vld [vmem:[%s0 + $0x730] sm:$0xff]
  %v251 = vld [vmem:[%s0 + $0x738] sm:$0xff]
  %v252 = vld [vmem:[%s0 + $0x740] sm:$0xff]
  %v253 = vld [vmem:[%s0 + $0x748] sm:$0xff]
  %v254 = vld [vmem:[%s0 + $0x750] sm:$0xff]
  %v255 = vld [vmem:[%s0 + $0x758] sm:$0xff]
  %v256 = vld [vmem:[%s0 + $0x760] sm:$0xff]
  %v257 = vld [vmem:[%s0 + $0x768] sm:$0xff]
  %v258 = vld [vmem:[%s0 + $0x770] sm:$0xff]
  %v259 = vld [vmem:[%s0 + $0x778] sm:$0xff]
  %v260 = vld [vmem:[%s0 + $0x780] sm:$0xff]
  %v261 = vld [vmem:[%s0 + $0x788] sm:$0xff]
  %v262 = vld [vmem:[%s0 + $0x790] sm:$0xff]
  %v263 = vld [vmem:[%s0 + $0x798] sm:$0xff]
  %v264 = vld [vmem:[%s0 + $0x7a0] sm:$0xff]
  %v265 = vld [vmem:[%s0 + $0x7a8] sm:$0xff]
  %v266 = vld [vmem:[%s0 + $0x7b0] sm:$0xff]
  %v267 = vld [vmem:[%s0 + $0x7b8] sm:$0xff]
  %v268 = vld [vmem:[%s0 + $0x7c0] sm:$0xff]
  %v269 = vld [vmem:[%s0 + $0x7c8] sm:$0xff]
  %v270 = vld [vmem:[%s0 + $0x7d0] sm:$0xff]
  %v271 = vld [vmem:[%s0 + $0x7d8] sm:$0xff]
  %v272 = vld [vmem:[%s0 + $0x7e0] sm:$0xff]
  %v273 = vld [vmem:[%s0 + $0x7e8] sm:$0xff]
  %v274 = vld [vmem:[%s0 + $0x7f0] sm:$0xff]
  %v275 = vld [vmem:[%s0 + $0x7f8] sm:$0xff]
  %v276 = vld [vmem:[%s0 + $0x800] sm:$0xff]
  %v277 = vld [vmem:[%s0 + $0x808] sm:$0xff]
  %v278 = vld [vmem:[%s0 + $0x810] sm:$0xff]
  %v279 = vld [vmem:[%s0 + $0x818] sm:$0xff]
  %v280 = vld [vmem:[%s0 + $0x820] sm:$0xff]
  %v281 = vld [vmem:[%s0 + $0x828] sm:$0xff]
  %v282 = vld [vmem:[%s0 + $0x830] sm:$0xff]
  %v283 = vld [vmem:[%s0 + $0x838] sm:$0xff]
  %v284 = vld [vmem:[%s0 + $0x840] sm:$0xff]
  %v285 = vld [vmem:[%s0 + $0x848] sm:$0xff]
  %v286 = vld [vmem:[%s0 + $0x850] sm:$0xff]
  %v287 = vld [vmem:[%s0 + $0x858] sm:$0xff]
  %v288 = vld [vmem:[%s0 + $0x860] sm:$0xff]
  %v289 = vld [vmem:[%s0 + $0x868] sm:$0xff]
  %v290 = vld [vmem:[%s0 + $0x870] sm:$0xff]
  %v291 = vld [vmem:[%s0 + $0x878] sm:$0xff]
  %v292 = vld [vmem:[%s0 + $0x880] sm:$0xff]
  %v293 = vld [vmem:[%s0 + $0x888] sm:$0xff]
  %v294 = vld [vmem:[%s0 + $0x890] sm:$0xff]
  %v295 = vld [vmem:[%s0 + $0x898] sm:$0xff]
  %v296 = vld [vmem:[%s0 + $0x8a0] sm:$0xff]
  %v297 = vld [vmem:[%s0 + $0x8a8] sm:$0xff]
  %v298 = vld [vmem:[%s0 + $0x8b0] sm:$0xff]
  %v299 = vld [vmem:[%s0 + $0x8b8] sm:$0xff]
  %v300 = vld [vmem:[%s0 + $0x8c0] sm:$0xff]
  %v301 = vld [vmem:[%s0 + $0x8c8] sm:$0xff]
  %v302 = vld [vmem:[%s0 + $0x8d0] sm:$0xff]
  %v303 = vld [vmem:[%s0 + $0x8d8] sm:$0xff]
  %v304 = vld [vmem:[%s0 + $0x8e0] sm:$0xff]
  %v305 = vld [vmem:[%s0 + $0x8e8] sm:$0xff]
  %v306 = vld [vmem:[%s0 + $0x8f0] sm:$0xff]
  %v307 = vld [vmem:[%s0 + $0x8f8] sm:$0xff]
  %v308 = vld [vmem:[%s0 + $0x900] sm:$0xff]
  %v309 = vld [vmem:[%s0 + $0x908] sm:$0xff]
  %v310 = vld [vmem:[%s0 + $0x910] sm:$0xff]
  %v311 = vld [vmem:[%s0 + $0x918] sm:$0xff]
  %v312 = vld [vmem:[%s0 + $0x920] sm:$0xff]
  %v313 = vld [vmem:[%s0 + $0x928] sm:$0xff]
  %v314 = vld [vmem:[%s0 + $0x930] sm:$0xff]
  %v315 = vld [vmem:[%s0 + $0x938] sm:$0xff]
  %v316 = vld [vmem:[%s0 + $0x940] sm:$0xff]
  %v317 = vld [vmem:[%s0 + $0x948] sm:$0xff]
  %v318 = vld [vmem:[%s0 + $0x950] sm:$0xff]
  %v319 = vld [vmem:[%s0 + $0x958] sm:$0xff]
  %v320 = vld [vmem:[%s0 + $0x960] sm:$0xff]
  %v321 = vld [vmem:[%s0 + $0x968] sm:$0xff]
  %v322 = vld [vmem:[%s0 + $0x970] sm:$0xff]
  %v323 = vld [vmem:[%s0 + $0x978] sm:$0xff]
  %v324 = vld [vmem:[%s0 + $0x980] sm:$0xff]
  %v325 = vld [vmem:[%s0 + $0x988] sm:$0xff]
  %v326 = vld [vmem:[%s0 + $0x990] sm:$0xff]
  %v327 = vld [vmem:[%s0 + $0x998] sm:$0xff]
  %v328 = vld [vmem:[%s0 + $0x9a0] sm:$0xff]
  %v329 = vld [vmem:[%s0 + $0x9a8] sm:$0xff]
  %v330 = vld [vmem:[%s0 + $0x9b0] sm:$0xff]
  %v331 = vld [vmem:[%s0 + $0x9b8] sm:$0xff]
  %v332 = vld [vmem:[%s0 + $0x9c0] sm:$0xff]
  %v333 = vld [vmem:[%s0 + $0x9c8] sm:$0xff]
  %v334 = vld [vmem:[%s0 + $0x9d0] sm:$0xff]
  %v335 = vld [vmem:[%s0 + $0x9d8] sm:$0xff]
  %v336 = vld [vmem:[%s0 + $0x9e0] sm:$0xff]
  %v337 = vld [vmem:[%s0 + $0x9e8] sm:$0xff]
  %v338 = vld [vmem:[%s0 + $0x9f0] sm:$0xff]
  %v339 = vld [vmem:[%s0 + $0x9f8] sm:$0xff]
  %v340 = vld [vmem:[%s0 + $0xa00] sm:$0xff]
  %v341 = vld [vmem:[%s0 + $0xa08] sm:$0xff]
  %v342 = vld [vmem:[%s0 + $0xa10] sm:$0xff]
  %v343 = vld [vmem:[%s0 + $0xa18] sm:$0xff]
  %v344 = vld [vmem:[%s0 + $0xa20] sm:$0xff]
  %v345 = vld [vmem:[%s0 + $0xa28] sm:$0xff]
  %v346 = vld [vmem:[%s0 + $0xa30] sm:$0xff]
  %v347 = vld [vmem:[%s0 + $0xa38] sm:$0xff]
  %v348 = vld [vmem:[%s0 + $0xa40] sm:$0xff]
  %v349 = vld [vmem:[%s0 + $0xa48] sm:$0xff]
  %v350 = vld [vmem:[%s0 + $0xa50] sm:$0xff]
  %v351 = vld [vmem:[%s0 + $0xa58] sm:$0xff]
  %v352 = vld [vmem:[%s0 + $0xa60] sm:$0xff]
  %v353 = vld [vmem:[%s0 + $0xa68] sm:$0xff]
  %v354 = vld [vmem:[%s0 + $0xa70] sm:$0xff]
  %v355 = vld [vmem:[%s0 + $0xa78] sm:$0xff]
  %v356 = vld [vmem:[%s0 + $0xa80] sm:$0xff]
  %v357 = vld [vmem:[%s0 + $0xa88] sm:$0xff]
  %v358 = vld [vmem:[%s0 + $0xa90] sm:$0xff]
  %v359 = vld [vmem:[%s0 + $0xa98] sm:$0xff]
  %v360 = vld [vmem:[%s0 + $0xaa0] sm:$0xff]
  %v361 = vld [vmem:[%s0 + $0xaa8] sm:$0xff]
  %v362 = vld [vmem:[%s0 + $0xab0] sm:$0xff]
  %v363 = vld [vmem:[%s0 + $0xab8] sm:$0xff]
  %v364 = vld [vmem:[%s0 + $0xac0] sm:$0xff]
  %v365 = vld [vmem:[%s0 + $0xac8] sm:$0xff]
  %v366 = vld [vmem:[%s0 + $0xad0] sm:$0xff]
  %v367 = vld [vmem:[%s0 + $0xad8] sm:$0xff]
  %v368 = vld [vmem:[%s0 + $0xae0] sm:$0xff]
  %v369 = vld [vmem:[%s0 + $0xae8] sm:$0xff]
  %v370 = vld [vmem:[%s0 + $0xaf0] sm:$0xff]
  %v371 = vld [vmem:[%s0 + $0xaf8] sm:$0xff]
  %v372 = vld [vmem:[%s0 + $0xb00] sm:$0xff]
  %v373 = vld [vmem:[%s0 + $0xb08] sm:$0xff]
  %v374 = vld [vmem:[%s0 + $0xb10] sm:$0xff]
  %v375 = vld [vmem:[%s0 + $0xb18] sm:$0xff]
  %v376 = vld [vmem:[%s0 + $0xb20] sm:$0xff]
  %v377 = vld [vmem:[%s0 + $0xb28] sm:$0xff]
  %v378 = vld [vmem:[%s0 + $0xb30] sm:$0xff]
  %v379 = vld [vmem:[%s0 + $0xb38] sm:$0xff]
  %v380 = vld [vmem:[%s0 + $0xb40] sm:$0xff]
  %v381 = vld [vmem:[%s0 + $0xb48] sm:$0xff]
  %v382 = vld [vmem:[%s0 + $0xb50] sm:$0xff]
  %v383 = vld [vmem:[%s0 + $0xb58] sm:$0xff]
  %v384 = vld [vmem:[%s0 + $0xb60] sm:$0xff]
  %v385 = vld [vmem:[%s0 + $0xb68] sm:$0xff]
  %v386 = vld [vmem:[%s0 + $0xb70] sm:$0xff]
  %v387 = vld [vmem:[%s0 + $0xb78] sm:$0xff]
  %v388 = vld [vmem:[%s0 + $0xb80] sm:$0xff]
  %v389 = vld [vmem:[%s0 + $0xb88] sm:$0xff]
  %v390 = vld [vmem:[%s0 + $0xb90] sm:$0xff]
  %v391 = vld [vmem:[%s0 + $0xb98] sm:$0xff]
  %v392 = vld [vmem:[%s0 + $0xba0] sm:$0xff]
  %v393 = vld [vmem:[%s0 + $0xba8] sm:$0xff]
  %v394 = vld [vmem:[%s0 + $0xbb0] sm:$0xff]
  %v395 = vld [vmem:[%s0 + $0xbb8] sm:$0xff]
  %v396 = vld [vmem:[%s0 + $0xbc0] sm:$0xff]
  %v397 = vld [vmem:[%s0 + $0xbc8] sm:$0xff]
  %v398 = vld [vmem:[%s0 + $0xbd0] sm:$0xff]
  %v399 = vld [vmem:[%s0 + $0xbd8] sm:$0xff]
  %v400 = vld [vmem:[%s0 + $0xbe0] sm:$0xff]
  %v401 = vld [vmem:[%s0 + $0xbe8] sm:$0xff]
  %v402 = vld [vmem:[%s0 + $0xbf0] sm:$0xff]
  %v403 = vld [vmem:[%s0 + $0xbf8] sm:$0xff]
  %v404 = vld [vmem:[%s0 + $0xc00] sm:$0xff]
  %v405 = vld [vmem:[%s0 + $0xc08] sm:$0xff]
  %v406 = vld [vmem:[%s0 + $0xc10] sm:$0xff]
  %v407 = vld [vmem:[%s0 + $0xc18] sm:$0xff]
  %v408 = vld [vmem:[%s0 + $0xc20] sm:$0xff]
  %v409 = vld [vmem:[%s0 + $0xc28] sm:$0xff]
  %v410 = vld [vmem:[%s0 + $0xc30] sm:$0xff]
  %v411 = vld [vmem:[%s0 + $0xc38] sm:$0xff]
  %v412 = vld [vmem:[%s0 + $0xc40] sm:$0xff]
  %v413 = vld [vmem:[%s0 + $0xc48] sm:$0xff]
  %v414 = vld [vmem:[%s0 + $0xc50] sm:$0xff]
  %v415 = vld [vmem:[%s0 + $0xc58] sm:$0xff]
  %v416 = vld [vmem:[%s0 + $0xc60] sm:$0xff]
  %v417 = vld [vmem:[%s0 + $0xc68] sm:$0xff]
  %v418 = vld [vmem:[%s0 + $0xc70] sm:$0xff]
  %v419 = vld [vmem:[%s0 + $0xc78] sm:$0xff]
  %v420 = vld [vmem:[%s0 + $0xc80] sm:$0xff]
  %v421 = vld [vmem:[%s0 + $0xc88] sm:$0xff]
  %v422 = vld [vmem:[%s0 + $0xc90] sm:$0xff]
  %v423 = vld [vmem:[%s0 + $0xc98] sm:$0xff]
  %v424 = vld [vmem:[%s0 + $0xca0] sm:$0xff]
  %v425 = vld [vmem:[%s0 + $0xca8] sm:$0xff]
  %v426 = vld [vmem:[%s0 + $0xcb0] sm:$0xff]
  %v427 = vld [vmem:[%s0 + $0xcb8] sm:$0xff]
  %v428 = vld [vmem:[%s0 + $0xcc0] sm:$0xff]
  %v429 = vld [vmem:[%s0 + $0xcc8] sm:$0xff]
  %v430 = vld [vmem:[%s0 + $0xcd0] sm:$0xff]
  %v431 = vld [vmem:[%s0 + $0xcd8] sm:$0xff]
  %v432 = vld [vmem:[%s0 + $0xce0] sm:$0xff]
  %v433 = vld [vmem:[%s0 + $0xce8] sm:$0xff]
  %v434 = vld [vmem:[%s0 + $0xcf0] sm:$0xff]
  %v435 = vld [vmem:[%s0 + $0xcf8] sm:$0xff]
  %v436 = vld [vmem:[%s0 + $0xd00] sm:$0xff]
  %v437 = vld [vmem:[%s0 + $0xd08] sm:$0xff]
  %v438 = vld [vmem:[%s0 + $0xd10] sm:$0xff]
  %v439 = vld [vmem:[%s0 + $0xd18] sm:$0xff]
  %v440 = vld [vmem:[%s0 + $0xd20] sm:$0xff]
  %v441 = vld [vmem:[%s0 + $0xd28] sm:$0xff]
  %v442 = vld [vmem:[%s0 + $0xd30] sm:$0xff]
  %v443 = vld [vmem:[%s0 + $0xd38] sm:$0xff]
  %v444 = vld [vmem:[%s0 + $0xd40] sm:$0xff]
  %v445 = vld [vmem:[%s0 + $0xd48] sm:$0xff]
  %v446 = vld [vmem:[%s0 + $0xd50] sm:$0xff]
  %v447 = vld [vmem:[%s0 + $0xd58] sm:$0xff]
  %v448 = vld [vmem:[%s0 + $0xd60] sm:$0xff]
  %v449 = vld [vmem:[%s0 + $0xd68] sm:$0xff]
  %v450 = vld [vmem:[%s0 + $0xd70] sm:$0xff]
  %v451 = vld [vmem:[%s0 + $0xd78] sm:$0xff]
  %v452 = vld [vmem:[%s0 + $0xd80] sm:$0xff]
  %v453 = vld [vmem:[%s0 + $0xd88] sm:$0xff]
  %v454 = vld [vmem:[%s0 + $0xd90] sm:$0xff]
  %v455 = vld [vmem:[%s0 + $0xd98] sm:$0xff]
  %v456 = vld [vmem:[%s0 + $0xda0] sm:$0xff]
  %v457 = vld [vmem:[%s0 + $0xda8] sm:$0xff]
  %v458 = vld [vmem:[%s0 + $0xdb0] sm:$0xff]
  %v459 = vld [vmem:[%s0 + $0xdb8] sm:$0xff]
  %v460 = vld [vmem:[%s0 + $0xdc0] sm:$0xff]
  %v461 = vld [vmem:[%s0 + $0xdc8] sm:$0xff]
  %v462 = vld [vmem:[%s0 + $0xdd0] sm:$0xff]
  %v463 = vld [vmem:[%s0 + $0xdd8] sm:$0xff]
  %v464 = vld [vmem:[%s0 + $0xde0] sm:$0xff]
  %v465 = vld [vmem:[%s0 + $0xde8] sm:$0xff]
  %v466 = vld [vmem:[%s0 + $0xdf0] sm:$0xff]
  %v467 = vld [vmem:[%s0 + $0xdf8] sm:$0xff]
  %v468 = vld [vmem:[%s0 + $0xe00] sm:$0xff]
  %v469 = vld [vmem:[%s0 + $0xe08] sm:$0xff]
  %v470 = vld [vmem:[%s0 + $0xe10] sm:$0xff]
  %v471 = vld [vmem:[%s0 + $0xe18] sm:$0xff]
  %v472 = vld [vmem:[%s0 + $0xe20] sm:$0xff]
  %v473 = vld [vmem:[%s0 + $0xe28] sm:$0xff]
  %v474 = vld [vmem:[%s0 + $0xe30] sm:$0xff]
  %v475 = vld [vmem:[%s0 + $0xe38] sm:$0xff]
  %v476 = vld [vmem:[%s0 + $0xe40] sm:$0xff]
  %v477 = vld [vmem:[%s0 + $0xe48] sm:$0xff]
  %v478 = vld [vmem:[%s0 + $0xe50] sm:$0xff]
  %v479 = vld [vmem:[%s0 + $0xe58] sm:$0xff]
  %v480 = vld [vmem:[%s0 + $0xe60] sm:$0xff]
  %v481 = vld [vmem:[%s0 + $0xe68] sm:$0xff]
  %v482 = vld [vmem:[%s0 + $0xe70] sm:$0xff]
  %v483 = vld [vmem:[%s0 + $0xe78] sm:$0xff]
  %v484 = vld [vmem:[%s0 + $0xe80] sm:$0xff]
  %v485 = vld [vmem:[%s0 + $0xe88] sm:$0xff]
  %v486 = vld [vmem:[%s0 + $0xe90] sm:$0xff]
  %v487 = vld [vmem:[%s0 + $0xe98] sm:$0xff]
  %v488 = vld [vmem:[%s0 + $0xea0] sm:$0xff]
  %v489 = vld [vmem:[%s0 + $0xea8] sm:$0xff]
  %v490 = vld [vmem:[%s0 + $0xeb0] sm:$0xff]
  %v491 = vld [vmem:[%s0 + $0xeb8] sm:$0xff]
  %v492 = vld [vmem:[%s0 + $0xec0] sm:$0xff]
  %v493 = vld [vmem:[%s0 + $0xec8] sm:$0xff]
  %v494 = vld [vmem:[%s0 + $0xed0] sm:$0xff]
  %v495 = vld [vmem:[%s0 + $0xed8] sm:$0xff]
  %v496 = vld [vmem:[%s0 + $0xee0] sm:$0xff]
  %v497 = vld [vmem:[%s0 + $0xee8] sm:$0xff]
  %v498 = vld [vmem:[%s0 + $0xef0] sm:$0xff]
  %v499 = vld [vmem:[%s0 + $0xef8] sm:$0xff]
  %v500 = vld [vmem:[%s0 + $0xf00] sm:$0xff]
  %v501 = vld [vmem:[%s0 + $0xf08] sm:$0xff]
  %v502 = vld [vmem:[%s0 + $0xf10] sm:$0xff]
  %v503 = vld [vmem:[%s0 + $0xf18] sm:$0xff]
  %v504 = vld [vmem:[%s0 + $0xf20] sm:$0xff]
  %v505 = vld [vmem:[%s0 + $0xf28] sm:$0xff]
  %v506 = vld [vmem:[%s0 + $0xf30] sm:$0xff]
  %v507 = vld [vmem:[%s0 + $0xf38] sm:$0xff]
  %v508 = vld [vmem:[%s0 + $0xf40] sm:$0xff]
  %v509 = vld [vmem:[%s0 + $0xf48] sm:$0xff]
  %v510 = vld [vmem:[%s0 + $0xf50] sm:$0xff]
  %v511 = vld [vmem:[%s0 + $0xf58] sm:$0xff]
  %v512 = vld [vmem:[%s0 + $0xf60] sm:$0xff]
  %v513 = vld [vmem:[%s0 + $0xf68] sm:$0xff]
  %v514 = vld [vmem:[%s0 + $0xf70] sm:$0xff]
  %v515 = vld [vmem:[%s0 + $0xf78] sm:$0xff]
  %v516 = vld [vmem:[%s0 + $0xf80] sm:$0xff]
  %v517 = vld [vmem:[%s0 + $0xf88] sm:$0xff]
  %v518 = vld [vmem:[%s0 + $0xf90] sm:$0xff]
  %v519 = vld [vmem:[%s0 + $0xf98] sm:$0xff]
  %v520 = vld [vmem:[%s0 + $0xfa0] sm:$0xff]
  %v521 = vld [vmem:[%s0 + $0xfa8] sm:$0xff]
  %v522 = vld [vmem:[%s0 + $0xfb0] sm:$0xff]
  %v523 = vld [vmem:[%s0 + $0xfb8] sm:$0xff]
  %v524 = vld [vmem:[%s0 + $0xfc0] sm:$0xff]
  %v525 = vld [vmem:[%s0 + $0xfc8] sm:$0xff]
  %v526 = vld [vmem:[%s0 + $0xfd0] sm:$0xff]
  %v527 = vld [vmem:[%s0 + $0xfd8] sm:$0xff]
  %v528 = vld [vmem:[%s0 + $0xfe0] sm:$0xff]
  %v529 = vld [vmem:[%s0 + $0xfe8] sm:$0xff]
  %v530 = vld [vmem:[%s0 + $0xff0] sm:$0xff]
  %v531 = vld [vmem:[%s0 + $0xff8] sm:$0xff]
  %v532 = vld [vmem:[%s0 + $0x1000] sm:$0xff]
  %v533 = vld [vmem:[%s0 + $0x1008] sm:$0xff]
  %v534 = vld [vmem:[%s0 + $0x1010] sm:$0xff]
  %v535 = vld [vmem:[%s0 + $0x1018] sm:$0xff]
  %v536 = vld [vmem:[%s0 + $0x1020] sm:$0xff]
  %v537 = vld [vmem:[%s0 + $0x1028] sm:$0xff]
  %v538 = vld [vmem:[%s0 + $0x1030] sm:$0xff]
  %v539 = vld [vmem:[%s0 + $0x1038] sm:$0xff]
  %v540 = vld [vmem:[%s0 + $0x1040] sm:$0xff]
  %v541 = vld [vmem:[%s0 + $0x1048] sm:$0xff]
  %v542 = vld [vmem:[%s0 + $0x1050] sm:$0xff]
  %v543 = vld [vmem:[%s0 + $0x1058] sm:$0xff]
  %v544 = vld [vmem:[%s0 + $0x1060] sm:$0xff]
  %v545 = vld [vmem:[%s0 + $0x1068] sm:$0xff]
  %v546 = vld [vmem:[%s0 + $0x1070] sm:$0xff]
  %v547 = vld [vmem:[%s0 + $0x1078] sm:$0xff]
  %v548 = vld [vmem:[%s0 + $0x1080] sm:$0xff]
  %v549 = vld [vmem:[%s0 + $0x1088] sm:$0xff]
  %v550 = vld [vmem:[%s0 + $0x1090] sm:$0xff]
  %v551 = vld [vmem:[%s0 + $0x1098] sm:$0xff]
  %v552 = vld [vmem:[%s0 + $0x10a0] sm:$0xff]
  %v553 = vld [vmem:[%s0 + $0x10a8] sm:$0xff]
  %v554 = vld [vmem:[%s0 + $0x10b0] sm:$0xff]
  %v555 = vld [vmem:[%s0 + $0x10b8] sm:$0xff]
  %v556 = vld [vmem:[%s0 + $0x10c0] sm:$0xff]
  %v557 = vld [vmem:[%s0 + $0x10c8] sm:$0xff]
  %v558 = vld [vmem:[%s0 + $0x10d0] sm:$0xff]
  %v559 = vld [vmem:[%s0 + $0x10d8] sm:$0xff]
  %v560 = vld [vmem:[%s0 + $0x10e0] sm:$0xff]
  %v561 = vld [vmem:[%s0 + $0x10e8] sm:$0xff]
  %v562 = vld [vmem:[%s0 + $0x10f0] sm:$0xff]
  %v563 = vld [vmem:[%s0 + $0x10f8] sm:$0xff]
  %v564 = vld [vmem:[%s0 + $0x1100] sm:$0xff]
  %v565 = vld [vmem:[%s0 + $0x1108] sm:$0xff]
  %v566 = vld [vmem:[%s0 + $0x1110] sm:$0xff]
  %v567 = vld [vmem:[%s0 + $0x1118] sm:$0xff]
  %v568 = vld [vmem:[%s0 + $0x1120] sm:$0xff]
  %v569 = vld [vmem:[%s0 + $0x1128] sm:$0xff]
  %v570 = vld [vmem:[%s0 + $0x1130] sm:$0xff]
  %v571 = vld [vmem:[%s0 + $0x1138] sm:$0xff]
  %v572 = vld [vmem:[%s0 + $0x1140] sm:$0xff]
  %v573 = vld [vmem:[%s0 + $0x1148] sm:$0xff]
  %v574 = vld [vmem:[%s0 + $0x1150] sm:$0xff]
  %v575 = vld [vmem:[%s0 + $0x1158] sm:$0xff]
  %v576 = vld [vmem:[%s0 + $0x1160] sm:$0xff]
  %v577 = vld [vmem:[%s0 + $0x1168] sm:$0xff]
  %v578 = vld [vmem:[%s0 + $0x1170] sm:$0xff]
  %v579 = vld [vmem:[%s0 + $0x1178] sm:$0xff]
  %v580 = vld [vmem:[%s0 + $0x1180] sm:$0xff]
  %v581 = vld [vmem:[%s0 + $0x1188] sm:$0xff]
  %v582 = vld [vmem:[%s0 + $0x1190] sm:$0xff]
  %v583 = vld [vmem:[%s0 + $0x1198] sm:$0xff]
  %v584 = vld [vmem:[%s0 + $0x11a0] sm:$0xff]
  %v585 = vld [vmem:[%s0 + $0x11a8] sm:$0xff]
  %v586 = vld [vmem:[%s0 + $0x11b0] sm:$0xff]
  %v587 = vld [vmem:[%s0 + $0x11b8] sm:$0xff]
  %v588 = vld [vmem:[%s0 + $0x11c0] sm:$0xff]
  %v589 = vld [vmem:[%s0 + $0x11c8] sm:$0xff]
  %v590 = vld [vmem:[%s0 + $0x11d0] sm:$0xff]
  %v591 = vld [vmem:[%s0 + $0x11d8] sm:$0xff]
  %v592 = vld [vmem:[%s0 + $0x11e0] sm:$0xff]
  %v593 = vld [vmem:[%s0 + $0x11e8] sm:$0xff]
  %v594 = vld [vmem:[%s0 + $0x11f0] sm:$0xff]
  %v595 = vld [vmem:[%s0 + $0x11f8] sm:$0xff]
  %v596 = vld [vmem:[%s0 + $0x1200] sm:$0xff]
  %v597 = vld [vmem:[%s0 + $0x1208] sm:$0xff]
  %v598 = vld [vmem:[%s0 + $0x1210] sm:$0xff]
  %v599 = vld [vmem:[%s0 + $0x1218] sm:$0xff]
  %v600 = vld [vmem:[%s0 + $0x1220] sm:$0xff]
  %v601 = vld [vmem:[%s0 + $0x1228] sm:$0xff]
  %v602 = vld [vmem:[%s0 + $0x1230] sm:$0xff]
  %v603 = vld [vmem:[%s0 + $0x1238] sm:$0xff]
  %v604 = vld [vmem:[%s0 + $0x1240] sm:$0xff]
  %v605 = vld [vmem:[%s0 + $0x1248] sm:$0xff]
  %v606 = vld [vmem:[%s0 + $0x1250] sm:$0xff]
  %v607 = vld [vmem:[%s0 + $0x1258] sm:$0xff]
  %v608 = vld [vmem:[%s0 + $0x1260] sm:$0xff]
  %v609 = vld [vmem:[%s0 + $0x1268] sm:$0xff]
  %v610 = vld [vmem:[%s0 + $0x1270] sm:$0xff]
  %v611 = vld [vmem:[%s0 + $0x1278] sm:$0xff]
  %v612 = vld [vmem:[%s0 + $0x1280] sm:$0xff]
  %v613 = vld [vmem:[%s0 + $0x1288] sm:$0xff]
  %v614 = vld [vmem:[%s0 + $0x1290] sm:$0xff]
  %v615 = vld [vmem:[%s0 + $0x1298] sm:$0xff]
  %v616 = vld [vmem:[%s0 + $0x12a0] sm:$0xff]
  %v617 = vld [vmem:[%s0 + $0x12a8] sm:$0xff]
  %v618 = vld [vmem:[%s0 + $0x12b0] sm:$0xff]
  %v619 = vld [vmem:[%s0 + $0x12b8] sm:$0xff]
  %v620 = vld [vmem:[%s0 + $0x12c0] sm:$0xff]
  %v621 = vld [vmem:[%s0 + $0x12c8] sm:$0xff]
  %v622 = vld [vmem:[%s0 + $0x12d0] sm:$0xff]
  %v623 = vld [vmem:[%s0 + $0x12d8] sm:$0xff]
  %v624 = vld [vmem:[%s0 + $0x12e0] sm:$0xff]
  %v625 = vld [vmem:[%s0 + $0x12e8] sm:$0xff]
  %v626 = vld [vmem:[%s0 + $0x12f0] sm:$0xff]
  %v627 = vld [vmem:[%s0 + $0x12f8] sm:$0xff]
  %v628 = vld [vmem:[%s0 + $0x1300] sm:$0xff]
  %v629 = vld [vmem:[%s0 + $0x1308] sm:$0xff]
  %v630 = vld [vmem:[%s0 + $0x1310] sm:$0xff]
  %v631 = vld [vmem:[%s0 + $0x1318] sm:$0xff]
  %v632 = vld [vmem:[%s0 + $0x1320] sm:$0xff]
  %v633 = vld [vmem:[%s0 + $0x1328] sm:$0xff]
  %v634 = vld [vmem:[%s0 + $0x1330] sm:$0xff]
  %v635 = vld [vmem:[%s0 + $0x1338] sm:$0xff]
  %v636 = vld [vmem:[%s0 + $0x1340] sm:$0xff]
  %v637 = vld [vmem:[%s0 + $0x1348] sm:$0xff]
  %v638 = vld [vmem:[%s0 + $0x1350] sm:$0xff]
  %v639 = vld [vmem:[%s0 + $0x1358] sm:$0xff]
  %v640 = vld [vmem:[%s0 + $0x1360] sm:$0xff]
  %v641 = vld [vmem:[%s0 + $0x1368] sm:$0xff]
  %v642 = vld [vmem:[%s0 + $0x1370] sm:$0xff]
  %v643 = vld [vmem:[%s0 + $0x1378] sm:$0xff]
  %v644 = vld [vmem:[%s0 + $0x1380] sm:$0xff]
  %v645 = vld [vmem:[%s0 + $0x1388] sm:$0xff]
  %v646 = vld [vmem:[%s0 + $0x1390] sm:$0xff]
  %v647 = vld [vmem:[%s0 + $0x1398] sm:$0xff]
  %v648 = vld [vmem:[%s0 + $0x13a0] sm:$0xff]
  %v649 = vld [vmem:[%s0 + $0x13a8] sm:$0xff]
  %v650 = vld [vmem:[%s0 + $0x13b0] sm:$0xff]
  %v651 = vld [vmem:[%s0 + $0x13b8] sm:$0xff]
  %v652 = vld [vmem:[%s0 + $0x13c0] sm:$0xff]
  %v653 = vld [vmem:[%s0 + $0x13c8] sm:$0xff]
  %v654 = vld [vmem:[%s0 + $0x13d0] sm:$0xff]
  %v655 = vld [vmem:[%s0 + $0x13d8] sm:$0xff]
  %v656 = vld [vmem:[%s0 + $0x13e0] sm:$0xff]
  %v657 = vld [vmem:[%s0 + $0x13e8] sm:$0xff]
  %v658 = vld [vmem:[%s0 + $0x13f0] sm:$0xff]
  %v659 = vld [vmem:[%s0 + $0x13f8] sm:$0xff]
  %v660 = vld [vmem:[%s0 + $0x1400] sm:$0xff]
  %v661 = vld [vmem:[%s0 + $0x1408] sm:$0xff]
  %v662 = vld [vmem:[%s0 + $0x1410] sm:$0xff]
  %v663 = vld [vmem:[%s0 + $0x1418] sm:$0xff]
  %v664 = vld [vmem:[%s0 + $0x1420] sm:$0xff]
  %v665 = vld [vmem:[%s0 + $0x1428] sm:$0xff]
  %v666 = vld [vmem:[%s0 + $0x1430] sm:$0xff]
  %v667 = vld [vmem:[%s0 + $0x1438] sm:$0xff]
  %v668 = vld [vmem:[%s0 + $0x1440] sm:$0xff]
  %v669 = vld [vmem:[%s0 + $0x1448] sm:$0xff]
  %v670 = vld [vmem:[%s0 + $0x1450] sm:$0xff]
  %v671 = vld [vmem:[%s0 + $0x1458] sm:$0xff]
  %v672 = vld [vmem:[%s0 + $0x1460] sm:$0xff]
  %v673 = vld [vmem:[%s0 + $0x1468] sm:$0xff]
  %v674 = vld [vmem:[%s0 + $0x1470] sm:$0xff]
  %v675 = vld [vmem:[%s0 + $0x1478] sm:$0xff]
  %v676 = vld [vmem:[%s0 + $0x1480] sm:$0xff]
  %v677 = vld [vmem:[%s0 + $0x1488] sm:$0xff]
  %v678 = vld [vmem:[%s0 + $0x1490] sm:$0xff]
  %v679 = vld [vmem:[%s0 + $0x1498] sm:$0xff]
  %v680 = vld [vmem:[%s0 + $0x14a0] sm:$0xff]
  %v681 = vld [vmem:[%s0 + $0x14a8] sm:$0xff]
  %v682 = vld [vmem:[%s0 + $0x14b0] sm:$0xff]
  %v683 = vld [vmem:[%s0 + $0x14b8] sm:$0xff]
  %v684 = vld [vmem:[%s0 + $0x14c0] sm:$0xff]
  %v685 = vld [vmem:[%s0 + $0x14c8] sm:$0xff]
  %v686 = vld [vmem:[%s0 + $0x14d0] sm:$0xff]
  %v687 = vld [vmem:[%s0 + $0x14d8] sm:$0xff]
  %v688 = vld [vmem:[%s0 + $0x14e0] sm:$0xff]
  %v689 = vld [vmem:[%s0 + $0x14e8] sm:$0xff]
  %v690 = vld [vmem:[%s0 + $0x14f0] sm:$0xff]
  %v691 = vld [vmem:[%s0 + $0x14f8] sm:$0xff]
  %v692 = vld [vmem:[%s0 + $0x1500] sm:$0xff]
  %v693 = vld [vmem:[%s0 + $0x1508] sm:$0xff]
  %v694 = vld [vmem:[%s0 + $0x1510] sm:$0xff]
  %v695 = vld [vmem:[%s0 + $0x1518] sm:$0xff]
  %v696 = vld [vmem:[%s0 + $0x1520] sm:$0xff]
  %v697 = vld [vmem:[%s0 + $0x1528] sm:$0xff]
  %v698 = vld [vmem:[%s0 + $0x1530] sm:$0xff]
  %v699 = vld [vmem:[%s0 + $0x1538] sm:$0xff]
  %v700 = vld [vmem:[%s0 + $0x1540] sm:$0xff]
  %v701 = vld [vmem:[%s0 + $0x1548] sm:$0xff]
  %v702 = vld [vmem:[%s0 + $0x1550] sm:$0xff]
  %v703 = vld [vmem:[%s0 + $0x1558] sm:$0xff]
  %v704 = vld [vmem:[%s0 + $0x1560] sm:$0xff]
  %v705 = vld [vmem:[%s0 + $0x1568] sm:$0xff]
  %v706 = vld [vmem:[%s0 + $0x1570] sm:$0xff]
  %v707 = vld [vmem:[%s0 + $0x1578] sm:$0xff]
  %v708 = vld [vmem:[%s0 + $0x1580] sm:$0xff]
  %v709 = vld [vmem:[%s0 + $0x1588] sm:$0xff]
  %v710 = vld [vmem:[%s0 + $0x1590] sm:$0xff]
  %v711 = vld [vmem:[%s0 + $0x1598] sm:$0xff]
  %v712 = vld [vmem:[%s0 + $0x15a0] sm:$0xff]
  %v713 = vld [vmem:[%s0 + $0x15a8] sm:$0xff]
  %v714 = vld [vmem:[%s0 + $0x15b0] sm:$0xff]
  %v715 = vld [vmem:[%s0 + $0x15b8] sm:$0xff]
  %v716 = vld [vmem:[%s0 + $0x15c0] sm:$0xff]
  %v717 = vld [vmem:[%s0 + $0x15c8] sm:$0xff]
  %v718 = vld [vmem:[%s0 + $0x15d0] sm:$0xff]
  %v719 = vld [vmem:[%s0 + $0x15d8] sm:$0xff]
  %v720 = vld [vmem:[%s0 + $0x15e0] sm:$0xff]
  %v721 = vld [vmem:[%s0 + $0x15e8] sm:$0xff]
  %v722 = vld [vmem:[%s0 + $0x15f0] sm:$0xff]
  %v723 = vld [vmem:[%s0 + $0x15f8] sm:$0xff]
  %v724 = vld [vmem:[%s0 + $0x1600] sm:$0xff]
  %v725 = vld [vmem:[%s0 + $0x1608] sm:$0xff]
  %v726 = vld [vmem:[%s0 + $0x1610] sm:$0xff]
  %v727 = vld [vmem:[%s0 + $0x1618] sm:$0xff]
  %v728 = vld [vmem:[%s0 + $0x1620] sm:$0xff]
  %v729 = vld [vmem:[%s0 + $0x1628] sm:$0xff]
  %v730 = vld [vmem:[%s0 + $0x1630] sm:$0xff]
  %v731 = vld [vmem:[%s0 + $0x1638] sm:$0xff]
  %v732 = vld [vmem:[%s0 + $0x1640] sm:$0xff]
  %v733 = vld [vmem:[%s0 + $0x1648] sm:$0xff]
  %v734 = vld [vmem:[%s0 + $0x1650] sm:$0xff]
  %v735 = vld [vmem:[%s0 + $0x1658] sm:$0xff]
  %v736 = vld [vmem:[%s0 + $0x1660] sm:$0xff]
  %v737 = vld [vmem:[%s0 + $0x1668] sm:$0xff]
  %v738 = vld [vmem:[%s0 + $0x1670] sm:$0xff]
  %v739 = vld [vmem:[%s0 + $0x1678] sm:$0xff]
  %v740 = vld [vmem:[%s0 + $0x1680] sm:$0xff]
  %v741 = vld [vmem:[%s0 + $0x1688] sm:$0xff]
  %v742 = vld [vmem:[%s0 + $0x1690] sm:$0xff]
  %v743 = vld [vmem:[%s0 + $0x1698] sm:$0xff]
  %v744 = vld [vmem:[%s0 + $0x16a0] sm:$0xff]
  %v745 = vld [vmem:[%s0 + $0x16a8] sm:$0xff]
  %v746 = vld [vmem:[%s0 + $0x16b0] sm:$0xff]
  %v747 = vld [vmem:[%s0 + $0x16b8] sm:$0xff]
  %v748 = vld [vmem:[%s0 + $0x16c0] sm:$0xff]
  %v749 = vld [vmem:[%s0 + $0x16c8] sm:$0xff]
  %v750 = vld [vmem:[%s0 + $0x16d0] sm:$0xff]
  %v751 = vld [vmem:[%s0 + $0x16d8] sm:$0xff]
  %v752 = vld [vmem:[%s0 + $0x16e0] sm:$0xff]
  %v753 = vld [vmem:[%s0 + $0x16e8] sm:$0xff]
  %v754 = vld [vmem:[%s0 + $0x16f0] sm:$0xff]
  %v755 = vld [vmem:[%s0 + $0x16f8] sm:$0xff]
  %v756 = vld [vmem:[%s0 + $0x1700] sm:$0xff]
  %v757 = vld [vmem:[%s0 + $0x1708] sm:$0xff]
  %v758 = vld [vmem:[%s0 + $0x1710] sm:$0xff]
  %v759 = vld [vmem:[%s0 + $0x1718] sm:$0xff]
  %v760 = vld [vmem:[%s0 + $0x1720] sm:$0xff]
  %v761 = vld [vmem:[%s0 + $0x1728] sm:$0xff]
  %v762 = vld [vmem:[%s0 + $0x1730] sm:$0xff]
  %v763 = vld [vmem:[%s0 + $0x1738] sm:$0xff]
  %v764 = vld [vmem:[%s0 + $0x1740] sm:$0x3]
  %v765 = vld [vmem:[%s0 + $0x1748] sm:$0x3]
  %v766 = vld [vmem:[%s0 + $0x1750] sm:$0x3]
  %v767 = vld [vmem:[%s0 + $0x1758] sm:$0x3]
  %v768 = vld [vmem:[%s0 + $0x1760] sm:$0x3]
  %v769 = vld [vmem:[%s0 + $0x1768] sm:$0x3]
  %v770 = vld [vmem:[%s0 + $0x1770] sm:$0x3]
  %v771 = vld [vmem:[%s0 + $0x1778] sm:$0x3]
  %v772 = vld [vmem:[%s0 + $0x1780] sm:$0x3]
  %v773 = vld [vmem:[%s0 + $0x1788] sm:$0x3]
  %v774 = vld [vmem:[%s0 + $0x1790] sm:$0x3]
  %v775 = vld [vmem:[%s0 + $0x1798] sm:$0x3]
  %v776 = vld [vmem:[%s0 + $0x17a0] sm:$0x3]
  %v777 = vld [vmem:[%s0 + $0x17a8] sm:$0x3]
  %v778 = vld [vmem:[%s0 + $0x17b0] sm:$0x3]
  %v779 = vld [vmem:[%s0 + $0x17b8] sm:$0x3]
  %v780 = vld [vmem:[%s0 + $0x17c0] sm:$0x3]
  %v781 = vld [vmem:[%s0 + $0x17c8] sm:$0x3]
  %v782 = vld [vmem:[%s0 + $0x17d0] sm:$0x3]
  %v783 = vld [vmem:[%s0 + $0x17d8] sm:$0x3]
  %v784 = vld [vmem:[%s0 + $0x17e0] sm:$0x3]
  %v785 = vld [vmem:[%s0 + $0x17e8] sm:$0x3]
  %v786 = vld [vmem:[%s0 + $0x17f0] sm:$0x3]
  %v787 = vld [vmem:[%s0 + $0x17f8] sm:$0x3]
  %vm788 = vcmask 998400
  %v790 = vsel %vm788, %v15, 0
  %v793 = vsel %vm788, %v17, 0
  %v796 = vsel %vm788, %v19, 0
  %vm798 = vcmask 1041408
  %v800 = vsel %vm798, %v764, 0
  %v803 = vsel %vm798, %v765, 0
  %v806 = vsel %vm798, %v766, 0
  %v809 = vsel %vm798, %v767, 0
  %v812 = vsel %vm798, %v768, 0
  %v815 = vsel %vm798, %v769, 0
  %v818 = vsel %vm798, %v770, 0
  %v821 = vsel %vm798, %v771, 0
  %v824 = vsel %vm798, %v772, 0
  %v827 = vsel %vm798, %v773, 0
  %v830 = vsel %vm798, %v774, 0
  %v833 = vsel %vm798, %v775, 0
  %v836 = vsel %vm798, %v776, 0
  %v839 = vsel %vm798, %v777, 0
  %v842 = vsel %vm798, %v778, 0
  %v845 = vsel %vm798, %v779, 0
  %v848 = vsel %vm798, %v780, 0
  %v851 = vsel %vm798, %v781, 0
  %v854 = vsel %vm798, %v782, 0
  %v857 = vsel %vm798, %v783, 0
  %v860 = vsel %vm798, %v784, 0
  %v863 = vsel %vm798, %v785, 0
  %v866 = vsel %vm798, %v786, 0
  %v869 = vsel %vm798, %v787, 0
  %871 = vmatpush.msra.mxu0 %v380
  %872 = vmatpush.msra.mxu0 %v356
  %873 = vmatpush.msra.mxu0 %v332
  %874 = vmatpush.msra.mxu0 %v308
  %875 = vmatpush.msra.mxu0 %v284
  %876 = vmatpush.msra.mxu0 %v260
  %877 = vmatpush.msra.mxu0 %v236
  %878 = vmatpush.msra.mxu0 %v212
  %879 = vmatpush.msra.mxu0 %v188
  %880 = vmatpush.msra.mxu0 %v164
  %881 = vmatpush.msra.mxu0 %v140
  %882 = vmatpush.msra.mxu0 %v116
  %883 = vmatpush.msra.mxu0 %v92
  %884 = vmatpush.msra.mxu0 %v68
  %885 = vmatpush.msra.mxu0 %v44
  %886 = vmatpush.msra.mxu0 %v20
  %887 = vmatmul.f32.gmra.mxu0 %v14
  %v888 = vpop.f32.mrf.mxu0
  %v889 = vadd.f32 0.0, %v888
  %890 = vmatmul.f32.gmra.mxu0 %v16
  %v891 = vpop.f32.mrf.mxu0
  %v892 = vadd.f32 0.0, %v891
  %893 = vmatmul.f32.gmra.mxu0 %v18
  %v894 = vpop.f32.mrf.mxu0
  %v895 = vadd.f32 0.0, %v894
  %896 = vdwg.mxu0
  %897 = vmatpush.msra.mxu0 %v800
  %898 = vmatpush.msra.mxu0 %v740
  %899 = vmatpush.msra.mxu0 %v716
  %900 = vmatpush.msra.mxu0 %v692
  %901 = vmatpush.msra.mxu0 %v668
  %902 = vmatpush.msra.mxu0 %v644
  %903 = vmatpush.msra.mxu0 %v620
  %904 = vmatpush.msra.mxu0 %v596
  %905 = vmatpush.msra.mxu0 %v572
  %906 = vmatpush.msra.mxu0 %v548
  %907 = vmatpush.msra.mxu0 %v524
  %908 = vmatpush.msra.mxu0 %v500
  %909 = vmatpush.msra.mxu0 %v476
  %910 = vmatpush.msra.mxu0 %v452
  %911 = vmatpush.msra.mxu0 %v428
  %912 = vmatpush.msra.mxu0 %v404
  %913 = vmatmul.f32.gmra.mxu0 %v790
  %v914 = vpop.f32.mrf.mxu0
  %v915 = vadd.f32 %v889, %v914
  %916 = vmatmul.f32.gmra.mxu0 %v793
  %v917 = vpop.f32.mrf.mxu0
  %v918 = vadd.f32 %v892, %v917
  %919 = vmatmul.f32.gmra.mxu0 %v796
  %v920 = vpop.f32.mrf.mxu0
  %v921 = vadd.f32 %v895, %v920
  %922 = vdwg.mxu0
  %923 = vmatpush.msra.mxu0 %v381
  %924 = vmatpush.msra.mxu0 %v357
  %925 = vmatpush.msra.mxu0 %v333
  %926 = vmatpush.msra.mxu0 %v309
  %927 = vmatpush.msra.mxu0 %v285
  %928 = vmatpush.msra.mxu0 %v261
  %929 = vmatpush.msra.mxu0 %v237
  %930 = vmatpush.msra.mxu0 %v213
  %931 = vmatpush.msra.mxu0 %v189
  %932 = vmatpush.msra.mxu0 %v165
  %933 = vmatpush.msra.mxu0 %v141
  %934 = vmatpush.msra.mxu0 %v117
  %935 = vmatpush.msra.mxu0 %v93
  %936 = vmatpush.msra.mxu0 %v69
  %937 = vmatpush.msra.mxu0 %v45
  %938 = vmatpush.msra.mxu0 %v21
  %939 = vmatmul.f32.gmra.mxu0 %v14
  %v940 = vpop.f32.mrf.mxu0
  %v941 = vadd.f32 0.0, %v940
  %942 = vmatmul.f32.gmra.mxu0 %v16
  %v943 = vpop.f32.mrf.mxu0
  %v944 = vadd.f32 0.0, %v943
  %945 = vmatmul.f32.gmra.mxu0 %v18
  %v946 = vpop.f32.mrf.mxu0
  %v947 = vadd.f32 0.0, %v946
  %948 = vdwg.mxu0
  %949 = vmatpush.msra.mxu0 %v803
  %950 = vmatpush.msra.mxu0 %v741
  %951 = vmatpush.msra.mxu0 %v717
  %952 = vmatpush.msra.mxu0 %v693
  %953 = vmatpush.msra.mxu0 %v669
  %954 = vmatpush.msra.mxu0 %v645
  %955 = vmatpush.msra.mxu0 %v621
  %956 = vmatpush.msra.mxu0 %v597
  %957 = vmatpush.msra.mxu0 %v573
  %958 = vmatpush.msra.mxu0 %v549
  %959 = vmatpush.msra.mxu0 %v525
  %960 = vmatpush.msra.mxu0 %v501
  %961 = vmatpush.msra.mxu0 %v477
  %962 = vmatpush.msra.mxu0 %v453
  %963 = vmatpush.msra.mxu0 %v429
  %964 = vmatpush.msra.mxu0 %v405
  %965 = vmatmul.f32.gmra.mxu0 %v790
  %v966 = vpop.f32.mrf.mxu0
  %v967 = vadd.f32 %v941, %v966
  %968 = vmatmul.f32.gmra.mxu0 %v793
  %v969 = vpop.f32.mrf.mxu0
  %v970 = vadd.f32 %v944, %v969
  %971 = vmatmul.f32.gmra.mxu0 %v796
  %v972 = vpop.f32.mrf.mxu0
  %v973 = vadd.f32 %v947, %v972
  %974 = vdwg.mxu0
  %975 = vmatpush.msra.mxu0 %v382
  %976 = vmatpush.msra.mxu0 %v358
  %977 = vmatpush.msra.mxu0 %v334
  %978 = vmatpush.msra.mxu0 %v310
  %979 = vmatpush.msra.mxu0 %v286
  %980 = vmatpush.msra.mxu0 %v262
  %981 = vmatpush.msra.mxu0 %v238
  %982 = vmatpush.msra.mxu0 %v214
  %983 = vmatpush.msra.mxu0 %v190
  %984 = vmatpush.msra.mxu0 %v166
  %985 = vmatpush.msra.mxu0 %v142
  %986 = vmatpush.msra.mxu0 %v118
  %987 = vmatpush.msra.mxu0 %v94
  %988 = vmatpush.msra.mxu0 %v70
  %989 = vmatpush.msra.mxu0 %v46
  %990 = vmatpush.msra.mxu0 %v22
  %991 = vmatmul.f32.gmra.mxu0 %v14
  %v992 = vpop.f32.mrf.mxu0
  %v993 = vadd.f32 0.0, %v992
  %994 = vmatmul.f32.gmra.mxu0 %v16
  %v995 = vpop.f32.mrf.mxu0
  %v996 = vadd.f32 0.0, %v995
  %997 = vmatmul.f32.gmra.mxu0 %v18
  %v998 = vpop.f32.mrf.mxu0
  %v999 = vadd.f32 0.0, %v998
  %1000 = vdwg.mxu0
  %1001 = vmatpush.msra.mxu0 %v806
  %1002 = vmatpush.msra.mxu0 %v742
  %1003 = vmatpush.msra.mxu0 %v718
  %1004 = vmatpush.msra.mxu0 %v694
  %1005 = vmatpush.msra.mxu0 %v670
  %1006 = vmatpush.msra.mxu0 %v646
  %1007 = vmatpush.msra.mxu0 %v622
  %1008 = vmatpush.msra.mxu0 %v598
  %1009 = vmatpush.msra.mxu0 %v574
  %1010 = vmatpush.msra.mxu0 %v550
  %1011 = vmatpush.msra.mxu0 %v526
  %1012 = vmatpush.msra.mxu0 %v502
  %1013 = vmatpush.msra.mxu0 %v478
  %1014 = vmatpush.msra.mxu0 %v454
  %1015 = vmatpush.msra.mxu0 %v430
  %1016 = vmatpush.msra.mxu0 %v406
  %1017 = vmatmul.f32.gmra.mxu0 %v790
  %v1018 = vpop.f32.mrf.mxu0
  %v1019 = vadd.f32 %v993, %v1018
  %1020 = vmatmul.f32.gmra.mxu0 %v793
  %v1021 = vpop.f32.mrf.mxu0
  %v1022 = vadd.f32 %v996, %v1021
  %1023 = vmatmul.f32.gmra.mxu0 %v796
  %v1024 = vpop.f32.mrf.mxu0
  %v1025 = vadd.f32 %v999, %v1024
  %1026 = vdwg.mxu0
  %1027 = vmatpush.msra.mxu0 %v383
  %1028 = vmatpush.msra.mxu0 %v359
  %1029 = vmatpush.msra.mxu0 %v335
  %1030 = vmatpush.msra.mxu0 %v311
  %1031 = vmatpush.msra.mxu0 %v287
  %1032 = vmatpush.msra.mxu0 %v263
  %1033 = vmatpush.msra.mxu0 %v239
  %1034 = vmatpush.msra.mxu0 %v215
  %1035 = vmatpush.msra.mxu0 %v191
  %1036 = vmatpush.msra.mxu0 %v167
  %1037 = vmatpush.msra.mxu0 %v143
  %1038 = vmatpush.msra.mxu0 %v119
  %1039 = vmatpush.msra.mxu0 %v95
  %1040 = vmatpush.msra.mxu0 %v71
  %1041 = vmatpush.msra.mxu0 %v47
  %1042 = vmatpush.msra.mxu0 %v23
  %1043 = vmatmul.f32.gmra.mxu0 %v14
  %v1044 = vpop.f32.mrf.mxu0
  %v1045 = vadd.f32 0.0, %v1044
  %1046 = vmatmul.f32.gmra.mxu0 %v16
  %v1047 = vpop.f32.mrf.mxu0
  %v1048 = vadd.f32 0.0, %v1047
  %1049 = vmatmul.f32.gmra.mxu0 %v18
  %v1050 = vpop.f32.mrf.mxu0
  %v1051 = vadd.f32 0.0, %v1050
  %1052 = vdwg.mxu0
  %1053 = vmatpush.msra.mxu0 %v809
  %1054 = vmatpush.msra.mxu0 %v743
  %1055 = vmatpush.msra.mxu0 %v719
  %1056 = vmatpush.msra.mxu0 %v695
  %1057 = vmatpush.msra.mxu0 %v671
  %1058 = vmatpush.msra.mxu0 %v647
  %1059 = vmatpush.msra.mxu0 %v623
  %1060 = vmatpush.msra.mxu0 %v599
  %1061 = vmatpush.msra.mxu0 %v575
  %1062 = vmatpush.msra.mxu0 %v551
  %1063 = vmatpush.msra.mxu0 %v527
  %1064 = vmatpush.msra.mxu0 %v503
  %1065 = vmatpush.msra.mxu0 %v479
  %1066 = vmatpush.msra.mxu0 %v455
  %1067 = vmatpush.msra.mxu0 %v431
  %1068 = vmatpush.msra.mxu0 %v407
  %1069 = vmatmul.f32.gmra.mxu0 %v790
  %v1070 = vpop.f32.mrf.mxu0
  %v1071 = vadd.f32 %v1045, %v1070
  %1072 = vmatmul.f32.gmra.mxu0 %v793
  %v1073 = vpop.f32.mrf.mxu0
  %v1074 = vadd.f32 %v1048, %v1073
  %1075 = vmatmul.f32.gmra.mxu0 %v796
  %v1076 = vpop.f32.mrf.mxu0
  %v1077 = vadd.f32 %v1051, %v1076
  %1078 = vdwg.mxu0
  %1079 = vmatpush.msra.mxu0 %v384
  %1080 = vmatpush.msra.mxu0 %v360
  %1081 = vmatpush.msra.mxu0 %v336
  %1082 = vmatpush.msra.mxu0 %v312
  %1083 = vmatpush.msra.mxu0 %v288
  %1084 = vmatpush.msra.mxu0 %v264
  %1085 = vmatpush.msra.mxu0 %v240
  %1086 = vmatpush.msra.mxu0 %v216
  %1087 = vmatpush.msra.mxu0 %v192
  %1088 = vmatpush.msra.mxu0 %v168
  %1089 = vmatpush.msra.mxu0 %v144
  %1090 = vmatpush.msra.mxu0 %v120
  %1091 = vmatpush.msra.mxu0 %v96
  %1092 = vmatpush.msra.mxu0 %v72
  %1093 = vmatpush.msra.mxu0 %v48
  %1094 = vmatpush.msra.mxu0 %v24
  %1095 = vmatmul.f32.gmra.mxu0 %v14
  %v1096 = vpop.f32.mrf.mxu0
  %v1097 = vadd.f32 0.0, %v1096
  %1098 = vmatmul.f32.gmra.mxu0 %v16
  %v1099 = vpop.f32.mrf.mxu0
  %v1100 = vadd.f32 0.0, %v1099
  %1101 = vmatmul.f32.gmra.mxu0 %v18
  %v1102 = vpop.f32.mrf.mxu0
  %v1103 = vadd.f32 0.0, %v1102
  %1104 = vdwg.mxu0
  %1105 = vmatpush.msra.mxu0 %v812
  %1106 = vmatpush.msra.mxu0 %v744
  %1107 = vmatpush.msra.mxu0 %v720
  %1108 = vmatpush.msra.mxu0 %v696
  %1109 = vmatpush.msra.mxu0 %v672
  %1110 = vmatpush.msra.mxu0 %v648
  %1111 = vmatpush.msra.mxu0 %v624
  %1112 = vmatpush.msra.mxu0 %v600
  %1113 = vmatpush.msra.mxu0 %v576
  %1114 = vmatpush.msra.mxu0 %v552
  %1115 = vmatpush.msra.mxu0 %v528
  %1116 = vmatpush.msra.mxu0 %v504
  %1117 = vmatpush.msra.mxu0 %v480
  %1118 = vmatpush.msra.mxu0 %v456
  %1119 = vmatpush.msra.mxu0 %v432
  %1120 = vmatpush.msra.mxu0 %v408
  %1121 = vmatmul.f32.gmra.mxu0 %v790
  %v1122 = vpop.f32.mrf.mxu0
  %v1123 = vadd.f32 %v1097, %v1122
  %1124 = vmatmul.f32.gmra.mxu0 %v793
  %v1125 = vpop.f32.mrf.mxu0
  %v1126 = vadd.f32 %v1100, %v1125
  %1127 = vmatmul.f32.gmra.mxu0 %v796
  %v1128 = vpop.f32.mrf.mxu0
  %v1129 = vadd.f32 %v1103, %v1128
  %1130 = vdwg.mxu0
  %1131 = vmatpush.msra.mxu0 %v385
  %1132 = vmatpush.msra.mxu0 %v361
  %1133 = vmatpush.msra.mxu0 %v337
  %1134 = vmatpush.msra.mxu0 %v313
  %1135 = vmatpush.msra.mxu0 %v289
  %1136 = vmatpush.msra.mxu0 %v265
  %1137 = vmatpush.msra.mxu0 %v241
  %1138 = vmatpush.msra.mxu0 %v217
  %1139 = vmatpush.msra.mxu0 %v193
  %1140 = vmatpush.msra.mxu0 %v169
  %1141 = vmatpush.msra.mxu0 %v145
  %1142 = vmatpush.msra.mxu0 %v121
  %1143 = vmatpush.msra.mxu0 %v97
  %1144 = vmatpush.msra.mxu0 %v73
  %1145 = vmatpush.msra.mxu0 %v49
  %1146 = vmatpush.msra.mxu0 %v25
  %1147 = vmatmul.f32.gmra.mxu0 %v14
  %v1148 = vpop.f32.mrf.mxu0
  %v1149 = vadd.f32 0.0, %v1148
  %1150 = vmatmul.f32.gmra.mxu0 %v16
  %v1151 = vpop.f32.mrf.mxu0
  %v1152 = vadd.f32 0.0, %v1151
  %1153 = vmatmul.f32.gmra.mxu0 %v18
  %v1154 = vpop.f32.mrf.mxu0
  %v1155 = vadd.f32 0.0, %v1154
  %1156 = vdwg.mxu0
  %1157 = vmatpush.msra.mxu0 %v815
  %1158 = vmatpush.msra.mxu0 %v745
  %1159 = vmatpush.msra.mxu0 %v721
  %1160 = vmatpush.msra.mxu0 %v697
  %1161 = vmatpush.msra.mxu0 %v673
  %1162 = vmatpush.msra.mxu0 %v649
  %1163 = vmatpush.msra.mxu0 %v625
  %1164 = vmatpush.msra.mxu0 %v601
  %1165 = vmatpush.msra.mxu0 %v577
  %1166 = vmatpush.msra.mxu0 %v553
  %1167 = vmatpush.msra.mxu0 %v529
  %1168 = vmatpush.msra.mxu0 %v505
  %1169 = vmatpush.msra.mxu0 %v481
  %1170 = vmatpush.msra.mxu0 %v457
  %1171 = vmatpush.msra.mxu0 %v433
  %1172 = vmatpush.msra.mxu0 %v409
  %1173 = vmatmul.f32.gmra.mxu0 %v790
  %v1174 = vpop.f32.mrf.mxu0
  %v1175 = vadd.f32 %v1149, %v1174
  %1176 = vmatmul.f32.gmra.mxu0 %v793
  %v1177 = vpop.f32.mrf.mxu0
  %v1178 = vadd.f32 %v1152, %v1177
  %1179 = vmatmul.f32.gmra.mxu0 %v796
  %v1180 = vpop.f32.mrf.mxu0
  %v1181 = vadd.f32 %v1155, %v1180
  %1182 = vdwg.mxu0
  %1183 = vmatpush.msra.mxu0 %v386
  %1184 = vmatpush.msra.mxu0 %v362
  %1185 = vmatpush.msra.mxu0 %v338
  %1186 = vmatpush.msra.mxu0 %v314
  %1187 = vmatpush.msra.mxu0 %v290
  %1188 = vmatpush.msra.mxu0 %v266
  %1189 = vmatpush.msra.mxu0 %v242
  %1190 = vmatpush.msra.mxu0 %v218
  %1191 = vmatpush.msra.mxu0 %v194
  %1192 = vmatpush.msra.mxu0 %v170
  %1193 = vmatpush.msra.mxu0 %v146
  %1194 = vmatpush.msra.mxu0 %v122
  %1195 = vmatpush.msra.mxu0 %v98
  %1196 = vmatpush.msra.mxu0 %v74
  %1197 = vmatpush.msra.mxu0 %v50
  %1198 = vmatpush.msra.mxu0 %v26
  %1199 = vmatmul.f32.gmra.mxu0 %v14
  %v1200 = vpop.f32.mrf.mxu0
  %v1201 = vadd.f32 0.0, %v1200
  %1202 = vmatmul.f32.gmra.mxu0 %v16
  %v1203 = vpop.f32.mrf.mxu0
  %v1204 = vadd.f32 0.0, %v1203
  %1205 = vmatmul.f32.gmra.mxu0 %v18
  %v1206 = vpop.f32.mrf.mxu0
  %v1207 = vadd.f32 0.0, %v1206
  %1208 = vdwg.mxu0
  %1209 = vmatpush.msra.mxu0 %v818
  %1210 = vmatpush.msra.mxu0 %v746
  %1211 = vmatpush.msra.mxu0 %v722
  %1212 = vmatpush.msra.mxu0 %v698
  %1213 = vmatpush.msra.mxu0 %v674
  %1214 = vmatpush.msra.mxu0 %v650
  %1215 = vmatpush.msra.mxu0 %v626
  %1216 = vmatpush.msra.mxu0 %v602
  %1217 = vmatpush.msra.mxu0 %v578
  %1218 = vmatpush.msra.mxu0 %v554
  %1219 = vmatpush.msra.mxu0 %v530
  %1220 = vmatpush.msra.mxu0 %v506
  %1221 = vmatpush.msra.mxu0 %v482
  %1222 = vmatpush.msra.mxu0 %v458
  %1223 = vmatpush.msra.mxu0 %v434
  %1224 = vmatpush.msra.mxu0 %v410
  %1225 = vmatmul.f32.gmra.mxu0 %v790
  %v1226 = vpop.f32.mrf.mxu0
  %v1227 = vadd.f32 %v1201, %v1226
  %1228 = vmatmul.f32.gmra.mxu0 %v793
  %v1229 = vpop.f32.mrf.mxu0
  %v1230 = vadd.f32 %v1204, %v1229
  %1231 = vmatmul.f32.gmra.mxu0 %v796
  %v1232 = vpop.f32.mrf.mxu0
  %v1233 = vadd.f32 %v1207, %v1232
  %1234 = vdwg.mxu0
  %1235 = vmatpush.msra.mxu0 %v387
  %1236 = vmatpush.msra.mxu0 %v363
  %1237 = vmatpush.msra.mxu0 %v339
  %1238 = vmatpush.msra.mxu0 %v315
  %1239 = vmatpush.msra.mxu0 %v291
  %1240 = vmatpush.msra.mxu0 %v267
  %1241 = vmatpush.msra.mxu0 %v243
  %1242 = vmatpush.msra.mxu0 %v219
  %1243 = vmatpush.msra.mxu0 %v195
  %1244 = vmatpush.msra.mxu0 %v171
  %1245 = vmatpush.msra.mxu0 %v147
  %1246 = vmatpush.msra.mxu0 %v123
  %1247 = vmatpush.msra.mxu0 %v99
  %1248 = vmatpush.msra.mxu0 %v75
  %1249 = vmatpush.msra.mxu0 %v51
  %1250 = vmatpush.msra.mxu0 %v27
  %1251 = vmatmul.f32.gmra.mxu0 %v14
  %v1252 = vpop.f32.mrf.mxu0
  %v1253 = vadd.f32 0.0, %v1252
  %1254 = vmatmul.f32.gmra.mxu0 %v16
  %v1255 = vpop.f32.mrf.mxu0
  %v1256 = vadd.f32 0.0, %v1255
  %1257 = vmatmul.f32.gmra.mxu0 %v18
  %v1258 = vpop.f32.mrf.mxu0
  %v1259 = vadd.f32 0.0, %v1258
  %1260 = vdwg.mxu0
  %1261 = vmatpush.msra.mxu0 %v821
  %1262 = vmatpush.msra.mxu0 %v747
  %1263 = vmatpush.msra.mxu0 %v723
  %1264 = vmatpush.msra.mxu0 %v699
  %1265 = vmatpush.msra.mxu0 %v675
  %1266 = vmatpush.msra.mxu0 %v651
  %1267 = vmatpush.msra.mxu0 %v627
  %1268 = vmatpush.msra.mxu0 %v603
  %1269 = vmatpush.msra.mxu0 %v579
  %1270 = vmatpush.msra.mxu0 %v555
  %1271 = vmatpush.msra.mxu0 %v531
  %1272 = vmatpush.msra.mxu0 %v507
  %1273 = vmatpush.msra.mxu0 %v483
  %1274 = vmatpush.msra.mxu0 %v459
  %1275 = vmatpush.msra.mxu0 %v435
  %1276 = vmatpush.msra.mxu0 %v411
  %1277 = vmatmul.f32.gmra.mxu0 %v790
  %v1278 = vpop.f32.mrf.mxu0
  %v1279 = vadd.f32 %v1253, %v1278
  %1280 = vmatmul.f32.gmra.mxu0 %v793
  %v1281 = vpop.f32.mrf.mxu0
  %v1282 = vadd.f32 %v1256, %v1281
  %1283 = vmatmul.f32.gmra.mxu0 %v796
  %v1284 = vpop.f32.mrf.mxu0
  %v1285 = vadd.f32 %v1259, %v1284
  %1286 = vdwg.mxu0
  %1287 = vmatpush.msra.mxu0 %v388
  %1288 = vmatpush.msra.mxu0 %v364
  %1289 = vmatpush.msra.mxu0 %v340
  %1290 = vmatpush.msra.mxu0 %v316
  %1291 = vmatpush.msra.mxu0 %v292
  %1292 = vmatpush.msra.mxu0 %v268
  %1293 = vmatpush.msra.mxu0 %v244
  %1294 = vmatpush.msra.mxu0 %v220
  %1295 = vmatpush.msra.mxu0 %v196
  %1296 = vmatpush.msra.mxu0 %v172
  %1297 = vmatpush.msra.mxu0 %v148
  %1298 = vmatpush.msra.mxu0 %v124
  %1299 = vmatpush.msra.mxu0 %v100
  %1300 = vmatpush.msra.mxu0 %v76
  %1301 = vmatpush.msra.mxu0 %v52
  %1302 = vmatpush.msra.mxu0 %v28
  %1303 = vmatmul.f32.gmra.mxu0 %v14
  %v1304 = vpop.f32.mrf.mxu0
  %v1305 = vadd.f32 0.0, %v1304
  %1306 = vmatmul.f32.gmra.mxu0 %v16
  %v1307 = vpop.f32.mrf.mxu0
  %v1308 = vadd.f32 0.0, %v1307
  %1309 = vmatmul.f32.gmra.mxu0 %v18
  %v1310 = vpop.f32.mrf.mxu0
  %v1311 = vadd.f32 0.0, %v1310
  %1312 = vdwg.mxu0
  %1313 = vmatpush.msra.mxu0 %v824
  %1314 = vmatpush.msra.mxu0 %v748
  %1315 = vmatpush.msra.mxu0 %v724
  %1316 = vmatpush.msra.mxu0 %v700
  %1317 = vmatpush.msra.mxu0 %v676
  %1318 = vmatpush.msra.mxu0 %v652
  %1319 = vmatpush.msra.mxu0 %v628
  %1320 = vmatpush.msra.mxu0 %v604
  %1321 = vmatpush.msra.mxu0 %v580
  %1322 = vmatpush.msra.mxu0 %v556
  %1323 = vmatpush.msra.mxu0 %v532
  %1324 = vmatpush.msra.mxu0 %v508
  %1325 = vmatpush.msra.mxu0 %v484
  %1326 = vmatpush.msra.mxu0 %v460
  %1327 = vmatpush.msra.mxu0 %v436
  %1328 = vmatpush.msra.mxu0 %v412
  %1329 = vmatmul.f32.gmra.mxu0 %v790
  %v1330 = vpop.f32.mrf.mxu0
  %v1331 = vadd.f32 %v1305, %v1330
  %1332 = vmatmul.f32.gmra.mxu0 %v793
  %v1333 = vpop.f32.mrf.mxu0
  %v1334 = vadd.f32 %v1308, %v1333
  %1335 = vmatmul.f32.gmra.mxu0 %v796
  %v1336 = vpop.f32.mrf.mxu0
  %v1337 = vadd.f32 %v1311, %v1336
  %1338 = vdwg.mxu0
  %1339 = vmatpush.msra.mxu0 %v389
  %1340 = vmatpush.msra.mxu0 %v365
  %1341 = vmatpush.msra.mxu0 %v341
  %1342 = vmatpush.msra.mxu0 %v317
  %1343 = vmatpush.msra.mxu0 %v293
  %1344 = vmatpush.msra.mxu0 %v269
  %1345 = vmatpush.msra.mxu0 %v245
  %1346 = vmatpush.msra.mxu0 %v221
  %1347 = vmatpush.msra.mxu0 %v197
  %1348 = vmatpush.msra.mxu0 %v173
  %1349 = vmatpush.msra.mxu0 %v149
  %1350 = vmatpush.msra.mxu0 %v125
  %1351 = vmatpush.msra.mxu0 %v101
  %1352 = vmatpush.msra.mxu0 %v77
  %1353 = vmatpush.msra.mxu0 %v53
  %1354 = vmatpush.msra.mxu0 %v29
  %1355 = vmatmul.f32.gmra.mxu0 %v14
  %v1356 = vpop.f32.mrf.mxu0
  %v1357 = vadd.f32 0.0, %v1356
  %1358 = vmatmul.f32.gmra.mxu0 %v16
  %v1359 = vpop.f32.mrf.mxu0
  %v1360 = vadd.f32 0.0, %v1359
  %1361 = vmatmul.f32.gmra.mxu0 %v18
  %v1362 = vpop.f32.mrf.mxu0
  %v1363 = vadd.f32 0.0, %v1362
  %1364 = vdwg.mxu0
  %1365 = vmatpush.msra.mxu0 %v827
  %1366 = vmatpush.msra.mxu0 %v749
  %1367 = vmatpush.msra.mxu0 %v725
  %1368 = vmatpush.msra.mxu0 %v701
  %1369 = vmatpush.msra.mxu0 %v677
  %1370 = vmatpush.msra.mxu0 %v653
  %1371 = vmatpush.msra.mxu0 %v629
  %1372 = vmatpush.msra.mxu0 %v605
  %1373 = vmatpush.msra.mxu0 %v581
  %1374 = vmatpush.msra.mxu0 %v557
  %1375 = vmatpush.msra.mxu0 %v533
  %1376 = vmatpush.msra.mxu0 %v509
  %1377 = vmatpush.msra.mxu0 %v485
  %1378 = vmatpush.msra.mxu0 %v461
  %1379 = vmatpush.msra.mxu0 %v437
  %1380 = vmatpush.msra.mxu0 %v413
  %1381 = vmatmul.f32.gmra.mxu0 %v790
  %v1382 = vpop.f32.mrf.mxu0
  %v1383 = vadd.f32 %v1357, %v1382
  %1384 = vmatmul.f32.gmra.mxu0 %v793
  %v1385 = vpop.f32.mrf.mxu0
  %v1386 = vadd.f32 %v1360, %v1385
  %1387 = vmatmul.f32.gmra.mxu0 %v796
  %v1388 = vpop.f32.mrf.mxu0
  %v1389 = vadd.f32 %v1363, %v1388
  %1390 = vdwg.mxu0
  %1391 = vmatpush.msra.mxu0 %v390
  %1392 = vmatpush.msra.mxu0 %v366
  %1393 = vmatpush.msra.mxu0 %v342
  %1394 = vmatpush.msra.mxu0 %v318
  %1395 = vmatpush.msra.mxu0 %v294
  %1396 = vmatpush.msra.mxu0 %v270
  %1397 = vmatpush.msra.mxu0 %v246
  %1398 = vmatpush.msra.mxu0 %v222
  %1399 = vmatpush.msra.mxu0 %v198
  %1400 = vmatpush.msra.mxu0 %v174
  %1401 = vmatpush.msra.mxu0 %v150
  %1402 = vmatpush.msra.mxu0 %v126
  %1403 = vmatpush.msra.mxu0 %v102
  %1404 = vmatpush.msra.mxu0 %v78
  %1405 = vmatpush.msra.mxu0 %v54
  %1406 = vmatpush.msra.mxu0 %v30
  %1407 = vmatmul.f32.gmra.mxu0 %v14
  %v1408 = vpop.f32.mrf.mxu0
  %v1409 = vadd.f32 0.0, %v1408
  %1410 = vmatmul.f32.gmra.mxu0 %v16
  %v1411 = vpop.f32.mrf.mxu0
  %v1412 = vadd.f32 0.0, %v1411
  %1413 = vmatmul.f32.gmra.mxu0 %v18
  %v1414 = vpop.f32.mrf.mxu0
  %v1415 = vadd.f32 0.0, %v1414
  %1416 = vdwg.mxu0
  %1417 = vmatpush.msra.mxu0 %v830
  %1418 = vmatpush.msra.mxu0 %v750
  %1419 = vmatpush.msra.mxu0 %v726
  %1420 = vmatpush.msra.mxu0 %v702
  %1421 = vmatpush.msra.mxu0 %v678
  %1422 = vmatpush.msra.mxu0 %v654
  %1423 = vmatpush.msra.mxu0 %v630
  %1424 = vmatpush.msra.mxu0 %v606
  %1425 = vmatpush.msra.mxu0 %v582
  %1426 = vmatpush.msra.mxu0 %v558
  %1427 = vmatpush.msra.mxu0 %v534
  %1428 = vmatpush.msra.mxu0 %v510
  %1429 = vmatpush.msra.mxu0 %v486
  %1430 = vmatpush.msra.mxu0 %v462
  %1431 = vmatpush.msra.mxu0 %v438
  %1432 = vmatpush.msra.mxu0 %v414
  %1433 = vmatmul.f32.gmra.mxu0 %v790
  %v1434 = vpop.f32.mrf.mxu0
  %v1435 = vadd.f32 %v1409, %v1434
  %1436 = vmatmul.f32.gmra.mxu0 %v793
  %v1437 = vpop.f32.mrf.mxu0
  %v1438 = vadd.f32 %v1412, %v1437
  %1439 = vmatmul.f32.gmra.mxu0 %v796
  %v1440 = vpop.f32.mrf.mxu0
  %v1441 = vadd.f32 %v1415, %v1440
  %1442 = vdwg.mxu0
  %1443 = vmatpush.msra.mxu0 %v391
  %1444 = vmatpush.msra.mxu0 %v367
  %1445 = vmatpush.msra.mxu0 %v343
  %1446 = vmatpush.msra.mxu0 %v319
  %1447 = vmatpush.msra.mxu0 %v295
  %1448 = vmatpush.msra.mxu0 %v271
  %1449 = vmatpush.msra.mxu0 %v247
  %1450 = vmatpush.msra.mxu0 %v223
  %1451 = vmatpush.msra.mxu0 %v199
  %1452 = vmatpush.msra.mxu0 %v175
  %1453 = vmatpush.msra.mxu0 %v151
  %1454 = vmatpush.msra.mxu0 %v127
  %1455 = vmatpush.msra.mxu0 %v103
  %1456 = vmatpush.msra.mxu0 %v79
  %1457 = vmatpush.msra.mxu0 %v55
  %1458 = vmatpush.msra.mxu0 %v31
  %1459 = vmatmul.f32.gmra.mxu0 %v14
  %v1460 = vpop.f32.mrf.mxu0
  %v1461 = vadd.f32 0.0, %v1460
  %1462 = vmatmul.f32.gmra.mxu0 %v16
  %v1463 = vpop.f32.mrf.mxu0
  %v1464 = vadd.f32 0.0, %v1463
  %1465 = vmatmul.f32.gmra.mxu0 %v18
  %v1466 = vpop.f32.mrf.mxu0
  %v1467 = vadd.f32 0.0, %v1466
  %1468 = vdwg.mxu0
  %1469 = vmatpush.msra.mxu0 %v833
  %1470 = vmatpush.msra.mxu0 %v751
  %1471 = vmatpush.msra.mxu0 %v727
  %1472 = vmatpush.msra.mxu0 %v703
  %1473 = vmatpush.msra.mxu0 %v679
  %1474 = vmatpush.msra.mxu0 %v655
  %1475 = vmatpush.msra.mxu0 %v631
  %1476 = vmatpush.msra.mxu0 %v607
  %1477 = vmatpush.msra.mxu0 %v583
  %1478 = vmatpush.msra.mxu0 %v559
  %1479 = vmatpush.msra.mxu0 %v535
  %1480 = vmatpush.msra.mxu0 %v511
  %1481 = vmatpush.msra.mxu0 %v487
  %1482 = vmatpush.msra.mxu0 %v463
  %1483 = vmatpush.msra.mxu0 %v439
  %1484 = vmatpush.msra.mxu0 %v415
  %1485 = vmatmul.f32.gmra.mxu0 %v790
  %v1486 = vpop.f32.mrf.mxu0
  %v1487 = vadd.f32 %v1461, %v1486
  %1488 = vmatmul.f32.gmra.mxu0 %v793
  %v1489 = vpop.f32.mrf.mxu0
  %v1490 = vadd.f32 %v1464, %v1489
  %1491 = vmatmul.f32.gmra.mxu0 %v796
  %v1492 = vpop.f32.mrf.mxu0
  %v1493 = vadd.f32 %v1467, %v1492
  %1494 = vdwg.mxu0
  %1495 = vmatpush.msra.mxu0 %v392
  %1496 = vmatpush.msra.mxu0 %v368
  %1497 = vmatpush.msra.mxu0 %v344
  %1498 = vmatpush.msra.mxu0 %v320
  %1499 = vmatpush.msra.mxu0 %v296
  %1500 = vmatpush.msra.mxu0 %v272
  %1501 = vmatpush.msra.mxu0 %v248
  %1502 = vmatpush.msra.mxu0 %v224
  %1503 = vmatpush.msra.mxu0 %v200
  %1504 = vmatpush.msra.mxu0 %v176
  %1505 = vmatpush.msra.mxu0 %v152
  %1506 = vmatpush.msra.mxu0 %v128
  %1507 = vmatpush.msra.mxu0 %v104
  %1508 = vmatpush.msra.mxu0 %v80
  %1509 = vmatpush.msra.mxu0 %v56
  %1510 = vmatpush.msra.mxu0 %v32
  %1511 = vmatmul.f32.gmra.mxu0 %v14
  %v1512 = vpop.f32.mrf.mxu0
  %v1513 = vadd.f32 0.0, %v1512
  %1514 = vmatmul.f32.gmra.mxu0 %v16
  %v1515 = vpop.f32.mrf.mxu0
  %v1516 = vadd.f32 0.0, %v1515
  %1517 = vmatmul.f32.gmra.mxu0 %v18
  %v1518 = vpop.f32.mrf.mxu0
  %v1519 = vadd.f32 0.0, %v1518
  %1520 = vdwg.mxu0
  %1521 = vmatpush.msra.mxu0 %v836
  %1522 = vmatpush.msra.mxu0 %v752
  %1523 = vmatpush.msra.mxu0 %v728
  %1524 = vmatpush.msra.mxu0 %v704
  %1525 = vmatpush.msra.mxu0 %v680
  %1526 = vmatpush.msra.mxu0 %v656
  %1527 = vmatpush.msra.mxu0 %v632
  %1528 = vmatpush.msra.mxu0 %v608
  %1529 = vmatpush.msra.mxu0 %v584
  %1530 = vmatpush.msra.mxu0 %v560
  %1531 = vmatpush.msra.mxu0 %v536
  %1532 = vmatpush.msra.mxu0 %v512
  %1533 = vmatpush.msra.mxu0 %v488
  %1534 = vmatpush.msra.mxu0 %v464
  %1535 = vmatpush.msra.mxu0 %v440
  %1536 = vmatpush.msra.mxu0 %v416
  %1537 = vmatmul.f32.gmra.mxu0 %v790
  %v1538 = vpop.f32.mrf.mxu0
  %v1539 = vadd.f32 %v1513, %v1538
  %1540 = vmatmul.f32.gmra.mxu0 %v793
  %v1541 = vpop.f32.mrf.mxu0
  %v1542 = vadd.f32 %v1516, %v1541
  %1543 = vmatmul.f32.gmra.mxu0 %v796
  %v1544 = vpop.f32.mrf.mxu0
  %v1545 = vadd.f32 %v1519, %v1544
  %1546 = vdwg.mxu0
  %1547 = vmatpush.msra.mxu0 %v393
  %1548 = vmatpush.msra.mxu0 %v369
  %1549 = vmatpush.msra.mxu0 %v345
  %1550 = vmatpush.msra.mxu0 %v321
  %1551 = vmatpush.msra.mxu0 %v297
  %1552 = vmatpush.msra.mxu0 %v273
  %1553 = vmatpush.msra.mxu0 %v249
  %1554 = vmatpush.msra.mxu0 %v225
  %1555 = vmatpush.msra.mxu0 %v201
  %1556 = vmatpush.msra.mxu0 %v177
  %1557 = vmatpush.msra.mxu0 %v153
  %1558 = vmatpush.msra.mxu0 %v129
  %1559 = vmatpush.msra.mxu0 %v105
  %1560 = vmatpush.msra.mxu0 %v81
  %1561 = vmatpush.msra.mxu0 %v57
  %1562 = vmatpush.msra.mxu0 %v33
  %1563 = vmatmul.f32.gmra.mxu0 %v14
  %v1564 = vpop.f32.mrf.mxu0
  %v1565 = vadd.f32 0.0, %v1564
  %1566 = vmatmul.f32.gmra.mxu0 %v16
  %v1567 = vpop.f32.mrf.mxu0
  %v1568 = vadd.f32 0.0, %v1567
  %1569 = vmatmul.f32.gmra.mxu0 %v18
  %v1570 = vpop.f32.mrf.mxu0
  %v1571 = vadd.f32 0.0, %v1570
  %1572 = vdwg.mxu0
  %1573 = vmatpush.msra.mxu0 %v839
  %1574 = vmatpush.msra.mxu0 %v753
  %1575 = vmatpush.msra.mxu0 %v729
  %1576 = vmatpush.msra.mxu0 %v705
  %1577 = vmatpush.msra.mxu0 %v681
  %1578 = vmatpush.msra.mxu0 %v657
  %1579 = vmatpush.msra.mxu0 %v633
  %1580 = vmatpush.msra.mxu0 %v609
  %1581 = vmatpush.msra.mxu0 %v585
  %1582 = vmatpush.msra.mxu0 %v561
  %1583 = vmatpush.msra.mxu0 %v537
  %1584 = vmatpush.msra.mxu0 %v513
  %1585 = vmatpush.msra.mxu0 %v489
  %1586 = vmatpush.msra.mxu0 %v465
  %1587 = vmatpush.msra.mxu0 %v441
  %1588 = vmatpush.msra.mxu0 %v417
  %1589 = vmatmul.f32.gmra.mxu0 %v790
  %v1590 = vpop.f32.mrf.mxu0
  %v1591 = vadd.f32 %v1565, %v1590
  %1592 = vmatmul.f32.gmra.mxu0 %v793
  %v1593 = vpop.f32.mrf.mxu0
  %v1594 = vadd.f32 %v1568, %v1593
  %1595 = vmatmul.f32.gmra.mxu0 %v796
  %v1596 = vpop.f32.mrf.mxu0
  %v1597 = vadd.f32 %v1571, %v1596
  %1598 = vdwg.mxu0
  %1599 = vmatpush.msra.mxu0 %v394
  %1600 = vmatpush.msra.mxu0 %v370
  %1601 = vmatpush.msra.mxu0 %v346
  %1602 = vmatpush.msra.mxu0 %v322
  %1603 = vmatpush.msra.mxu0 %v298
  %1604 = vmatpush.msra.mxu0 %v274
  %1605 = vmatpush.msra.mxu0 %v250
  %1606 = vmatpush.msra.mxu0 %v226
  %1607 = vmatpush.msra.mxu0 %v202
  %1608 = vmatpush.msra.mxu0 %v178
  %1609 = vmatpush.msra.mxu0 %v154
  %1610 = vmatpush.msra.mxu0 %v130
  %1611 = vmatpush.msra.mxu0 %v106
  %1612 = vmatpush.msra.mxu0 %v82
  %1613 = vmatpush.msra.mxu0 %v58
  %1614 = vmatpush.msra.mxu0 %v34
  %1615 = vmatmul.f32.gmra.mxu0 %v14
  %v1616 = vpop.f32.mrf.mxu0
  %v1617 = vadd.f32 0.0, %v1616
  %1618 = vmatmul.f32.gmra.mxu0 %v16
  %v1619 = vpop.f32.mrf.mxu0
  %v1620 = vadd.f32 0.0, %v1619
  %1621 = vmatmul.f32.gmra.mxu0 %v18
  %v1622 = vpop.f32.mrf.mxu0
  %v1623 = vadd.f32 0.0, %v1622
  %1624 = vdwg.mxu0
  %1625 = vmatpush.msra.mxu0 %v842
  %1626 = vmatpush.msra.mxu0 %v754
  %1627 = vmatpush.msra.mxu0 %v730
  %1628 = vmatpush.msra.mxu0 %v706
  %1629 = vmatpush.msra.mxu0 %v682
  %1630 = vmatpush.msra.mxu0 %v658
  %1631 = vmatpush.msra.mxu0 %v634
  %1632 = vmatpush.msra.mxu0 %v610
  %1633 = vmatpush.msra.mxu0 %v586
  %1634 = vmatpush.msra.mxu0 %v562
  %1635 = vmatpush.msra.mxu0 %v538
  %1636 = vmatpush.msra.mxu0 %v514
  %1637 = vmatpush.msra.mxu0 %v490
  %1638 = vmatpush.msra.mxu0 %v466
  %1639 = vmatpush.msra.mxu0 %v442
  %1640 = vmatpush.msra.mxu0 %v418
  %1641 = vmatmul.f32.gmra.mxu0 %v790
  %v1642 = vpop.f32.mrf.mxu0
  %v1643 = vadd.f32 %v1617, %v1642
  %1644 = vmatmul.f32.gmra.mxu0 %v793
  %v1645 = vpop.f32.mrf.mxu0
  %v1646 = vadd.f32 %v1620, %v1645
  %1647 = vmatmul.f32.gmra.mxu0 %v796
  %v1648 = vpop.f32.mrf.mxu0
  %v1649 = vadd.f32 %v1623, %v1648
  %1650 = vdwg.mxu0
  %1651 = vmatpush.msra.mxu0 %v395
  %1652 = vmatpush.msra.mxu0 %v371
  %1653 = vmatpush.msra.mxu0 %v347
  %1654 = vmatpush.msra.mxu0 %v323
  %1655 = vmatpush.msra.mxu0 %v299
  %1656 = vmatpush.msra.mxu0 %v275
  %1657 = vmatpush.msra.mxu0 %v251
  %1658 = vmatpush.msra.mxu0 %v227
  %1659 = vmatpush.msra.mxu0 %v203
  %1660 = vmatpush.msra.mxu0 %v179
  %1661 = vmatpush.msra.mxu0 %v155
  %1662 = vmatpush.msra.mxu0 %v131
  %1663 = vmatpush.msra.mxu0 %v107
  %1664 = vmatpush.msra.mxu0 %v83
  %1665 = vmatpush.msra.mxu0 %v59
  %1666 = vmatpush.msra.mxu0 %v35
  %1667 = vmatmul.f32.gmra.mxu0 %v14
  %v1668 = vpop.f32.mrf.mxu0
  %v1669 = vadd.f32 0.0, %v1668
  %1670 = vmatmul.f32.gmra.mxu0 %v16
  %v1671 = vpop.f32.mrf.mxu0
  %v1672 = vadd.f32 0.0, %v1671
  %1673 = vmatmul.f32.gmra.mxu0 %v18
  %v1674 = vpop.f32.mrf.mxu0
  %v1675 = vadd.f32 0.0, %v1674
  %1676 = vdwg.mxu0
  %1677 = vmatpush.msra.mxu0 %v845
  %1678 = vmatpush.msra.mxu0 %v755
  %1679 = vmatpush.msra.mxu0 %v731
  %1680 = vmatpush.msra.mxu0 %v707
  %1681 = vmatpush.msra.mxu0 %v683
  %1682 = vmatpush.msra.mxu0 %v659
  %1683 = vmatpush.msra.mxu0 %v635
  %1684 = vmatpush.msra.mxu0 %v611
  %1685 = vmatpush.msra.mxu0 %v587
  %1686 = vmatpush.msra.mxu0 %v563
  %1687 = vmatpush.msra.mxu0 %v539
  %1688 = vmatpush.msra.mxu0 %v515
  %1689 = vmatpush.msra.mxu0 %v491
  %1690 = vmatpush.msra.mxu0 %v467
  %1691 = vmatpush.msra.mxu0 %v443
  %1692 = vmatpush.msra.mxu0 %v419
  %1693 = vmatmul.f32.gmra.mxu0 %v790
  %v1694 = vpop.f32.mrf.mxu0
  %v1695 = vadd.f32 %v1669, %v1694
  %1696 = vmatmul.f32.gmra.mxu0 %v793
  %v1697 = vpop.f32.mrf.mxu0
  %v1698 = vadd.f32 %v1672, %v1697
  %1699 = vmatmul.f32.gmra.mxu0 %v796
  %v1700 = vpop.f32.mrf.mxu0
  %v1701 = vadd.f32 %v1675, %v1700
  %1702 = vdwg.mxu0
  %1703 = vmatpush.msra.mxu0 %v396
  %1704 = vmatpush.msra.mxu0 %v372
  %1705 = vmatpush.msra.mxu0 %v348
  %1706 = vmatpush.msra.mxu0 %v324
  %1707 = vmatpush.msra.mxu0 %v300
  %1708 = vmatpush.msra.mxu0 %v276
  %1709 = vmatpush.msra.mxu0 %v252
  %1710 = vmatpush.msra.mxu0 %v228
  %1711 = vmatpush.msra.mxu0 %v204
  %1712 = vmatpush.msra.mxu0 %v180
  %1713 = vmatpush.msra.mxu0 %v156
  %1714 = vmatpush.msra.mxu0 %v132
  %1715 = vmatpush.msra.mxu0 %v108
  %1716 = vmatpush.msra.mxu0 %v84
  %1717 = vmatpush.msra.mxu0 %v60
  %1718 = vmatpush.msra.mxu0 %v36
  %1719 = vmatmul.f32.gmra.mxu0 %v14
  %v1720 = vpop.f32.mrf.mxu0
  %v1721 = vadd.f32 0.0, %v1720
  %1722 = vmatmul.f32.gmra.mxu0 %v16
  %v1723 = vpop.f32.mrf.mxu0
  %v1724 = vadd.f32 0.0, %v1723
  %1725 = vmatmul.f32.gmra.mxu0 %v18
  %v1726 = vpop.f32.mrf.mxu0
  %v1727 = vadd.f32 0.0, %v1726
  %1728 = vdwg.mxu0
  %1729 = vmatpush.msra.mxu0 %v848
  %1730 = vmatpush.msra.mxu0 %v756
  %1731 = vmatpush.msra.mxu0 %v732
  %1732 = vmatpush.msra.mxu0 %v708
  %1733 = vmatpush.msra.mxu0 %v684
  %1734 = vmatpush.msra.mxu0 %v660
  %1735 = vmatpush.msra.mxu0 %v636
  %1736 = vmatpush.msra.mxu0 %v612
  %1737 = vmatpush.msra.mxu0 %v588
  %1738 = vmatpush.msra.mxu0 %v564
  %1739 = vmatpush.msra.mxu0 %v540
  %1740 = vmatpush.msra.mxu0 %v516
  %1741 = vmatpush.msra.mxu0 %v492
  %1742 = vmatpush.msra.mxu0 %v468
  %1743 = vmatpush.msra.mxu0 %v444
  %1744 = vmatpush.msra.mxu0 %v420
  %1745 = vmatmul.f32.gmra.mxu0 %v790
  %v1746 = vpop.f32.mrf.mxu0
  %v1747 = vadd.f32 %v1721, %v1746
  %1748 = vmatmul.f32.gmra.mxu0 %v793
  %v1749 = vpop.f32.mrf.mxu0
  %v1750 = vadd.f32 %v1724, %v1749
  %1751 = vmatmul.f32.gmra.mxu0 %v796
  %v1752 = vpop.f32.mrf.mxu0
  %v1753 = vadd.f32 %v1727, %v1752
  %1754 = vdwg.mxu0
  %1755 = vmatpush.msra.mxu0 %v397
  %1756 = vmatpush.msra.mxu0 %v373
  %1757 = vmatpush.msra.mxu0 %v349
  %1758 = vmatpush.msra.mxu0 %v325
  %1759 = vmatpush.msra.mxu0 %v301
  %1760 = vmatpush.msra.mxu0 %v277
  %1761 = vmatpush.msra.mxu0 %v253
  %1762 = vmatpush.msra.mxu0 %v229
  %1763 = vmatpush.msra.mxu0 %v205
  %1764 = vmatpush.msra.mxu0 %v181
  %1765 = vmatpush.msra.mxu0 %v157
  %1766 = vmatpush.msra.mxu0 %v133
  %1767 = vmatpush.msra.mxu0 %v109
  %1768 = vmatpush.msra.mxu0 %v85
  %1769 = vmatpush.msra.mxu0 %v61
  %1770 = vmatpush.msra.mxu0 %v37
  %1771 = vmatmul.f32.gmra.mxu0 %v14
  %v1772 = vpop.f32.mrf.mxu0
  %v1773 = vadd.f32 0.0, %v1772
  %1774 = vmatmul.f32.gmra.mxu0 %v16
  %v1775 = vpop.f32.mrf.mxu0
  %v1776 = vadd.f32 0.0, %v1775
  %1777 = vmatmul.f32.gmra.mxu0 %v18
  %v1778 = vpop.f32.mrf.mxu0
  %v1779 = vadd.f32 0.0, %v1778
  %1780 = vdwg.mxu0
  %1781 = vmatpush.msra.mxu0 %v851
  %1782 = vmatpush.msra.mxu0 %v757
  %1783 = vmatpush.msra.mxu0 %v733
  %1784 = vmatpush.msra.mxu0 %v709
  %1785 = vmatpush.msra.mxu0 %v685
  %1786 = vmatpush.msra.mxu0 %v661
  %1787 = vmatpush.msra.mxu0 %v637
  %1788 = vmatpush.msra.mxu0 %v613
  %1789 = vmatpush.msra.mxu0 %v589
  %1790 = vmatpush.msra.mxu0 %v565
  %1791 = vmatpush.msra.mxu0 %v541
  %1792 = vmatpush.msra.mxu0 %v517
  %1793 = vmatpush.msra.mxu0 %v493
  %1794 = vmatpush.msra.mxu0 %v469
  %1795 = vmatpush.msra.mxu0 %v445
  %1796 = vmatpush.msra.mxu0 %v421
  %1797 = vmatmul.f32.gmra.mxu0 %v790
  %v1798 = vpop.f32.mrf.mxu0
  %v1799 = vadd.f32 %v1773, %v1798
  %1800 = vmatmul.f32.gmra.mxu0 %v793
  %v1801 = vpop.f32.mrf.mxu0
  %v1802 = vadd.f32 %v1776, %v1801
  %1803 = vmatmul.f32.gmra.mxu0 %v796
  %v1804 = vpop.f32.mrf.mxu0
  %v1805 = vadd.f32 %v1779, %v1804
  %1806 = vdwg.mxu0
  %1807 = vmatpush.msra.mxu0 %v398
  %1808 = vmatpush.msra.mxu0 %v374
  %1809 = vmatpush.msra.mxu0 %v350
  %1810 = vmatpush.msra.mxu0 %v326
  %1811 = vmatpush.msra.mxu0 %v302
  %1812 = vmatpush.msra.mxu0 %v278
  %1813 = vmatpush.msra.mxu0 %v254
  %1814 = vmatpush.msra.mxu0 %v230
  %1815 = vmatpush.msra.mxu0 %v206
  %1816 = vmatpush.msra.mxu0 %v182
  %1817 = vmatpush.msra.mxu0 %v158
  %1818 = vmatpush.msra.mxu0 %v134
  %1819 = vmatpush.msra.mxu0 %v110
  %1820 = vmatpush.msra.mxu0 %v86
  %1821 = vmatpush.msra.mxu0 %v62
  %1822 = vmatpush.msra.mxu0 %v38
  %1823 = vmatmul.f32.gmra.mxu0 %v14
  %v1824 = vpop.f32.mrf.mxu0
  %v1825 = vadd.f32 0.0, %v1824
  %1826 = vmatmul.f32.gmra.mxu0 %v16
  %v1827 = vpop.f32.mrf.mxu0
  %v1828 = vadd.f32 0.0, %v1827
  %1829 = vmatmul.f32.gmra.mxu0 %v18
  %v1830 = vpop.f32.mrf.mxu0
  %v1831 = vadd.f32 0.0, %v1830
  %1832 = vdwg.mxu0
  %1833 = vmatpush.msra.mxu0 %v854
  %1834 = vmatpush.msra.mxu0 %v758
  %1835 = vmatpush.msra.mxu0 %v734
  %1836 = vmatpush.msra.mxu0 %v710
  %1837 = vmatpush.msra.mxu0 %v686
  %1838 = vmatpush.msra.mxu0 %v662
  %1839 = vmatpush.msra.mxu0 %v638
  %1840 = vmatpush.msra.mxu0 %v614
  %1841 = vmatpush.msra.mxu0 %v590
  %1842 = vmatpush.msra.mxu0 %v566
  %1843 = vmatpush.msra.mxu0 %v542
  %1844 = vmatpush.msra.mxu0 %v518
  %1845 = vmatpush.msra.mxu0 %v494
  %1846 = vmatpush.msra.mxu0 %v470
  %1847 = vmatpush.msra.mxu0 %v446
  %1848 = vmatpush.msra.mxu0 %v422
  %1849 = vmatmul.f32.gmra.mxu0 %v790
  %v1850 = vpop.f32.mrf.mxu0
  %v1851 = vadd.f32 %v1825, %v1850
  %1852 = vmatmul.f32.gmra.mxu0 %v793
  %v1853 = vpop.f32.mrf.mxu0
  %v1854 = vadd.f32 %v1828, %v1853
  %1855 = vmatmul.f32.gmra.mxu0 %v796
  %v1856 = vpop.f32.mrf.mxu0
  %v1857 = vadd.f32 %v1831, %v1856
  %1858 = vdwg.mxu0
  %1859 = vmatpush.msra.mxu0 %v399
  %1860 = vmatpush.msra.mxu0 %v375
  %1861 = vmatpush.msra.mxu0 %v351
  %1862 = vmatpush.msra.mxu0 %v327
  %1863 = vmatpush.msra.mxu0 %v303
  %1864 = vmatpush.msra.mxu0 %v279
  %1865 = vmatpush.msra.mxu0 %v255
  %1866 = vmatpush.msra.mxu0 %v231
  %1867 = vmatpush.msra.mxu0 %v207
  %1868 = vmatpush.msra.mxu0 %v183
  %1869 = vmatpush.msra.mxu0 %v159
  %1870 = vmatpush.msra.mxu0 %v135
  %1871 = vmatpush.msra.mxu0 %v111
  %1872 = vmatpush.msra.mxu0 %v87
  %1873 = vmatpush.msra.mxu0 %v63
  %1874 = vmatpush.msra.mxu0 %v39
  %1875 = vmatmul.f32.gmra.mxu0 %v14
  %v1876 = vpop.f32.mrf.mxu0
  %v1877 = vadd.f32 0.0, %v1876
  %1878 = vmatmul.f32.gmra.mxu0 %v16
  %v1879 = vpop.f32.mrf.mxu0
  %v1880 = vadd.f32 0.0, %v1879
  %1881 = vmatmul.f32.gmra.mxu0 %v18
  %v1882 = vpop.f32.mrf.mxu0
  %v1883 = vadd.f32 0.0, %v1882
  %1884 = vdwg.mxu0
  %1885 = vmatpush.msra.mxu0 %v857
  %1886 = vmatpush.msra.mxu0 %v759
  %1887 = vmatpush.msra.mxu0 %v735
  %1888 = vmatpush.msra.mxu0 %v711
  %1889 = vmatpush.msra.mxu0 %v687
  %1890 = vmatpush.msra.mxu0 %v663
  %1891 = vmatpush.msra.mxu0 %v639
  %1892 = vmatpush.msra.mxu0 %v615
  %1893 = vmatpush.msra.mxu0 %v591
  %1894 = vmatpush.msra.mxu0 %v567
  %1895 = vmatpush.msra.mxu0 %v543
  %1896 = vmatpush.msra.mxu0 %v519
  %1897 = vmatpush.msra.mxu0 %v495
  %1898 = vmatpush.msra.mxu0 %v471
  %1899 = vmatpush.msra.mxu0 %v447
  %1900 = vmatpush.msra.mxu0 %v423
  %1901 = vmatmul.f32.gmra.mxu0 %v790
  %v1902 = vpop.f32.mrf.mxu0
  %v1903 = vadd.f32 %v1877, %v1902
  %1904 = vmatmul.f32.gmra.mxu0 %v793
  %v1905 = vpop.f32.mrf.mxu0
  %v1906 = vadd.f32 %v1880, %v1905
  %1907 = vmatmul.f32.gmra.mxu0 %v796
  %v1908 = vpop.f32.mrf.mxu0
  %v1909 = vadd.f32 %v1883, %v1908
  %1910 = vdwg.mxu0
  %1911 = vmatpush.msra.mxu0 %v400
  %1912 = vmatpush.msra.mxu0 %v376
  %1913 = vmatpush.msra.mxu0 %v352
  %1914 = vmatpush.msra.mxu0 %v328
  %1915 = vmatpush.msra.mxu0 %v304
  %1916 = vmatpush.msra.mxu0 %v280
  %1917 = vmatpush.msra.mxu0 %v256
  %1918 = vmatpush.msra.mxu0 %v232
  %1919 = vmatpush.msra.mxu0 %v208
  %1920 = vmatpush.msra.mxu0 %v184
  %1921 = vmatpush.msra.mxu0 %v160
  %1922 = vmatpush.msra.mxu0 %v136
  %1923 = vmatpush.msra.mxu0 %v112
  %1924 = vmatpush.msra.mxu0 %v88
  %1925 = vmatpush.msra.mxu0 %v64
  %1926 = vmatpush.msra.mxu0 %v40
  %1927 = vmatmul.f32.gmra.mxu0 %v14
  %v1928 = vpop.f32.mrf.mxu0
  %v1929 = vadd.f32 0.0, %v1928
  %1930 = vmatmul.f32.gmra.mxu0 %v16
  %v1931 = vpop.f32.mrf.mxu0
  %v1932 = vadd.f32 0.0, %v1931
  %1933 = vmatmul.f32.gmra.mxu0 %v18
  %v1934 = vpop.f32.mrf.mxu0
  %v1935 = vadd.f32 0.0, %v1934
  %1936 = vdwg.mxu0
  %1937 = vmatpush.msra.mxu0 %v860
  %1938 = vmatpush.msra.mxu0 %v760
  %1939 = vmatpush.msra.mxu0 %v736
  %1940 = vmatpush.msra.mxu0 %v712
  %1941 = vmatpush.msra.mxu0 %v688
  %1942 = vmatpush.msra.mxu0 %v664
  %1943 = vmatpush.msra.mxu0 %v640
  %1944 = vmatpush.msra.mxu0 %v616
  %1945 = vmatpush.msra.mxu0 %v592
  %1946 = vmatpush.msra.mxu0 %v568
  %1947 = vmatpush.msra.mxu0 %v544
  %1948 = vmatpush.msra.mxu0 %v520
  %1949 = vmatpush.msra.mxu0 %v496
  %1950 = vmatpush.msra.mxu0 %v472
  %1951 = vmatpush.msra.mxu0 %v448
  %1952 = vmatpush.msra.mxu0 %v424
  %1953 = vmatmul.f32.gmra.mxu0 %v790
  %v1954 = vpop.f32.mrf.mxu0
  %v1955 = vadd.f32 %v1929, %v1954
  %1956 = vmatmul.f32.gmra.mxu0 %v793
  %v1957 = vpop.f32.mrf.mxu0
  %v1958 = vadd.f32 %v1932, %v1957
  %1959 = vmatmul.f32.gmra.mxu0 %v796
  %v1960 = vpop.f32.mrf.mxu0
  %v1961 = vadd.f32 %v1935, %v1960
  %1962 = vdwg.mxu0
  %1963 = vmatpush.msra.mxu0 %v401
  %1964 = vmatpush.msra.mxu0 %v377
  %1965 = vmatpush.msra.mxu0 %v353
  %1966 = vmatpush.msra.mxu0 %v329
  %1967 = vmatpush.msra.mxu0 %v305
  %1968 = vmatpush.msra.mxu0 %v281
  %1969 = vmatpush.msra.mxu0 %v257
  %1970 = vmatpush.msra.mxu0 %v233
  %1971 = vmatpush.msra.mxu0 %v209
  %1972 = vmatpush.msra.mxu0 %v185
  %1973 = vmatpush.msra.mxu0 %v161
  %1974 = vmatpush.msra.mxu0 %v137
  %1975 = vmatpush.msra.mxu0 %v113
  %1976 = vmatpush.msra.mxu0 %v89
  %1977 = vmatpush.msra.mxu0 %v65
  %1978 = vmatpush.msra.mxu0 %v41
  %1979 = vmatmul.f32.gmra.mxu0 %v14
  %v1980 = vpop.f32.mrf.mxu0
  %v1981 = vadd.f32 0.0, %v1980
  %1982 = vmatmul.f32.gmra.mxu0 %v16
  %v1983 = vpop.f32.mrf.mxu0
  %v1984 = vadd.f32 0.0, %v1983
  %1985 = vmatmul.f32.gmra.mxu0 %v18
  %v1986 = vpop.f32.mrf.mxu0
  %v1987 = vadd.f32 0.0, %v1986
  %1988 = vdwg.mxu0
  %1989 = vmatpush.msra.mxu0 %v863
  %1990 = vmatpush.msra.mxu0 %v761
  %1991 = vmatpush.msra.mxu0 %v737
  %1992 = vmatpush.msra.mxu0 %v713
  %1993 = vmatpush.msra.mxu0 %v689
  %1994 = vmatpush.msra.mxu0 %v665
  %1995 = vmatpush.msra.mxu0 %v641
  %1996 = vmatpush.msra.mxu0 %v617
  %1997 = vmatpush.msra.mxu0 %v593
  %1998 = vmatpush.msra.mxu0 %v569
  %1999 = vmatpush.msra.mxu0 %v545
  %2000 = vmatpush.msra.mxu0 %v521
  %2001 = vmatpush.msra.mxu0 %v497
  %2002 = vmatpush.msra.mxu0 %v473
  %2003 = vmatpush.msra.mxu0 %v449
  %2004 = vmatpush.msra.mxu0 %v425
  %2005 = vmatmul.f32.gmra.mxu0 %v790
  %v2006 = vpop.f32.mrf.mxu0
  %v2007 = vadd.f32 %v1981, %v2006
  %2008 = vmatmul.f32.gmra.mxu0 %v793
  %v2009 = vpop.f32.mrf.mxu0
  %v2010 = vadd.f32 %v1984, %v2009
  %2011 = vmatmul.f32.gmra.mxu0 %v796
  %v2012 = vpop.f32.mrf.mxu0
  %v2013 = vadd.f32 %v1987, %v2012
  %2014 = vdwg.mxu0
  %2015 = vmatpush.msra.mxu0 %v402
  %2016 = vmatpush.msra.mxu0 %v378
  %2017 = vmatpush.msra.mxu0 %v354
  %2018 = vmatpush.msra.mxu0 %v330
  %2019 = vmatpush.msra.mxu0 %v306
  %2020 = vmatpush.msra.mxu0 %v282
  %2021 = vmatpush.msra.mxu0 %v258
  %2022 = vmatpush.msra.mxu0 %v234
  %2023 = vmatpush.msra.mxu0 %v210
  %2024 = vmatpush.msra.mxu0 %v186
  %2025 = vmatpush.msra.mxu0 %v162
  %2026 = vmatpush.msra.mxu0 %v138
  %2027 = vmatpush.msra.mxu0 %v114
  %2028 = vmatpush.msra.mxu0 %v90
  %2029 = vmatpush.msra.mxu0 %v66
  %2030 = vmatpush.msra.mxu0 %v42
  %2031 = vmatmul.f32.gmra.mxu0 %v14
  %v2032 = vpop.f32.mrf.mxu0
  %v2033 = vadd.f32 0.0, %v2032
  %2034 = vmatmul.f32.gmra.mxu0 %v16
  %v2035 = vpop.f32.mrf.mxu0
  %v2036 = vadd.f32 0.0, %v2035
  %2037 = vmatmul.f32.gmra.mxu0 %v18
  %v2038 = vpop.f32.mrf.mxu0
  %v2039 = vadd.f32 0.0, %v2038
  %2040 = vdwg.mxu0
  %2041 = vmatpush.msra.mxu0 %v866
  %2042 = vmatpush.msra.mxu0 %v762
  %2043 = vmatpush.msra.mxu0 %v738
  %2044 = vmatpush.msra.mxu0 %v714
  %2045 = vmatpush.msra.mxu0 %v690
  %2046 = vmatpush.msra.mxu0 %v666
  %2047 = vmatpush.msra.mxu0 %v642
  %2048 = vmatpush.msra.mxu0 %v618
  %2049 = vmatpush.msra.mxu0 %v594
  %2050 = vmatpush.msra.mxu0 %v570
  %2051 = vmatpush.msra.mxu0 %v546
  %2052 = vmatpush.msra.mxu0 %v522
  %2053 = vmatpush.msra.mxu0 %v498
  %2054 = vmatpush.msra.mxu0 %v474
  %2055 = vmatpush.msra.mxu0 %v450
  %2056 = vmatpush.msra.mxu0 %v426
  %2057 = vmatmul.f32.gmra.mxu0 %v790
  %v2058 = vpop.f32.mrf.mxu0
  %v2059 = vadd.f32 %v2033, %v2058
  %2060 = vmatmul.f32.gmra.mxu0 %v793
  %v2061 = vpop.f32.mrf.mxu0
  %v2062 = vadd.f32 %v2036, %v2061
  %2063 = vmatmul.f32.gmra.mxu0 %v796
  %v2064 = vpop.f32.mrf.mxu0
  %v2065 = vadd.f32 %v2039, %v2064
  %2066 = vdwg.mxu0
  %2067 = vmatpush.msra.mxu0 %v403
  %2068 = vmatpush.msra.mxu0 %v379
  %2069 = vmatpush.msra.mxu0 %v355
  %2070 = vmatpush.msra.mxu0 %v331
  %2071 = vmatpush.msra.mxu0 %v307
  %2072 = vmatpush.msra.mxu0 %v283
  %2073 = vmatpush.msra.mxu0 %v259
  %2074 = vmatpush.msra.mxu0 %v235
  %2075 = vmatpush.msra.mxu0 %v211
  %2076 = vmatpush.msra.mxu0 %v187
  %2077 = vmatpush.msra.mxu0 %v163
  %2078 = vmatpush.msra.mxu0 %v139
  %2079 = vmatpush.msra.mxu0 %v115
  %2080 = vmatpush.msra.mxu0 %v91
  %2081 = vmatpush.msra.mxu0 %v67
  %2082 = vmatpush.msra.mxu0 %v43
  %2083 = vmatmul.f32.gmra.mxu0 %v14
  %v2084 = vpop.f32.mrf.mxu0
  %v2085 = vadd.f32 0.0, %v2084
  %2086 = vmatmul.f32.gmra.mxu0 %v16
  %v2087 = vpop.f32.mrf.mxu0
  %v2088 = vadd.f32 0.0, %v2087
  %2089 = vmatmul.f32.gmra.mxu0 %v18
  %v2090 = vpop.f32.mrf.mxu0
  %v2091 = vadd.f32 0.0, %v2090
  %2092 = vdwg.mxu0
  %2093 = vmatpush.msra.mxu0 %v869
  %2094 = vmatpush.msra.mxu0 %v763
  %2095 = vmatpush.msra.mxu0 %v739
  %2096 = vmatpush.msra.mxu0 %v715
  %2097 = vmatpush.msra.mxu0 %v691
  %2098 = vmatpush.msra.mxu0 %v667
  %2099 = vmatpush.msra.mxu0 %v643
  %2100 = vmatpush.msra.mxu0 %v619
  %2101 = vmatpush.msra.mxu0 %v595
  %2102 = vmatpush.msra.mxu0 %v571
  %2103 = vmatpush.msra.mxu0 %v547
  %2104 = vmatpush.msra.mxu0 %v523
  %2105 = vmatpush.msra.mxu0 %v499
  %2106 = vmatpush.msra.mxu0 %v475
  %2107 = vmatpush.msra.mxu0 %v451
  %2108 = vmatpush.msra.mxu0 %v427
  %2109 = vmatmul.f32.gmra.mxu0 %v790
  %v2110 = vpop.f32.mrf.mxu0
  %v2111 = vadd.f32 %v2085, %v2110
  %2112 = vmatmul.f32.gmra.mxu0 %v793
  %v2113 = vpop.f32.mrf.mxu0
  %v2114 = vadd.f32 %v2088, %v2113
  %2115 = vmatmul.f32.gmra.mxu0 %v796
  %v2116 = vpop.f32.mrf.mxu0
  %v2117 = vadd.f32 %v2091, %v2116
  %2118 = vdwg.mxu0
  %v2119 = vmax.f32 %v915, %v967
  %v2120 = vmax.f32 %v918, %v970
  %v2121 = vmax.f32 %v921, %v973
  %v2122 = vmax.f32 %v2119, %v1019
  %v2123 = vmax.f32 %v2120, %v1022
  %v2124 = vmax.f32 %v2121, %v1025
  %v2125 = vmax.f32 %v2122, %v1071
  %v2126 = vmax.f32 %v2123, %v1074
  %v2127 = vmax.f32 %v2124, %v1077
  %v2128 = vmax.f32 %v2125, %v1123
  %v2129 = vmax.f32 %v2126, %v1126
  %v2130 = vmax.f32 %v2127, %v1129
  %v2131 = vmax.f32 %v2128, %v1175
  %v2132 = vmax.f32 %v2129, %v1178
  %v2133 = vmax.f32 %v2130, %v1181
  %v2134 = vmax.f32 %v2131, %v1227
  %v2135 = vmax.f32 %v2132, %v1230
  %v2136 = vmax.f32 %v2133, %v1233
  %v2137 = vmax.f32 %v2134, %v1279
  %v2138 = vmax.f32 %v2135, %v1282
  %v2139 = vmax.f32 %v2136, %v1285
  %v2140 = vmax.f32 %v2137, %v1331
  %v2141 = vmax.f32 %v2138, %v1334
  %v2142 = vmax.f32 %v2139, %v1337
  %v2143 = vmax.f32 %v2140, %v1383
  %v2144 = vmax.f32 %v2141, %v1386
  %v2145 = vmax.f32 %v2142, %v1389
  %v2146 = vmax.f32 %v2143, %v1435
  %v2147 = vmax.f32 %v2144, %v1438
  %v2148 = vmax.f32 %v2145, %v1441
  %v2149 = vmax.f32 %v2146, %v1487
  %v2150 = vmax.f32 %v2147, %v1490
  %v2151 = vmax.f32 %v2148, %v1493
  %v2152 = vmax.f32 %v2149, %v1539
  %v2153 = vmax.f32 %v2150, %v1542
  %v2154 = vmax.f32 %v2151, %v1545
  %v2155 = vmax.f32 %v2152, %v1591
  %v2156 = vmax.f32 %v2153, %v1594
  %v2157 = vmax.f32 %v2154, %v1597
  %v2158 = vmax.f32 %v2155, %v1643
  %v2159 = vmax.f32 %v2156, %v1646
  %v2160 = vmax.f32 %v2157, %v1649
  %v2161 = vmax.f32 %v2158, %v1695
  %v2162 = vmax.f32 %v2159, %v1698
  %v2163 = vmax.f32 %v2160, %v1701
  %v2164 = vmax.f32 %v2161, %v1747
  %v2165 = vmax.f32 %v2162, %v1750
  %v2166 = vmax.f32 %v2163, %v1753
  %v2167 = vmax.f32 %v2164, %v1799
  %v2168 = vmax.f32 %v2165, %v1802
  %v2169 = vmax.f32 %v2166, %v1805
  %v2170 = vmax.f32 %v2167, %v1851
  %v2171 = vmax.f32 %v2168, %v1854
  %v2172 = vmax.f32 %v2169, %v1857
  %v2173 = vmax.f32 %v2170, %v1903
  %v2174 = vmax.f32 %v2171, %v1906
  %v2175 = vmax.f32 %v2172, %v1909
  %v2176 = vmax.f32 %v2173, %v1955
  %v2177 = vmax.f32 %v2174, %v1958
  %v2178 = vmax.f32 %v2175, %v1961
  %v2179 = vmax.f32 %v2176, %v2007
  %v2180 = vmax.f32 %v2177, %v2010
  %v2181 = vmax.f32 %v2178, %v2013
  %v2182 = vmax.f32 %v2179, %v2059
  %v2183 = vmax.f32 %v2180, %v2062
  %v2184 = vmax.f32 %v2181, %v2065
  %v2185 = vmax.f32 %v2182, %v2111
  %v2186 = vmax.f32 %v2183, %v2114
  %v2187 = vmax.f32 %v2184, %v2117
  %v2188 = vld [vmem:[%s2] sm:$0xff]
  %v2189 = vld [vmem:[%s2 + $0x8] sm:$0xff]
  %v2190 = vld [vmem:[%s2 + $0x10] sm:$0xf]
  %2192 = vset.pattern.permute.xlu0 0
  %2193 = vperm.xlu0 %2192, %v2188
  %v2194 = vpop.permute.xlu0 %2193
  %2197 = vset.pattern.permute.xlu0 0
  %2198 = vperm.xlu0 %2197, %v2189
  %v2199 = vpop.permute.xlu0 %2198
  %2202 = vset.pattern.permute.xlu0 0
  %2203 = vperm.xlu0 %2202, %v2190
  %v2204 = vpop.permute.xlu0 %2203
  %v2206 = vadd.f32 %v2185, %v2194
  %v2207 = vadd.f32 %v2186, %v2199
  %v2208 = vadd.f32 %v2187, %v2204
  %v2209 = vmax.f32 %v2206, 0.0
  %v2210 = vmax.f32 %v2207, 0.0
  %v2211 = vmax.f32 %v2208, 0.0
  %2212 = vst [vmem:[%s3] sm:$0xff] %v2209
  %2213 = vst [vmem:[%s3 + $0x8] sm:$0xff] %v2210
  %2214 = vst [vmem:[%s3 + $0x10] sm:$0xf] %v2211
  // Predicated region
  $region14: #{picnet_forward.4} parent=0 // pred_check
    _
  $region15: #{picnet_forward.4} parent=0 // pred_check_branch
    %2216 = sbr.rel (0) target = $region17
  $region16: #{picnet_forward.4} parent=0 // pred_region
    _
  $region17: #{picnet_forward.4} parent=0 // pred_fallthru
    _
  // Predicated region
  $region18: #{picnet_forward.4} parent=0 // pred_check
    _
  $region19: #{picnet_forward.4} parent=0 // pred_check_branch
    %2218 = sbr.rel (0) target = $region21
  $region20: #{picnet_forward.4} parent=0 // pred_region
    _
  $region21: #{picnet_forward.4} parent=0 // pred_fallthru
    _

// kernel: picnet_forward.5
$region0: #{picnet_forward.5}
  #allocation0 [shape = 'u32[]', space=smem, size = 0x4, offset = 0x4, fixed_abs, tag = 'smem constant byte address 0x4 - core index']
  #allocation1 [shape = 'u32[72,128]{1,0:T(1,128)}', space=vmem, size = 0x9000, scoped, tag = 'internal scratch']
  %s0 = inlined_call_operand.vmem [shape: f32[2,980], index: 0, kind: input, shape index: {}]
  %s1 = inlined_call_operand.vmem [shape: f32[980,256], index: 1, kind: input, shape index: {}]
  %s2 = inlined_call_operand.vmem [shape: f32[1,256], index: 2, kind: input, shape index: {}]
  %s3 = inlined_call_operand.vmem [shape: f32[256,128], index: 3, kind: input, shape index: {}]
  %s4 = inlined_call_operand.vmem [shape: f32[1,128], index: 4, kind: input, shape index: {}]
  %s5 = inlined_call_operand.vmem [shape: f32[128,40], index: 5, kind: input, shape index: {}]
  %s6 = inlined_call_operand.vmem [shape: f32[1,40], index: 6, kind: input, shape index: {}]
  %s7 = inlined_call_operand.hbm [shape: f32[2,40], index: 7, kind: output, shape index: {}]
  %s8 = sld [smem:[#allocation0]]
  $region38: #{picnet_forward.5} parent=0
    _
  %s10 = ssub.s32 1, %s8
  %s11 = scalar_select 0, %s10, %s8
  $region1: #{picnet_forward.5} parent=0
    #allocation2 [shape = 'u8[1024]{0}', space=vmem, size = 0x400, scoped, tag = 'output window, operand 0, single buffered']
    #allocation3 [shape = 's32[1]{0}', space=sflag, size = 0x4, scoped, tag = 'scoped memory for picnet_forward.5']
    %12 = vsyncpa [#allocation3], 0
    // Predicated region
    $region2: #{picnet_forward.5} parent=1 // pred_check
      _
    $region3: #{picnet_forward.5} parent=1 // pred_check_branch
      %14 = sbr.rel (0) target = $region5
    $region4: #{picnet_forward.5} parent=1 // pred_region
      _
    $region5: #{picnet_forward.5} parent=1 // pred_fallthru
      _
    // Predicated region
    $region6: #{picnet_forward.5} parent=1 // pred_check
      _
    $region7: #{picnet_forward.5} parent=1 // pred_check_branch
      %16 = sbr.rel (0) target = $region9
    $region8: #{picnet_forward.5} parent=1 // pred_region
      _
    $region9: #{picnet_forward.5} parent=1 // pred_fallthru
      _
    // Predicated region
    $region10: #{picnet_forward.5} parent=1 // pred_check
      _
    $region11: #{picnet_forward.5} parent=1 // pred_check_branch
      %18 = sbr.rel (0) target = $region13
    $region12: #{picnet_forward.5} parent=1 // pred_region
      _
    $region13: #{picnet_forward.5} parent=1 // pred_fallthru
      _
    // Predicated region
    $region14: #{picnet_forward.5} parent=1 // pred_check
      _
    $region15: #{picnet_forward.5} parent=1 // pred_check_branch
      %20 = sbr.rel (0) target = $region17
    $region16: #{picnet_forward.5} parent=1 // pred_region
      _
    $region17: #{picnet_forward.5} parent=1 // pred_fallthru
      _
    // Predicated region
    $region18: #{picnet_forward.5} parent=1 // pred_check
      _
    $region19: #{picnet_forward.5} parent=1 // pred_check_branch
      %22 = sbr.rel (0) target = $region21
    $region20: #{picnet_forward.5} parent=1 // pred_region
      _
    $region21: #{picnet_forward.5} parent=1 // pred_fallthru
      _
    // Predicated region
    $region22: #{picnet_forward.5} parent=1 // pred_check
      _
    $region23: #{picnet_forward.5} parent=1 // pred_check_branch
      %24 = sbr.rel (0) target = $region25
    $region24: #{picnet_forward.5} parent=1 // pred_region
      _
    $region25: #{picnet_forward.5} parent=1 // pred_fallthru
      _
    // Predicated region
    $region26: #{picnet_forward.5} parent=1 // pred_check
      _
    $region27: #{picnet_forward.5} parent=1 // pred_check_branch
      %26 = sbr.rel (0) target = $region29
    $region28: #{picnet_forward.5} parent=1 // pred_region
      _
    $region29: #{picnet_forward.5} parent=1 // pred_fallthru
      _
    %v27 = vld [vmem:[%s0] sm:$0xff]
    %v28 = vld [vmem:[%s0 + $0x8] sm:$0xff]
    %v29 = vld [vmem:[%s1] sm:$0xff]
    %v30 = vld [vmem:[%s1 + $0x8] sm:$0xff]
    %v31 = vld [vmem:[%s1 + $0x10] sm:$0xff]
    %v32 = vld [vmem:[%s1 + $0x18] sm:$0xff]
    %v33 = vld [vmem:[%s1 + $0x20] sm:$0xff]
    %v34 = vld [vmem:[%s1 + $0x28] sm:$0xff]
    %v35 = vld [vmem:[%s1 + $0x30] sm:$0xff]
    %v36 = vld [vmem:[%s1 + $0x38] sm:$0xff]
    %v37 = vld [vmem:[%s1 + $0x40] sm:$0xff]
    %v38 = vld [vmem:[%s1 + $0x48] sm:$0xff]
    %v39 = vld [vmem:[%s1 + $0x50] sm:$0xff]
    %v40 = vld [vmem:[%s1 + $0x58] sm:$0xff]
    %v41 = vld [vmem:[%s1 + $0x60] sm:$0xff]
    %v42 = vld [vmem:[%s1 + $0x68] sm:$0xff]
    %v43 = vld [vmem:[%s1 + $0x70] sm:$0xff]
    %v44 = vld [vmem:[%s1 + $0x78] sm:$0xff]
    %v45 = vld [vmem:[%s1 + $0x80] sm:$0xff]
    %v46 = vld [vmem:[%s1 + $0x88] sm:$0xff]
    %v47 = vld [vmem:[%s1 + $0x90] sm:$0xff]
    %v48 = vld [vmem:[%s1 + $0x98] sm:$0xff]
    %v49 = vld [vmem:[%s1 + $0xa0] sm:$0xff]
    %v50 = vld [vmem:[%s1 + $0xa8] sm:$0xff]
    %v51 = vld [vmem:[%s1 + $0xb0] sm:$0xff]
    %v52 = vld [vmem:[%s1 + $0xb8] sm:$0xff]
    %v53 = vld [vmem:[%s1 + $0xc0] sm:$0xff]
    %v54 = vld [vmem:[%s1 + $0xc8] sm:$0xff]
    %v55 = vld [vmem:[%s1 + $0xd0] sm:$0xff]
    %v56 = vld [vmem:[%s1 + $0xd8] sm:$0xff]
    %v57 = vld [vmem:[%s1 + $0xe0] sm:$0xff]
    %v58 = vld [vmem:[%s1 + $0xe8] sm:$0xff]
    %v59 = vld [vmem:[%s1 + $0xf0] sm:$0xff]
    %v60 = vld [vmem:[%s1 + $0xf8] sm:$0xff]
    %v61 = vld [vmem:[%s1 + $0x100] sm:$0xff]
    %v62 = vld [vmem:[%s1 + $0x108] sm:$0xff]
    %v63 = vld [vmem:[%s1 + $0x110] sm:$0xff]
    %v64 = vld [vmem:[%s1 + $0x118] sm:$0xff]
    %v65 = vld [vmem:[%s1 + $0x120] sm:$0xff]
    %v66 = vld [vmem:[%s1 + $0x128] sm:$0xff]
    %v67 = vld [vmem:[%s1 + $0x130] sm:$0xff]
    %v68 = vld [vmem:[%s1 + $0x138] sm:$0xff]
    %v69 = vld [vmem:[%s1 + $0x140] sm:$0xff]
    %v70 = vld [vmem:[%s1 + $0x148] sm:$0xff]
    %v71 = vld [vmem:[%s1 + $0x150] sm:$0xff]
    %v72 = vld [vmem:[%s1 + $0x158] sm:$0xff]
    %v73 = vld [vmem:[%s1 + $0x160] sm:$0xff]
    %v74 = vld [vmem:[%s1 + $0x168] sm:$0xff]
    %v75 = vld [vmem:[%s1 + $0x170] sm:$0xff]
    %v76 = vld [vmem:[%s1 + $0x178] sm:$0xff]
    %v77 = vld [vmem:[%s1 + $0x180] sm:$0xff]
    %v78 = vld [vmem:[%s1 + $0x188] sm:$0xff]
    %v79 = vld [vmem:[%s1 + $0x190] sm:$0xff]
    %v80 = vld [vmem:[%s1 + $0x198] sm:$0xff]
    %v81 = vld [vmem:[%s1 + $0x1a0] sm:$0xff]
    %v82 = vld [vmem:[%s1 + $0x1a8] sm:$0xff]
    %v83 = vld [vmem:[%s1 + $0x1b0] sm:$0xff]
    %v84 = vld [vmem:[%s1 + $0x1b8] sm:$0xff]
    %v85 = vld [vmem:[%s1 + $0x1c0] sm:$0xff]
    %v86 = vld [vmem:[%s1 + $0x1c8] sm:$0xff]
    %v87 = vld [vmem:[%s1 + $0x1d0] sm:$0xff]
    %v88 = vld [vmem:[%s1 + $0x1d8] sm:$0xff]
    %v89 = vld [vmem:[%s1 + $0x1e0] sm:$0xff]
    %v90 = vld [vmem:[%s1 + $0x1e8] sm:$0xff]
    %v91 = vld [vmem:[%s1 + $0x1f0] sm:$0xff]
    %v92 = vld [vmem:[%s1 + $0x1f8] sm:$0xff]
    %v93 = vld [vmem:[%s1 + $0x200] sm:$0xff]
    %v94 = vld [vmem:[%s1 + $0x208] sm:$0xff]
    %v95 = vld [vmem:[%s1 + $0x210] sm:$0xff]
    %v96 = vld [vmem:[%s1 + $0x218] sm:$0xff]
    %v97 = vld [vmem:[%s1 + $0x220] sm:$0xff]
    %v98 = vld [vmem:[%s1 + $0x228] sm:$0xff]
    %v99 = vld [vmem:[%s1 + $0x230] sm:$0xff]
    %v100 = vld [vmem:[%s1 + $0x238] sm:$0xff]
    %v101 = vld [vmem:[%s1 + $0x240] sm:$0xff]
    %v102 = vld [vmem:[%s1 + $0x248] sm:$0xff]
    %v103 = vld [vmem:[%s1 + $0x250] sm:$0xff]
    %v104 = vld [vmem:[%s1 + $0x258] sm:$0xff]
    %v105 = vld [vmem:[%s1 + $0x260] sm:$0xff]
    %v106 = vld [vmem:[%s1 + $0x268] sm:$0xff]
    %v107 = vld [vmem:[%s1 + $0x270] sm:$0xff]
    %v108 = vld [vmem:[%s1 + $0x278] sm:$0xff]
    %v109 = vld [vmem:[%s1 + $0x280] sm:$0xff]
    %v110 = vld [vmem:[%s1 + $0x288] sm:$0xff]
    %v111 = vld [vmem:[%s1 + $0x290] sm:$0xff]
    %v112 = vld [vmem:[%s1 + $0x298] sm:$0xff]
    %v113 = vld [vmem:[%s1 + $0x2a0] sm:$0xff]
    %v114 = vld [vmem:[%s1 + $0x2a8] sm:$0xff]
    %v115 = vld [vmem:[%s1 + $0x2b0] sm:$0xff]
    %v116 = vld [vmem:[%s1 + $0x2b8] sm:$0xff]
    %v117 = vld [vmem:[%s1 + $0x2c0] sm:$0xff]
    %v118 = vld [vmem:[%s1 + $0x2c8] sm:$0xff]
    %v119 = vld [vmem:[%s1 + $0x2d0] sm:$0xff]
    %v120 = vld [vmem:[%s1 + $0x2d8] sm:$0xff]
    %v121 = vld [vmem:[%s1 + $0x2e0] sm:$0xff]
    %v122 = vld [vmem:[%s1 + $0x2e8] sm:$0xff]
    %v123 = vld [vmem:[%s1 + $0x2f0] sm:$0xff]
    %v124 = vld [vmem:[%s1 + $0x2f8] sm:$0xff]
    %v125 = vld [vmem:[%s1 + $0x300] sm:$0xff]
    %v126 = vld [vmem:[%s1 + $0x308] sm:$0xff]
    %v127 = vld [vmem:[%s1 + $0x310] sm:$0xff]
    %v128 = vld [vmem:[%s1 + $0x318] sm:$0xff]
    %v129 = vld [vmem:[%s1 + $0x320] sm:$0xff]
    %v130 = vld [vmem:[%s1 + $0x328] sm:$0xff]
    %v131 = vld [vmem:[%s1 + $0x330] sm:$0xff]
    %v132 = vld [vmem:[%s1 + $0x338] sm:$0xff]
    %v133 = vld [vmem:[%s1 + $0x340] sm:$0xff]
    %v134 = vld [vmem:[%s1 + $0x348] sm:$0xff]
    %v135 = vld [vmem:[%s1 + $0x350] sm:$0xff]
    %v136 = vld [vmem:[%s1 + $0x358] sm:$0xff]
    %v137 = vld [vmem:[%s1 + $0x360] sm:$0xff]
    %v138 = vld [vmem:[%s1 + $0x368] sm:$0xff]
    %v139 = vld [vmem:[%s1 + $0x370] sm:$0xff]
    %v140 = vld [vmem:[%s1 + $0x378] sm:$0xff]
    %v141 = vld [vmem:[%s1 + $0x380] sm:$0xff]
    %v142 = vld [vmem:[%s1 + $0x388] sm:$0xff]
    %v143 = vld [vmem:[%s1 + $0x390] sm:$0xff]
    %v144 = vld [vmem:[%s1 + $0x398] sm:$0xff]
    %v145 = vld [vmem:[%s1 + $0x3a0] sm:$0xff]
    %v146 = vld [vmem:[%s1 + $0x3a8] sm:$0xff]
    %v147 = vld [vmem:[%s1 + $0x3b0] sm:$0xff]
    %v148 = vld [vmem:[%s1 + $0x3b8] sm:$0xff]
    %v149 = vld [vmem:[%s1 + $0x3c0] sm:$0xff]
    %v150 = vld [vmem:[%s1 + $0x3c8] sm:$0xff]
    %v151 = vld [vmem:[%s1 + $0x3d0] sm:$0xff]
    %v152 = vld [vmem:[%s1 + $0x3d8] sm:$0xff]
    %v153 = vld [vmem:[%s1 + $0x3e0] sm:$0xff]
    %v154 = vld [vmem:[%s1 + $0x3e8] sm:$0xff]
    %v155 = vld [vmem:[%s1 + $0x3f0] sm:$0xff]
    %v156 = vld [vmem:[%s1 + $0x3f8] sm:$0xff]
    %v157 = vld [vmem:[%s1 + $0x400] sm:$0xff]
    %v158 = vld [vmem:[%s1 + $0x408] sm:$0xff]
    %v159 = vld [vmem:[%s1 + $0x410] sm:$0xff]
    %v160 = vld [vmem:[%s1 + $0x418] sm:$0xff]
    %v161 = vld [vmem:[%s1 + $0x420] sm:$0xff]
    %v162 = vld [vmem:[%s1 + $0x428] sm:$0xff]
    %v163 = vld [vmem:[%s1 + $0x430] sm:$0xff]
    %v164 = vld [vmem:[%s1 + $0x438] sm:$0xff]
    %v165 = vld [vmem:[%s1 + $0x440] sm:$0xff]
    %v166 = vld [vmem:[%s1 + $0x448] sm:$0xff]
    %v167 = vld [vmem:[%s1 + $0x450] sm:$0xff]
    %v168 = vld [vmem:[%s1 + $0x458] sm:$0xff]
    %v169 = vld [vmem:[%s1 + $0x460] sm:$0xff]
    %v170 = vld [vmem:[%s1 + $0x468] sm:$0xff]
    %v171 = vld [vmem:[%s1 + $0x470] sm:$0xff]
    %v172 = vld [vmem:[%s1 + $0x478] sm:$0xff]
    %v173 = vld [vmem:[%s1 + $0x480] sm:$0xff]
    %v174 = vld [vmem:[%s1 + $0x488] sm:$0xff]
    %v175 = vld [vmem:[%s1 + $0x490] sm:$0xff]
    %v176 = vld [vmem:[%s1 + $0x498] sm:$0xff]
    %v177 = vld [vmem:[%s1 + $0x4a0] sm:$0xff]
    %v178 = vld [vmem:[%s1 + $0x4a8] sm:$0xff]
    %v179 = vld [vmem:[%s1 + $0x4b0] sm:$0xff]
    %v180 = vld [vmem:[%s1 + $0x4b8] sm:$0xff]
    %v181 = vld [vmem:[%s1 + $0x4c0] sm:$0xff]
    %v182 = vld [vmem:[%s1 + $0x4c8] sm:$0xff]
    %v183 = vld [vmem:[%s1 + $0x4d0] sm:$0xff]
    %v184 = vld [vmem:[%s1 + $0x4d8] sm:$0xff]
    %v185 = vld [vmem:[%s1 + $0x4e0] sm:$0xff]
    %v186 = vld [vmem:[%s1 + $0x4e8] sm:$0xff]
    %v187 = vld [vmem:[%s1 + $0x4f0] sm:$0xff]
    %v188 = vld [vmem:[%s1 + $0x4f8] sm:$0xff]
    %v189 = vld [vmem:[%s1 + $0x500] sm:$0xff]
    %v190 = vld [vmem:[%s1 + $0x508] sm:$0xff]
    %v191 = vld [vmem:[%s1 + $0x510] sm:$0xff]
    %v192 = vld [vmem:[%s1 + $0x518] sm:$0xff]
    %v193 = vld [vmem:[%s1 + $0x520] sm:$0xff]
    %v194 = vld [vmem:[%s1 + $0x528] sm:$0xff]
    %v195 = vld [vmem:[%s1 + $0x530] sm:$0xff]
    %v196 = vld [vmem:[%s1 + $0x538] sm:$0xff]
    %v197 = vld [vmem:[%s1 + $0x540] sm:$0xff]
    %v198 = vld [vmem:[%s1 + $0x548] sm:$0xff]
    %v199 = vld [vmem:[%s1 + $0x550] sm:$0xff]
    %v200 = vld [vmem:[%s1 + $0x558] sm:$0xff]
    %v201 = vld [vmem:[%s1 + $0x560] sm:$0xff]
    %v202 = vld [vmem:[%s1 + $0x568] sm:$0xff]
    %v203 = vld [vmem:[%s1 + $0x570] sm:$0xff]
    %v204 = vld [vmem:[%s1 + $0x578] sm:$0xff]
    %v205 = vld [vmem:[%s1 + $0x580] sm:$0xff]
    %v206 = vld [vmem:[%s1 + $0x588] sm:$0xff]
    %v207 = vld [vmem:[%s1 + $0x590] sm:$0xff]
    %v208 = vld [vmem:[%s1 + $0x598] sm:$0xff]
    %v209 = vld [vmem:[%s1 + $0x5a0] sm:$0xff]
    %v210 = vld [vmem:[%s1 + $0x5a8] sm:$0xff]
    %v211 = vld [vmem:[%s1 + $0x5b0] sm:$0xff]
    %v212 = vld [vmem:[%s1 + $0x5b8] sm:$0xff]
    %v213 = vld [vmem:[%s1 + $0x5c0] sm:$0xff]
    %v214 = vld [vmem:[%s1 + $0x5c8] sm:$0xff]
    %v215 = vld [vmem:[%s1 + $0x5d0] sm:$0xff]
    %v216 = vld [vmem:[%s1 + $0x5d8] sm:$0xff]
    %v217 = vld [vmem:[%s1 + $0x5e0] sm:$0xff]
    %v218 = vld [vmem:[%s1 + $0x5e8] sm:$0xff]
    %v219 = vld [vmem:[%s1 + $0x5f0] sm:$0xff]
    %v220 = vld [vmem:[%s1 + $0x5f8] sm:$0xff]
    %v221 = vld [vmem:[%s1 + $0x600] sm:$0xff]
    %v222 = vld [vmem:[%s1 + $0x608] sm:$0xff]
    %v223 = vld [vmem:[%s1 + $0x610] sm:$0xff]
    %v224 = vld [vmem:[%s1 + $0x618] sm:$0xff]
    %v225 = vld [vmem:[%s1 + $0x620] sm:$0xff]
    %v226 = vld [vmem:[%s1 + $0x628] sm:$0xff]
    %v227 = vld [vmem:[%s1 + $0x630] sm:$0xff]
    %v228 = vld [vmem:[%s1 + $0x638] sm:$0xff]
    %v229 = vld [vmem:[%s1 + $0x640] sm:$0xff]
    %v230 = vld [vmem:[%s1 + $0x648] sm:$0xff]
    %v231 = vld [vmem:[%s1 + $0x650] sm:$0xff]
    %v232 = vld [vmem:[%s1 + $0x658] sm:$0xff]
    %v233 = vld [vmem:[%s1 + $0x660] sm:$0xff]
    %v234 = vld [vmem:[%s1 + $0x668] sm:$0xff]
    %v235 = vld [vmem:[%s1 + $0x670] sm:$0xff]
    %v236 = vld [vmem:[%s1 + $0x678] sm:$0xff]
    %v237 = vld [vmem:[%s1 + $0x680] sm:$0xff]
    %v238 = vld [vmem:[%s1 + $0x688] sm:$0xff]
    %v239 = vld [vmem:[%s1 + $0x690] sm:$0xff]
    %v240 = vld [vmem:[%s1 + $0x698] sm:$0xff]
    %v241 = vld [vmem:[%s1 + $0x6a0] sm:$0xff]
    %v242 = vld [vmem:[%s1 + $0x6a8] sm:$0xff]
    %v243 = vld [vmem:[%s1 + $0x6b0] sm:$0xff]
    %v244 = vld [vmem:[%s1 + $0x6b8] sm:$0xff]
    %v245 = vld [vmem:[%s1 + $0x6c0] sm:$0xff]
    %v246 = vld [vmem:[%s1 + $0x6c8] sm:$0xff]
    %v247 = vld [vmem:[%s1 + $0x6d0] sm:$0xff]
    %v248 = vld [vmem:[%s1 + $0x6d8] sm:$0xff]
    %v249 = vld [vmem:[%s1 + $0x6e0] sm:$0xff]
    %v250 = vld [vmem:[%s1 + $0x6e8] sm:$0xff]
    %v251 = vld [vmem:[%s1 + $0x6f0] sm:$0xff]
    %v252 = vld [vmem:[%s1 + $0x6f8] sm:$0xff]
    %v253 = vld [vmem:[%s1 + $0x700] sm:$0xff]
    %v254 = vld [vmem:[%s1 + $0x708] sm:$0xff]
    %v255 = vld [vmem:[%s1 + $0x710] sm:$0xff]
    %v256 = vld [vmem:[%s1 + $0x718] sm:$0xff]
    %v257 = vld [vmem:[%s1 + $0x720] sm:$0xff]
    %v258 = vld [vmem:[%s1 + $0x728] sm:$0xff]
    %v259 = vld [vmem:[%s1 + $0x730] sm:$0xff]
    %v260 = vld [vmem:[%s1 + $0x738] sm:$0xff]
    %v261 = vld [vmem:[%s1 + $0x740] sm:$0xff]
    %v262 = vld [vmem:[%s1 + $0x748] sm:$0xff]
    %v263 = vld [vmem:[%s1 + $0x750] sm:$0xff]
    %v264 = vld [vmem:[%s1 + $0x758] sm:$0xff]
    %v265 = vld [vmem:[%s1 + $0x760] sm:$0xff]
    %v266 = vld [vmem:[%s1 + $0x768] sm:$0xff]
    %v267 = vld [vmem:[%s1 + $0x770] sm:$0xff]
    %v268 = vld [vmem:[%s1 + $0x778] sm:$0xff]
    %v269 = vld [vmem:[%s1 + $0x780] sm:$0xff]
    %v270 = vld [vmem:[%s1 + $0x788] sm:$0xff]
    %v271 = vld [vmem:[%s1 + $0x790] sm:$0xff]
    %v272 = vld [vmem:[%s1 + $0x798] sm:$0xff]
    %v273 = vld [vmem:[%s1 + $0x7a0] sm:$0xf]
    %v274 = vld [vmem:[%s1 + $0x7a8] sm:$0xf]
    %v275 = vld [vmem:[%s2] sm:$0x3]
    %v277 = vperm.slane %v275, 0
    %v278 = vperm.slane %v275, 1
    %283 = vst [vmem:[#allocation1] ss:$4 sm:$0xff] %v27
    %s284 = scalar_lea.vmem [#allocation1], 32
    %285 = vst [vmem:[%s284] ss:$4 sm:$0xff] %v28
    %v286 = vld.sshfl [vmem:[#allocation1] sm:$0xff pattern:$0x73625140]
    %v287 = vld.sshfl [vmem:[#allocation1 + $0x8] sm:$0xff pattern:$0x73625140]
    %v288 = vld.sshfl [vmem:[#allocation1 + $0x10] sm:$0xff pattern:$0x73625140]
    %v289 = vld.sshfl [vmem:[#allocation1 + $0x18] sm:$0xff pattern:$0x73625140]
    %v290 = vld.sshfl [vmem:[#allocation1 + $0x20] sm:$0xff pattern:$0x73625140]
    %v291 = vld.sshfl [vmem:[#allocation1 + $0x28] sm:$0xff pattern:$0x73625140]
    %v292 = vld.sshfl [vmem:[#allocation1 + $0x30] sm:$0xff pattern:$0x73625140]
    %v293 = vld.sshfl [vmem:[#allocation1 + $0x38] sm:$0xff pattern:$0x73625140]
    %vm301 = vcmask 687104
    %v302 = vsel %vm301, %v293, 0
    %vm304 = vcmask 1043456
    %v306 = vsel %vm304, %v273, 0
    %v309 = vsel %vm304, %v274, 0
    %311 = vmatpush.msra.mxu0 %v59
    %312 = vmatpush.msra.mxu0 %v57
    %313 = vmatpush.msra.mxu0 %v55
    %314 = vmatpush.msra.mxu0 %v53
    %315 = vmatpush.msra.mxu0 %v51
    %316 = vmatpush.msra.mxu0 %v49
    %317 = vmatpush.msra.mxu0 %v47
    %318 = vmatpush.msra.mxu0 %v45
    %319 = vmatpush.msra.mxu0 %v43
    %320 = vmatpush.msra.mxu0 %v41
    %321 = vmatpush.msra.mxu0 %v39
    %322 = vmatpush.msra.mxu0 %v37
    %323 = vmatpush.msra.mxu0 %v35
    %324 = vmatpush.msra.mxu0 %v33
    %325 = vmatpush.msra.mxu0 %v31
    %326 = vmatpush.msra.mxu0 %v29
    %327 = vmatmul.f32.gmra.mxu0 %v286
    %v328 = vpop.f32.mrf.mxu0
    %v329 = vadd.f32 %v277, %v328
    %330 = vdwg.mxu0
    %331 = vmatpush.msra.mxu0 %v91
    %332 = vmatpush.msra.mxu0 %v89
    %333 = vmatpush.msra.mxu0 %v87
    %334 = vmatpush.msra.mxu0 %v85
    %335 = vmatpush.msra.mxu0 %v83
    %336 = vmatpush.msra.mxu0 %v81
    %337 = vmatpush.msra.mxu0 %v79
    %338 = vmatpush.msra.mxu0 %v77
    %339 = vmatpush.msra.mxu0 %v75
    %340 = vmatpush.msra.mxu0 %v73
    %341 = vmatpush.msra.mxu0 %v71
    %342 = vmatpush.msra.mxu0 %v69
    %343 = vmatpush.msra.mxu0 %v67
    %344 = vmatpush.msra.mxu0 %v65
    %345 = vmatpush.msra.mxu0 %v63
    %346 = vmatpush.msra.mxu0 %v61
    %347 = vmatmul.f32.gmra.mxu0 %v287
    %v348 = vpop.f32.mrf.mxu0
    %v349 = vadd.f32 %v329, %v348
    %350 = vdwg.mxu0
    %351 = vmatpush.msra.mxu0 %v123
    %352 = vmatpush.msra.mxu0 %v121
    %353 = vmatpush.msra.mxu0 %v119
    %354 = vmatpush.msra.mxu0 %v117
    %355 = vmatpush.msra.mxu0 %v115
    %356 = vmatpush.msra.mxu0 %v113
    %357 = vmatpush.msra.mxu0 %v111
    %358 = vmatpush.msra.mxu0 %v109
    %359 = vmatpush.msra.mxu0 %v107
    %360 = vmatpush.msra.mxu0 %v105
    %361 = vmatpush.msra.mxu0 %v103
    %362 = vmatpush.msra.mxu0 %v101
    %363 = vmatpush.msra.mxu0 %v99
    %364 = vmatpush.msra.mxu0 %v97
    %365 = vmatpush.msra.mxu0 %v95
    %366 = vmatpush.msra.mxu0 %v93
    %367 = vmatmul.f32.gmra.mxu0 %v288
    %v368 = vpop.f32.mrf.mxu0
    %v369 = vadd.f32 %v349, %v368
    %370 = vdwg.mxu0
    %371 = vmatpush.msra.mxu0 %v155
    %372 = vmatpush.msra.mxu0 %v153
    %373 = vmatpush.msra.mxu0 %v151
    %374 = vmatpush.msra.mxu0 %v149
    %375 = vmatpush.msra.mxu0 %v147
    %376 = vmatpush.msra.mxu0 %v145
    %377 = vmatpush.msra.mxu0 %v143
    %378 = vmatpush.msra.mxu0 %v141
    %379 = vmatpush.msra.mxu0 %v139
    %380 = vmatpush.msra.mxu0 %v137
    %381 = vmatpush.msra.mxu0 %v135
    %382 = vmatpush.msra.mxu0 %v133
    %383 = vmatpush.msra.mxu0 %v131
    %384 = vmatpush.msra.mxu0 %v129
    %385 = vmatpush.msra.mxu0 %v127
    %386 = vmatpush.msra.mxu0 %v125
    %387 = vmatmul.f32.gmra.mxu0 %v289
    %v388 = vpop.f32.mrf.mxu0
    %v389 = vadd.f32 %v369, %v388
    %390 = vdwg.mxu0
    %391 = vmatpush.msra.mxu0 %v187
    %392 = vmatpush.msra.mxu0 %v185
    %393 = vmatpush.msra.mxu0 %v183
    %394 = vmatpush.msra.mxu0 %v181
    %395 = vmatpush.msra.mxu0 %v179
    %396 = vmatpush.msra.mxu0 %v177
    %397 = vmatpush.msra.mxu0 %v175
    %398 = vmatpush.msra.mxu0 %v173
    %399 = vmatpush.msra.mxu0 %v171
    %400 = vmatpush.msra.mxu0 %v169
    %401 = vmatpush.msra.mxu0 %v167
    %402 = vmatpush.msra.mxu0 %v165
    %403 = vmatpush.msra.mxu0 %v163
    %404 = vmatpush.msra.mxu0 %v161
    %405 = vmatpush.msra.mxu0 %v159
    %406 = vmatpush.msra.mxu0 %v157
    %407 = vmatmul.f32.gmra.mxu0 %v290
    %v408 = vpop.f32.mrf.mxu0
    %v409 = vadd.f32 %v389, %v408
    %410 = vdwg.mxu0
    %411 = vmatpush.msra.mxu0 %v219
    %412 = vmatpush.msra.mxu0 %v217
    %413 = vmatpush.msra.mxu0 %v215
    %414 = vmatpush.msra.mxu0 %v213
    %415 = vmatpush.msra.mxu0 %v211
    %416 = vmatpush.msra.mxu0 %v209
    %417 = vmatpush.msra.mxu0 %v207
    %418 = vmatpush.msra.mxu0 %v205
    %419 = vmatpush.msra.mxu0 %v203
    %420 = vmatpush.msra.mxu0 %v201
    %421 = vmatpush.msra.mxu0 %v199
    %422 = vmatpush.msra.mxu0 %v197
    %423 = vmatpush.msra.mxu0 %v195
    %424 = vmatpush.msra.mxu0 %v193
    %425 = vmatpush.msra.mxu0 %v191
    %426 = vmatpush.msra.mxu0 %v189
    %427 = vmatmul.f32.gmra.mxu0 %v291
    %v428 = vpop.f32.mrf.mxu0
    %v429 = vadd.f32 %v409, %v428
    %430 = vdwg.mxu0
    %431 = vmatpush.msra.mxu0 %v251
    %432 = vmatpush.msra.mxu0 %v249
    %433 = vmatpush.msra.mxu0 %v247
    %434 = vmatpush.msra.mxu0 %v245
    %435 = vmatpush.msra.mxu0 %v243
    %436 = vmatpush.msra.mxu0 %v241
    %437 = vmatpush.msra.mxu0 %v239
    %438 = vmatpush.msra.mxu0 %v237
    %439 = vmatpush.msra.mxu0 %v235
    %440 = vmatpush.msra.mxu0 %v233
    %441 = vmatpush.msra.mxu0 %v231
    %442 = vmatpush.msra.mxu0 %v229
    %443 = vmatpush.msra.mxu0 %v227
    %444 = vmatpush.msra.mxu0 %v225
    %445 = vmatpush.msra.mxu0 %v223
    %446 = vmatpush.msra.mxu0 %v221
    %447 = vmatmul.f32.gmra.mxu0 %v292
    %v448 = vpop.f32.mrf.mxu0
    %v449 = vadd.f32 %v429, %v448
    %450 = vdwg.mxu0
    %451 = vmatpush.msra.mxu0 0.0
    %452 = vmatpush.msra.mxu0 0.0
    %453 = vmatpush.msra.mxu0 0.0
    %454 = vmatpush.msra.mxu0 0.0
    %455 = vmatpush.msra.mxu0 0.0
    %456 = vmatpush.msra.mxu0 %v306
    %457 = vmatpush.msra.mxu0 %v271
    %458 = vmatpush.msra.mxu0 %v269
    %459 = vmatpush.msra.mxu0 %v267
    %460 = vmatpush.msra.mxu0 %v265
    %461 = vmatpush.msra.mxu0 %v263
    %462 = vmatpush.msra.mxu0 %v261
    %463 = vmatpush.msra.mxu0 %v259
    %464 = vmatpush.msra.mxu0 %v257
    %465 = vmatpush.msra.mxu0 %v255
    %466 = vmatpush.msra.mxu0 %v253
    %467 = vmatmul.f32.gmra.mxu0 %v302
    %v468 = vpop.f32.mrf.mxu0
    %v469 = vadd.f32 %v449, %v468
    %470 = vdwg.mxu0
    %471 = vmatpush.msra.mxu0 %v60
    %472 = vmatpush.msra.mxu0 %v58
    %473 = vmatpush.msra.mxu0 %v56
    %474 = vmatpush.msra.mxu0 %v54
    %475 = vmatpush.msra.mxu0 %v52
    %476 = vmatpush.msra.mxu0 %v50
    %477 = vmatpush.msra.mxu0 %v48
    %478 = vmatpush.msra.mxu0 %v46
    %479 = vmatpush.msra.mxu0 %v44
    %480 = vmatpush.msra.mxu0 %v42
    %481 = vmatpush.msra.mxu0 %v40
    %482 = vmatpush.msra.mxu0 %v38
    %483 = vmatpush.msra.mxu0 %v36
    %484 = vmatpush.msra.mxu0 %v34
    %485 = vmatpush.msra.mxu0 %v32
    %486 = vmatpush.msra.mxu0 %v30
    %487 = vmatmul.f32.gmra.mxu0 %v286
    %v488 = vpop.f32.mrf.mxu0
    %v489 = vadd.f32 %v278, %v488
    %490 = vdwg.mxu0
    %491 = vmatpush.msra.mxu0 %v92
    %492 = vmatpush.msra.mxu0 %v90
    %493 = vmatpush.msra.mxu0 %v88
    %494 = vmatpush.msra.mxu0 %v86
    %495 = vmatpush.msra.mxu0 %v84
    %496 = vmatpush.msra.mxu0 %v82
    %497 = vmatpush.msra.mxu0 %v80
    %498 = vmatpush.msra.mxu0 %v78
    %499 = vmatpush.msra.mxu0 %v76
    %500 = vmatpush.msra.mxu0 %v74
    %501 = vmatpush.msra.mxu0 %v72
    %502 = vmatpush.msra.mxu0 %v70
    %503 = vmatpush.msra.mxu0 %v68
    %504 = vmatpush.msra.mxu0 %v66
    %505 = vmatpush.msra.mxu0 %v64
    %506 = vmatpush.msra.mxu0 %v62
    %507 = vmatmul.f32.gmra.mxu0 %v287
    %v508 = vpop.f32.mrf.mxu0
    %v509 = vadd.f32 %v489, %v508
    %510 = vdwg.mxu0
    %511 = vmatpush.msra.mxu0 %v124
    %512 = vmatpush.msra.mxu0 %v122
    %513 = vmatpush.msra.mxu0 %v120
    %514 = vmatpush.msra.mxu0 %v118
    %515 = vmatpush.msra.mxu0 %v116
    %516 = vmatpush.msra.mxu0 %v114
    %517 = vmatpush.msra.mxu0 %v112
    %518 = vmatpush.msra.mxu0 %v110
    %519 = vmatpush.msra.mxu0 %v108
    %520 = vmatpush.msra.mxu0 %v106
    %521 = vmatpush.msra.mxu0 %v104
    %522 = vmatpush.msra.mxu0 %v102
    %523 = vmatpush.msra.mxu0 %v100
    %524 = vmatpush.msra.mxu0 %v98
    %525 = vmatpush.msra.mxu0 %v96
    %526 = vmatpush.msra.mxu0 %v94
    %527 = vmatmul.f32.gmra.mxu0 %v288
    %v528 = vpop.f32.mrf.mxu0
    %v529 = vadd.f32 %v509, %v528
    %530 = vdwg.mxu0
    %531 = vmatpush.msra.mxu0 %v156
    %532 = vmatpush.msra.mxu0 %v154
    %533 = vmatpush.msra.mxu0 %v152
    %534 = vmatpush.msra.mxu0 %v150
    %535 = vmatpush.msra.mxu0 %v148
    %536 = vmatpush.msra.mxu0 %v146
    %537 = vmatpush.msra.mxu0 %v144
    %538 = vmatpush.msra.mxu0 %v142
    %539 = vmatpush.msra.mxu0 %v140
    %540 = vmatpush.msra.mxu0 %v138
    %541 = vmatpush.msra.mxu0 %v136
    %542 = vmatpush.msra.mxu0 %v134
    %543 = vmatpush.msra.mxu0 %v132
    %544 = vmatpush.msra.mxu0 %v130
    %545 = vmatpush.msra.mxu0 %v128
    %546 = vmatpush.msra.mxu0 %v126
    %547 = vmatmul.f32.gmra.mxu0 %v289
    %v548 = vpop.f32.mrf.mxu0
    %v549 = vadd.f32 %v529, %v548
    %550 = vdwg.mxu0
    %551 = vmatpush.msra.mxu0 %v188
    %552 = vmatpush.msra.mxu0 %v186
    %553 = vmatpush.msra.mxu0 %v184
    %554 = vmatpush.msra.mxu0 %v182
    %555 = vmatpush.msra.mxu0 %v180
    %556 = vmatpush.msra.mxu0 %v178
    %557 = vmatpush.msra.mxu0 %v176
    %558 = vmatpush.msra.mxu0 %v174
    %559 = vmatpush.msra.mxu0 %v172
    %560 = vmatpush.msra.mxu0 %v170
    %561 = vmatpush.msra.mxu0 %v168
    %562 = vmatpush.msra.mxu0 %v166
    %563 = vmatpush.msra.mxu0 %v164
    %564 = vmatpush.msra.mxu0 %v162
    %565 = vmatpush.msra.mxu0 %v160
    %566 = vmatpush.msra.mxu0 %v158
    %567 = vmatmul.f32.gmra.mxu0 %v290
    %v568 = vpop.f32.mrf.mxu0
    %v569 = vadd.f32 %v549, %v568
    %570 = vdwg.mxu0
    %571 = vmatpush.msra.mxu0 %v220
    %572 = vmatpush.msra.mxu0 %v218
    %573 = vmatpush.msra.mxu0 %v216
    %574 = vmatpush.msra.mxu0 %v214
    %575 = vmatpush.msra.mxu0 %v212
    %576 = vmatpush.msra.mxu0 %v210
    %577 = vmatpush.msra.mxu0 %v208
    %578 = vmatpush.msra.mxu0 %v206
    %579 = vmatpush.msra.mxu0 %v204
    %580 = vmatpush.msra.mxu0 %v202
    %581 = vmatpush.msra.mxu0 %v200
    %582 = vmatpush.msra.mxu0 %v198
    %583 = vmatpush.msra.mxu0 %v196
    %584 = vmatpush.msra.mxu0 %v194
    %585 = vmatpush.msra.mxu0 %v192
    %586 = vmatpush.msra.mxu0 %v190
    %587 = vmatmul.f32.gmra.mxu0 %v291
    %v588 = vpop.f32.mrf.mxu0
    %v589 = vadd.f32 %v569, %v588
    %590 = vdwg.mxu0
    %591 = vmatpush.msra.mxu0 %v252
    %592 = vmatpush.msra.mxu0 %v250
    %593 = vmatpush.msra.mxu0 %v248
    %594 = vmatpush.msra.mxu0 %v246
    %595 = vmatpush.msra.mxu0 %v244
    %596 = vmatpush.msra.mxu0 %v242
    %597 = vmatpush.msra.mxu0 %v240
    %598 = vmatpush.msra.mxu0 %v238
    %599 = vmatpush.msra.mxu0 %v236
    %600 = vmatpush.msra.mxu0 %v234
    %601 = vmatpush.msra.mxu0 %v232
    %602 = vmatpush.msra.mxu0 %v230
    %603 = vmatpush.msra.mxu0 %v228
    %604 = vmatpush.msra.mxu0 %v226
    %605 = vmatpush.msra.mxu0 %v224
    %606 = vmatpush.msra.mxu0 %v222
    %607 = vmatmul.f32.gmra.mxu0 %v292
    %v608 = vpop.f32.mrf.mxu0
    %v609 = vadd.f32 %v589, %v608
    %610 = vdwg.mxu0
    %611 = vmatpush.msra.mxu0 0.0
    %612 = vmatpush.msra.mxu0 0.0
    %613 = vmatpush.msra.mxu0 0.0
    %614 = vmatpush.msra.mxu0 0.0
    %615 = vmatpush.msra.mxu0 0.0
    %616 = vmatpush.msra.mxu0 %v309
    %617 = vmatpush.msra.mxu0 %v272
    %618 = vmatpush.msra.mxu0 %v270
    %619 = vmatpush.msra.mxu0 %v268
    %620 = vmatpush.msra.mxu0 %v266
    %621 = vmatpush.msra.mxu0 %v264
    %622 = vmatpush.msra.mxu0 %v262
    %623 = vmatpush.msra.mxu0 %v260
    %624 = vmatpush.msra.mxu0 %v258
    %625 = vmatpush.msra.mxu0 %v256
    %626 = vmatpush.msra.mxu0 %v254
    %627 = vmatmul.f32.gmra.mxu0 %v302
    %v628 = vpop.f32.mrf.mxu0
    %v629 = vadd.f32 %v609, %v628
    %630 = vdwg.mxu0
    %v631 = vmax.f32 %v469, 0.0
    %v632 = vmax.f32 %v629, 0.0
    %v633 = vld [vmem:[%s3] sm:$0xff]
    %v634 = vld [vmem:[%s3 + $0x8] sm:$0xff]
    %v635 = vld [vmem:[%s3 + $0x10] sm:$0xff]
    %v636 = vld [vmem:[%s3 + $0x18] sm:$0xff]
    %v637 = vld [vmem:[%s3 + $0x20] sm:$0xff]
    %v638 = vld [vmem:[%s3 + $0x28] sm:$0xff]
    %v639 = vld [vmem:[%s3 + $0x30] sm:$0xff]
    %v640 = vld [vmem:[%s3 + $0x38] sm:$0xff]
    %v641 = vld [vmem:[%s3 + $0x40] sm:$0xff]
    %v642 = vld [vmem:[%s3 + $0x48] sm:$0xff]
    %v643 = vld [vmem:[%s3 + $0x50] sm:$0xff]
    %v644 = vld [vmem:[%s3 + $0x58] sm:$0xff]
    %v645 = vld [vmem:[%s3 + $0x60] sm:$0xff]
    %v646 = vld [vmem:[%s3 + $0x68] sm:$0xff]
    %v647 = vld [vmem:[%s3 + $0x70] sm:$0xff]
    %v648 = vld [vmem:[%s3 + $0x78] sm:$0xff]
    %v649 = vld [vmem:[%s3 + $0x80] sm:$0xff]
    %v650 = vld [vmem:[%s3 + $0x88] sm:$0xff]
    %v651 = vld [vmem:[%s3 + $0x90] sm:$0xff]
    %v652 = vld [vmem:[%s3 + $0x98] sm:$0xff]
    %v653 = vld [vmem:[%s3 + $0xa0] sm:$0xff]
    %v654 = vld [vmem:[%s3 + $0xa8] sm:$0xff]
    %v655 = vld [vmem:[%s3 + $0xb0] sm:$0xff]
    %v656 = vld [vmem:[%s3 + $0xb8] sm:$0xff]
    %v657 = vld [vmem:[%s3 + $0xc0] sm:$0xff]
    %v658 = vld [vmem:[%s3 + $0xc8] sm:$0xff]
    %v659 = vld [vmem:[%s3 + $0xd0] sm:$0xff]
    %v660 = vld [vmem:[%s3 + $0xd8] sm:$0xff]
    %v661 = vld [vmem:[%s3 + $0xe0] sm:$0xff]
    %v662 = vld [vmem:[%s3 + $0xe8] sm:$0xff]
    %v663 = vld [vmem:[%s3 + $0xf0] sm:$0xff]
    %v664 = vld [vmem:[%s3 + $0xf8] sm:$0xff]
    %v665 = vld [vmem:[%s4] sm:$0x1]
    %v667 = vperm.slane %v665, 0
    %669 = vmatpush.msra.mxu0 %v648
    %670 = vmatpush.msra.mxu0 %v647
    %671 = vmatpush.msra.mxu0 %v646
    %672 = vmatpush.msra.mxu0 %v645
    %673 = vmatpush.msra.mxu0 %v644
    %674 = vmatpush.msra.mxu0 %v643
    %675 = vmatpush.msra.mxu0 %v642
    %676 = vmatpush.msra.mxu0 %v641
    %677 = vmatpush.msra.mxu0 %v640
    %678 = vmatpush.msra.mxu0 %v639
    %679 = vmatpush.msra.mxu0 %v638
    %680 = vmatpush.msra.mxu0 %v637
    %681 = vmatpush.msra.mxu0 %v636
    %682 = vmatpush.msra.mxu0 %v635
    %683 = vmatpush.msra.mxu0 %v634
    %684 = vmatpush.msra.mxu0 %v633
    %685 = vmatmul.f32.gmra.mxu0 %v631
    %v686 = vpop.f32.mrf.mxu0
    %v687 = vadd.f32 %v667, %v686
    %688 = vdwg.mxu0
    %689 = vmatpush.msra.mxu0 %v664
    %690 = vmatpush.msra.mxu0 %v663
    %691 = vmatpush.msra.mxu0 %v662
    %692 = vmatpush.msra.mxu0 %v661
    %693 = vmatpush.msra.mxu0 %v660
    %694 = vmatpush.msra.mxu0 %v659
    %695 = vmatpush.msra.mxu0 %v658
    %696 = vmatpush.msra.mxu0 %v657
    %697 = vmatpush.msra.mxu0 %v656
    %698 = vmatpush.msra.mxu0 %v655
    %699 = vmatpush.msra.mxu0 %v654
    %700 = vmatpush.msra.mxu0 %v653
    %701 = vmatpush.msra.mxu0 %v652
    %702 = vmatpush.msra.mxu0 %v651
    %703 = vmatpush.msra.mxu0 %v650
    %704 = vmatpush.msra.mxu0 %v649
    %705 = vmatmul.f32.gmra.mxu0 %v632
    %v706 = vpop.f32.mrf.mxu0
    %v707 = vadd.f32 %v687, %v706
    %708 = vdwg.mxu0
    %v709 = vmax.f32 %v707, 0.0
    %v710 = vld [vmem:[%s5] sm:$0xff]
    %v711 = vld [vmem:[%s5 + $0x8] sm:$0xff]
    %v712 = vld [vmem:[%s5 + $0x10] sm:$0xff]
    %v713 = vld [vmem:[%s5 + $0x18] sm:$0xff]
    %v714 = vld [vmem:[%s5 + $0x20] sm:$0xff]
    %v715 = vld [vmem:[%s5 + $0x28] sm:$0xff]
    %v716 = vld [vmem:[%s5 + $0x30] sm:$0xff]
    %v717 = vld [vmem:[%s5 + $0x38] sm:$0xff]
    %v718 = vld [vmem:[%s5 + $0x40] sm:$0xff]
    %v719 = vld [vmem:[%s5 + $0x48] sm:$0xff]
    %v720 = vld [vmem:[%s5 + $0x50] sm:$0xff]
    %v721 = vld [vmem:[%s5 + $0x58] sm:$0xff]
    %v722 = vld [vmem:[%s5 + $0x60] sm:$0xff]
    %v723 = vld [vmem:[%s5 + $0x68] sm:$0xff]
    %v724 = vld [vmem:[%s5 + $0x70] sm:$0xff]
    %v725 = vld [vmem:[%s5 + $0x78] sm:$0xff]
    %v726 = vld [vmem:[%s6] sm:$0x1]
    %v728 = vperm.slane %v726, 0
    %730 = vmatpush.msra.mxu0 %v725
    %731 = vmatpush.msra.mxu0 %v724
    %732 = vmatpush.msra.mxu0 %v723
    %733 = vmatpush.msra.mxu0 %v722
    %734 = vmatpush.msra.mxu0 %v721
    %735 = vmatpush.msra.mxu0 %v720
    %736 = vmatpush.msra.mxu0 %v719
    %737 = vmatpush.msra.mxu0 %v718
    %738 = vmatpush.msra.mxu0 %v717
    %739 = vmatpush.msra.mxu0 %v716
    %740 = vmatpush.msra.mxu0 %v715
    %741 = vmatpush.msra.mxu0 %v714
    %742 = vmatpush.msra.mxu0 %v713
    %743 = vmatpush.msra.mxu0 %v712
    %744 = vmatpush.msra.mxu0 %v711
    %745 = vmatpush.msra.mxu0 %v710
    %746 = vmatmul.f32.gmra.mxu0 %v709
    %v747 = vpop.f32.mrf.mxu0
    %v748 = vadd.f32 %v728, %v747
    %749 = vdwg.mxu0
    %vm750 = vcmask 320512
    %751 = vst.msk [vmem:[#allocation2] sm:$0x3] %vm750, %v748
    // Predicated region
    $region30: #{picnet_forward.5} parent=1 // pred_check
      _
    $region31: #{picnet_forward.5} parent=1 // pred_check_branch
      %753 = sbr.rel (0) target = $region33
    $region32: #{picnet_forward.5} parent=1 // pred_region
      %755 = vsyncadd [#allocation3], 0
      %s757 = sshll.u32 [#allocation2], 4
      %s758 = int_to_ptr.vmem [resolvable:$true] %s757
      %s759 = sshll.u32 %s7, 4
      %s760 = int_to_ptr.hbm [resolvable:$true] %s759
      %762 = dma.vmem_to_hbm [thread:$0]  %s758, 32, %s760, [#allocation3]
    $region33: #{picnet_forward.5} parent=1 // pred_fallthru
      _
    // Predicated region
    $region34: #{picnet_forward.5} parent=1 // pred_check
      _
    $region35: #{picnet_forward.5} parent=1 // pred_check_branch
      %764 = sbr.rel (0) target = $region37
    $region36: #{picnet_forward.5} parent=1 // pred_region
      %766 = dma.done [#allocation3], 32
    $region37: #{picnet_forward.5} parent=1 // pred_fallthru
      _
    %767 = vsyncpa [#allocation3], 1

</llo_original>
